<compile_context>
chip_gen: v5e
topology: v5e:2x2
jax: 0.10.0
libtpu: 0.0.40
codegen_flags: <defaults>
</compile_context>

<pallas_src>
import math

import jax
import jax.numpy as jnp
import numpy as np
from jax import lax
from jax.experimental import pallas as pl
from jax.experimental.pallas import tpu as pltpu


def _lpalm_kernel(x_ref, wt_ref, theta_ref, inv_la_ref, s_ref, a_ref):
    """One-shot LPALM forward (whole problem resident in VMEM).

    x_ref:      (b, m, t_len)  VMEM  -- mixtures X
    wt_ref:     (T, n, m)      VMEM  -- W_CP_S[t]^T (pre-transposed on the host)
    theta_ref:  (T,)           SMEM  -- per-layer soft threshold
    inv_la_ref: (T,)           SMEM  -- per-layer 1/L_A (precomputed on the host)
    s_ref:      (b, n, t_len)  VMEM  -- output S_pred
    a_ref:      (b, m, n)      VMEM  -- output A_pred
    """
    b, m, tl = x_ref.shape
    n = a_ref.shape[2]
    T = wt_ref.shape[0]

    # Per-batch mixture blocks: each (m, tl) = (8, 128) is one dense f32 vreg tile.
    X_b = [x_ref[bb] for bb in range(b)]

    # S carried batch-folded on the sublane axis: (b*n, tl) = (8, 128) -> one dense vreg.
    S = jnp.zeros((b * n, tl), jnp.float32)
    # A_pred init: ones column-normalized along dim 1 -> every entry 1/sqrt(m).
    A_b = [jnp.full((m, n), 1.0 / math.sqrt(m), dtype=jnp.float32) for _ in range(b)]

    # TODO(synk): if T is ever made large, switch this static unroll to lax.fori_loop
    # (indexing wt_ref[t] / theta_ref[t]) to bound vreg live ranges; at T=10 it is fine.
    for t in range(T):
        thr = theta_ref[t]                                  # SMEM scalar
        inv_la = inv_la_ref[t]                              # SMEM scalar
        Wt = wt_ref[t]                                      # (n, m) = W_CP_S[t]^T

        # Hoisted batch-invariant broadcasts (JAX won't CSE broadcast_in_dim):
        # W^T columns broadcast along lanes, once per layer (reused over all batches).
        W_cols = [jnp.broadcast_to(Wt[:, i:i + 1], (n, tl)) for i in range(m)]
        # A columns broadcast along lanes, once per layer per batch; A is unchanged
        # between the old-S residual and the new-S residual, so reuse both times.
        A_cols = [[jnp.broadcast_to(A_b[bb][:, k:k + 1], (m, tl)) for k in range(n)]
                  for bb in range(b)]

        def a_mat_s(bb, S_cur):
            # (A_b @ S_b): n-unrolled VPU broadcast-MAC, t_len stays on lanes (no MXU).
            acc = A_cols[bb][0] * S_cur[bb * n:bb * n + 1, :]
            for k in range(1, n):
                acc = acc + A_cols[bb][k] * S_cur[bb * n + k:bb * n + k + 1, :]
            return acc                                       # (m, tl)

        # ---- R_b = A_b @ S_b - X_b  (old S) ---------------------------------
        R_b = [a_mat_s(bb, S) - X_b[bb] for bb in range(b)]

        # ---- S <- prox_l1(S - W^T R) ----------------------------------------
        # dS[j, :] = sum_i W[i, j] * R[i, :], unrolled over the m observations.
        # TODO(synk): if a bundle dump shows XLU/VPU saturation here, this K=m=8
        # contraction can also move to an MXU dot_general or to stride-0 sublane
        # broadcast loads from a VMEM S scratch.
        dS_parts = []
        for bb in range(b):
            Rb = R_b[bb]
            acc = W_cols[0] * Rb[0:1, :]
            for i in range(1, m):
                acc = acc + W_cols[i] * Rb[i:i + 1, :]
            dS_parts.append(acc)                             # (n, tl)
        S = S - jnp.concatenate(dS_parts, axis=0)            # (b*n, tl), dense vreg
        # Soft threshold: max(0, S-thr) + min(0, S+thr) == S - clip(S, -thr, thr).
        S = S - jnp.clip(S, -thr, thr)

        # ---- A <- A + (1/L_A) * (X - A S_new) @ S_new^T  (MXU, K = t_len) -----
        for bb in range(b):
            R2 = X_b[bb] - a_mat_s(bb, S)                    # (m, tl)
            S_bnew = S[bb * n:(bb + 1) * n, :]               # (n, tl)
            dA = lax.dot_general(                            # (m, tl) x (n, tl)^T -> (m, n)
                R2, S_bnew,
                dimension_numbers=(((1,), (1,)), ((), ())),
                preferred_element_type=jnp.float32)
            A_b[bb] = A_b[bb] + inv_la * dA

        # ---- prox_oblique: batch-coupled row norm, exactly as the PyTorch code
        # (norm of A[:, ii, :] taken over the whole (batch, n_sources) slice).
        sumsq = jnp.sum(A_b[0] * A_b[0], axis=-1, keepdims=True)      # (m, 1)
        for bb in range(1, b):
            sumsq = sumsq + jnp.sum(A_b[bb] * A_b[bb], axis=-1, keepdims=True)
        scale = jnp.where(sumsq > 1.0, lax.rsqrt(sumsq), 1.0)         # EUP rsqrt
        A_b = [Ab * scale for Ab in A_b]

    for bb in range(b):
        s_ref[bb, :, :] = S[bb * n:(bb + 1) * n, :]
        a_ref[bb, :, :] = A_b[bb]


def lpalm_forward(X, W_CP_S, theta, L_A, n_sources, T):
    """Wrapper: host-side pre-transpose of W, precomputed 1/L_A, single pallas_call."""
    b, m, tl = X.shape
    n = n_sources
    WT = jnp.swapaxes(W_CP_S, 1, 2).astype(jnp.float32)     # (T, n, m)
    inv_LA = (1.0 / L_A).astype(jnp.float32)                # precompute reciprocal once
    return pl.pallas_call(
        _lpalm_kernel,
        out_shape=(
            jax.ShapeDtypeStruct((b, n, tl), jnp.float32),  # S_pred
            jax.ShapeDtypeStruct((b, m, n), jnp.float32),   # A_pred
        ),
        in_specs=[
            pl.BlockSpec(memory_space=pltpu.MemorySpace.VMEM),   # X
            pl.BlockSpec(memory_space=pltpu.MemorySpace.VMEM),   # W^T per layer
            pl.BlockSpec(memory_space=pltpu.MemorySpace.SMEM),   # theta (scalars)
            pl.BlockSpec(memory_space=pltpu.MemorySpace.SMEM),   # 1/L_A (scalars)
        ],
        out_specs=(
            pl.BlockSpec(memory_space=pltpu.MemorySpace.VMEM),
            pl.BlockSpec(memory_space=pltpu.MemorySpace.VMEM),
        ),
    )(X.astype(jnp.float32), WT, theta.astype(jnp.float32), inv_LA)


def make_params(A0, S0, T, alpha=1e-5):
    """Mirrors LPALM.__init__ (non-shared theta / W_CP_S / L_A)."""
    # A0: (m, n), S0: (n, t_len)
    L_S = 1.001 * np.linalg.norm(A0, ord=2) ** 2            # spectral norm^2
    L_A = 1.001 * np.linalg.norm(S0, ord=2) ** 2
    theta = alpha / L_S
    We = A0.T / L_S                                          # (n, m)
    W_CP_S = We.T                                            # (m, n)
    W_CP_S = np.tile(W_CP_S[None], (T, 1, 1))                # (T, m, n)
    theta = np.full((T,), theta, dtype=np.float32)
    L_A = np.full((T,), L_A, dtype=np.float32)
    return W_CP_S.astype(np.float32), theta, L_A


def lpalm_reference(X, W_CP_S, theta, L_A, n, T):
    """Pure-JAX reference (same math, original orientation) for validation."""
    b, m, tl = X.shape
    S = jnp.zeros((b, n, tl), jnp.float32)
    A = jnp.full((b, m, n), 1.0 / math.sqrt(m), dtype=jnp.float32)
    for t in range(T):
        W = W_CP_S[t]
        R = jnp.einsum('bmn,bnt->bmt', A, S) - X
        S = S - jnp.einsum('mn,bmt->bnt', W, R)
        S = jnp.maximum(0.0, S - theta[t]) + jnp.minimum(0.0, S + theta[t])
        R2 = X - jnp.einsum('bmn,bnt->bmt', A, S)
        A = A + (1.0 / L_A[t]) * jnp.einsum('bmt,bnt->bmn', R2, S)
        norms = jnp.sqrt(jnp.sum(A * A, axis=(0, 2), keepdims=True))
        A = A * jnp.where(norms > 1.0, 1.0 / norms, 1.0)
    return S, A


if __name__ == "__main__":
    # Small shapes: T unrolled layers, batch=2, m=8 observations, n=4 sources,
    # t_len=128 time samples.
    T, b, m, n, tl = 10, 2, 8, 4, 128

    key = jax.random.PRNGKey(0)
    k1, k2, k3 = jax.random.split(key, 3)
    A0 = np.asarray(jax.random.normal(k1, (m, n), jnp.float32))      # module's self.A[0]
    S0 = np.asarray(jax.random.normal(k2, (n, tl), jnp.float32))     # module's self.S[0]
    X = jax.random.normal(k3, (b, m, tl), dtype=jnp.float32)

    W_CP_S_np, theta_np, L_A_np = make_params(A0, S0, T)
    W_CP_S = jnp.asarray(W_CP_S_np)
    theta = jnp.asarray(theta_np)
    L_A = jnp.asarray(L_A_np)

    S_pred, A_pred = lpalm_forward(X, W_CP_S, theta, L_A, n, T)
    jax.block_until_ready((S_pred, A_pred))

    S_ref, A_ref = lpalm_reference(X, W_CP_S, theta, L_A, n, T)
    np.testing.assert_allclose(np.asarray(S_pred), np.asarray(S_ref),
                               rtol=1e-2, atol=1e-3)
    np.testing.assert_allclose(np.asarray(A_pred), np.asarray(A_ref),
                               rtol=1e-2, atol=1e-3)

    print("KERNEL_OK")
</pallas_src>

<mosaic_0001>
module attributes {stable_mosaic.version = 11 : i64} {
  func.func @_lpalm_kernel(%arg0: memref<2x8x128xf32, #tpu.memory_space<vmem>>, %arg1: memref<10x4x8xf32, #tpu.memory_space<vmem>>, %arg2: memref<10xf32, #tpu.memory_space<smem>>, %arg3: memref<10xf32, #tpu.memory_space<smem>>, %arg4: memref<2x4x128xf32, #tpu.memory_space<vmem>>, %arg5: memref<2x8x4xf32, #tpu.memory_space<vmem>>) attributes {dimension_semantics = [], scalar_prefetch = 0 : i64, scratch_operands = 0 : i64, tpu.core_type = #tpu.core_type<tc>} {
    %c0 = arith.constant 0 : index
    %c0_0 = arith.constant 0 : index
    %c0_1 = arith.constant 0 : index
    %0 = vector.load %arg0[%c0, %c0_0, %c0_1] : memref<2x8x128xf32, #tpu.memory_space<vmem>>, vector<1x8x128xf32>
    %1 = vector.shape_cast %0 : vector<1x8x128xf32> to vector<8x128xf32>
    %c1 = arith.constant 1 : index
    %c0_2 = arith.constant 0 : index
    %c0_3 = arith.constant 0 : index
    %2 = vector.load %arg0[%c1, %c0_2, %c0_3] : memref<2x8x128xf32, #tpu.memory_space<vmem>>, vector<1x8x128xf32>
    %3 = vector.shape_cast %2 : vector<1x8x128xf32> to vector<8x128xf32>
    %cst = arith.constant 0.000000e+00 : f32
    %4 = vector.broadcast %cst : f32 to vector<8x128xf32>
    %cst_4 = arith.constant 0.353553385 : f32
    %5 = vector.broadcast %cst_4 : f32 to vector<8x4xf32>
    %cst_5 = arith.constant 0.353553385 : f32
    %6 = vector.broadcast %cst_5 : f32 to vector<8x4xf32>
    %c0_6 = arith.constant 0 : index
    %7 = memref.load %arg2[%c0_6] : memref<10xf32, #tpu.memory_space<smem>>
    %c0_7 = arith.constant 0 : index
    %8 = memref.load %arg3[%c0_7] : memref<10xf32, #tpu.memory_space<smem>>
    %c0_8 = arith.constant 0 : index
    %c0_9 = arith.constant 0 : index
    %c0_10 = arith.constant 0 : index
    %9 = vector.load %arg1[%c0_8, %c0_9, %c0_10] : memref<10x4x8xf32, #tpu.memory_space<vmem>>, vector<1x4x8xf32>
    %10 = vector.shape_cast %9 : vector<1x4x8xf32> to vector<4x8xf32>
    %11 = vector.extract_strided_slice %10 {offsets = [0, 0], sizes = [4, 1], strides = [1, 1]} : vector<4x8xf32> to vector<4x1xf32>
    %12 = vector.shape_cast %11 : vector<4x1xf32> to vector<4x1xf32>
    %13 = vector.broadcast %12 : vector<4x1xf32> to vector<4x128xf32>
    %14 = vector.extract_strided_slice %10 {offsets = [0, 1], sizes = [4, 1], strides = [1, 1]} : vector<4x8xf32> to vector<4x1xf32>
    %15 = vector.shape_cast %14 : vector<4x1xf32> to vector<4x1xf32>
    %16 = vector.broadcast %15 : vector<4x1xf32> to vector<4x128xf32>
    %17 = vector.extract_strided_slice %10 {offsets = [0, 2], sizes = [4, 1], strides = [1, 1]} : vector<4x8xf32> to vector<4x1xf32>
    %18 = vector.shape_cast %17 : vector<4x1xf32> to vector<4x1xf32>
    %19 = vector.broadcast %18 : vector<4x1xf32> to vector<4x128xf32>
    %20 = vector.extract_strided_slice %10 {offsets = [0, 3], sizes = [4, 1], strides = [1, 1]} : vector<4x8xf32> to vector<4x1xf32>
    %21 = vector.shape_cast %20 : vector<4x1xf32> to vector<4x1xf32>
    %22 = vector.broadcast %21 : vector<4x1xf32> to vector<4x128xf32>
    %23 = vector.extract_strided_slice %10 {offsets = [0, 4], sizes = [4, 1], strides = [1, 1]} : vector<4x8xf32> to vector<4x1xf32>
    %24 = vector.shape_cast %23 : vector<4x1xf32> to vector<4x1xf32>
    %25 = vector.broadcast %24 : vector<4x1xf32> to vector<4x128xf32>
    %26 = vector.extract_strided_slice %10 {offsets = [0, 5], sizes = [4, 1], strides = [1, 1]} : vector<4x8xf32> to vector<4x1xf32>
    %27 = vector.shape_cast %26 : vector<4x1xf32> to vector<4x1xf32>
    %28 = vector.broadcast %27 : vector<4x1xf32> to vector<4x128xf32>
    %29 = vector.extract_strided_slice %10 {offsets = [0, 6], sizes = [4, 1], strides = [1, 1]} : vector<4x8xf32> to vector<4x1xf32>
    %30 = vector.shape_cast %29 : vector<4x1xf32> to vector<4x1xf32>
    %31 = vector.broadcast %30 : vector<4x1xf32> to vector<4x128xf32>
    %32 = vector.extract_strided_slice %10 {offsets = [0, 7], sizes = [4, 1], strides = [1, 1]} : vector<4x8xf32> to vector<4x1xf32>
    %33 = vector.shape_cast %32 : vector<4x1xf32> to vector<4x1xf32>
    %34 = vector.broadcast %33 : vector<4x1xf32> to vector<4x128xf32>
    %35 = vector.extract_strided_slice %5 {offsets = [0, 0], sizes = [8, 1], strides = [1, 1]} : vector<8x4xf32> to vector<8x1xf32>
    %36 = vector.shape_cast %35 : vector<8x1xf32> to vector<8x1xf32>
    %37 = vector.broadcast %36 : vector<8x1xf32> to vector<8x128xf32>
    %38 = vector.extract_strided_slice %5 {offsets = [0, 1], sizes = [8, 1], strides = [1, 1]} : vector<8x4xf32> to vector<8x1xf32>
    %39 = vector.shape_cast %38 : vector<8x1xf32> to vector<8x1xf32>
    %40 = vector.broadcast %39 : vector<8x1xf32> to vector<8x128xf32>
    %41 = vector.extract_strided_slice %5 {offsets = [0, 2], sizes = [8, 1], strides = [1, 1]} : vector<8x4xf32> to vector<8x1xf32>
    %42 = vector.shape_cast %41 : vector<8x1xf32> to vector<8x1xf32>
    %43 = vector.broadcast %42 : vector<8x1xf32> to vector<8x128xf32>
    %44 = vector.extract_strided_slice %5 {offsets = [0, 3], sizes = [8, 1], strides = [1, 1]} : vector<8x4xf32> to vector<8x1xf32>
    %45 = vector.shape_cast %44 : vector<8x1xf32> to vector<8x1xf32>
    %46 = vector.broadcast %45 : vector<8x1xf32> to vector<8x128xf32>
    %47 = vector.extract_strided_slice %6 {offsets = [0, 0], sizes = [8, 1], strides = [1, 1]} : vector<8x4xf32> to vector<8x1xf32>
    %48 = vector.shape_cast %47 : vector<8x1xf32> to vector<8x1xf32>
    %49 = vector.broadcast %48 : vector<8x1xf32> to vector<8x128xf32>
    %50 = vector.extract_strided_slice %6 {offsets = [0, 1], sizes = [8, 1], strides = [1, 1]} : vector<8x4xf32> to vector<8x1xf32>
    %51 = vector.shape_cast %50 : vector<8x1xf32> to vector<8x1xf32>
    %52 = vector.broadcast %51 : vector<8x1xf32> to vector<8x128xf32>
    %53 = vector.extract_strided_slice %6 {offsets = [0, 2], sizes = [8, 1], strides = [1, 1]} : vector<8x4xf32> to vector<8x1xf32>
    %54 = vector.shape_cast %53 : vector<8x1xf32> to vector<8x1xf32>
    %55 = vector.broadcast %54 : vector<8x1xf32> to vector<8x128xf32>
    %56 = vector.extract_strided_slice %6 {offsets = [0, 3], sizes = [8, 1], strides = [1, 1]} : vector<8x4xf32> to vector<8x1xf32>
    %57 = vector.shape_cast %56 : vector<8x1xf32> to vector<8x1xf32>
    %58 = vector.broadcast %57 : vector<8x1xf32> to vector<8x128xf32>
    %59 = vector.extract_strided_slice %4 {offsets = [0, 0], sizes = [1, 128], strides = [1, 1]} : vector<8x128xf32> to vector<1x128xf32>
    %60 = vector.broadcast %59 : vector<1x128xf32> to vector<8x128xf32>
    %61 = arith.mulf %37, %60 : vector<8x128xf32>
    %62 = vector.extract_strided_slice %4 {offsets = [1, 0], sizes = [1, 128], strides = [1, 1]} : vector<8x128xf32> to vector<1x128xf32>
    %63 = vector.broadcast %62 : vector<1x128xf32> to vector<8x128xf32>
    %64 = arith.mulf %40, %63 : vector<8x128xf32>
    %65 = arith.addf %61, %64 : vector<8x128xf32>
    %66 = vector.extract_strided_slice %4 {offsets = [2, 0], sizes = [1, 128], strides = [1, 1]} : vector<8x128xf32> to vector<1x128xf32>
    %67 = vector.broadcast %66 : vector<1x128xf32> to vector<8x128xf32>
    %68 = arith.mulf %43, %67 : vector<8x128xf32>
    %69 = arith.addf %65, %68 : vector<8x128xf32>
    %70 = vector.extract_strided_slice %4 {offsets = [3, 0], sizes = [1, 128], strides = [1, 1]} : vector<8x128xf32> to vector<1x128xf32>
    %71 = vector.broadcast %70 : vector<1x128xf32> to vector<8x128xf32>
    %72 = arith.mulf %46, %71 : vector<8x128xf32>
    %73 = arith.addf %69, %72 : vector<8x128xf32>
    %74 = arith.subf %73, %1 : vector<8x128xf32>
    %75 = vector.extract_strided_slice %4 {offsets = [4, 0], sizes = [1, 128], strides = [1, 1]} : vector<8x128xf32> to vector<1x128xf32>
    %76 = vector.broadcast %75 : vector<1x128xf32> to vector<8x128xf32>
    %77 = arith.mulf %49, %76 : vector<8x128xf32>
    %78 = vector.extract_strided_slice %4 {offsets = [5, 0], sizes = [1, 128], strides = [1, 1]} : vector<8x128xf32> to vector<1x128xf32>
    %79 = vector.broadcast %78 : vector<1x128xf32> to vector<8x128xf32>
    %80 = arith.mulf %52, %79 : vector<8x128xf32>
    %81 = arith.addf %77, %80 : vector<8x128xf32>
    %82 = vector.extract_strided_slice %4 {offsets = [6, 0], sizes = [1, 128], strides = [1, 1]} : vector<8x128xf32> to vector<1x128xf32>
    %83 = vector.broadcast %82 : vector<1x128xf32> to vector<8x128xf32>
    %84 = arith.mulf %55, %83 : vector<8x128xf32>
    %85 = arith.addf %81, %84 : vector<8x128xf32>
    %86 = vector.extract_strided_slice %4 {offsets = [7, 0], sizes = [1, 128], strides = [1, 1]} : vector<8x128xf32> to vector<1x128xf32>
    %87 = vector.broadcast %86 : vector<1x128xf32> to vector<8x128xf32>
    %88 = arith.mulf %58, %87 : vector<8x128xf32>
    %89 = arith.addf %85, %88 : vector<8x128xf32>
    %90 = arith.subf %89, %3 : vector<8x128xf32>
    %91 = vector.extract_strided_slice %74 {offsets = [0, 0], sizes = [1, 128], strides = [1, 1]} : vector<8x128xf32> to vector<1x128xf32>
    %92 = vector.broadcast %91 : vector<1x128xf32> to vector<4x128xf32>
    %93 = arith.mulf %13, %92 : vector<4x128xf32>
    %94 = vector.extract_strided_slice %74 {offsets = [1, 0], sizes = [1, 128], strides = [1, 1]} : vector<8x128xf32> to vector<1x128xf32>
    %95 = vector.broadcast %94 : vector<1x128xf32> to vector<4x128xf32>
    %96 = arith.mulf %16, %95 : vector<4x128xf32>
    %97 = arith.addf %93, %96 : vector<4x128xf32>
    %98 = vector.extract_strided_slice %74 {offsets = [2, 0], sizes = [1, 128], strides = [1, 1]} : vector<8x128xf32> to vector<1x128xf32>
    %99 = vector.broadcast %98 : vector<1x128xf32> to vector<4x128xf32>
    %100 = arith.mulf %19, %99 : vector<4x128xf32>
    %101 = arith.addf %97, %100 : vector<4x128xf32>
    %102 = vector.extract_strided_slice %74 {offsets = [3, 0], sizes = [1, 128], strides = [1, 1]} : vector<8x128xf32> to vector<1x128xf32>
    %103 = vector.broadcast %102 : vector<1x128xf32> to vector<4x128xf32>
    %104 = arith.mulf %22, %103 : vector<4x128xf32>
    %105 = arith.addf %101, %104 : vector<4x128xf32>
    %106 = vector.extract_strided_slice %74 {offsets = [4, 0], sizes = [1, 128], strides = [1, 1]} : vector<8x128xf32> to vector<1x128xf32>
    %107 = vector.broadcast %106 : vector<1x128xf32> to vector<4x128xf32>
    %108 = arith.mulf %25, %107 : vector<4x128xf32>
    %109 = arith.addf %105, %108 : vector<4x128xf32>
    %110 = vector.extract_strided_slice %74 {offsets = [5, 0], sizes = [1, 128], strides = [1, 1]} : vector<8x128xf32> to vector<1x128xf32>
    %111 = vector.broadcast %110 : vector<1x128xf32> to vector<4x128xf32>
    %112 = arith.mulf %28, %111 : vector<4x128xf32>
    %113 = arith.addf %109, %112 : vector<4x128xf32>
    %114 = vector.extract_strided_slice %74 {offsets = [6, 0], sizes = [1, 128], strides = [1, 1]} : vector<8x128xf32> to vector<1x128xf32>
    %115 = vector.broadcast %114 : vector<1x128xf32> to vector<4x128xf32>
    %116 = arith.mulf %31, %115 : vector<4x128xf32>
    %117 = arith.addf %113, %116 : vector<4x128xf32>
    %118 = vector.extract_strided_slice %74 {offsets = [7, 0], sizes = [1, 128], strides = [1, 1]} : vector<8x128xf32> to vector<1x128xf32>
    %119 = vector.broadcast %118 : vector<1x128xf32> to vector<4x128xf32>
    %120 = arith.mulf %34, %119 : vector<4x128xf32>
    %121 = arith.addf %117, %120 : vector<4x128xf32>
    %122 = vector.extract_strided_slice %90 {offsets = [0, 0], sizes = [1, 128], strides = [1, 1]} : vector<8x128xf32> to vector<1x128xf32>
    %123 = vector.broadcast %122 : vector<1x128xf32> to vector<4x128xf32>
    %124 = arith.mulf %13, %123 : vector<4x128xf32>
    %125 = vector.extract_strided_slice %90 {offsets = [1, 0], sizes = [1, 128], strides = [1, 1]} : vector<8x128xf32> to vector<1x128xf32>
    %126 = vector.broadcast %125 : vector<1x128xf32> to vector<4x128xf32>
    %127 = arith.mulf %16, %126 : vector<4x128xf32>
    %128 = arith.addf %124, %127 : vector<4x128xf32>
    %129 = vector.extract_strided_slice %90 {offsets = [2, 0], sizes = [1, 128], strides = [1, 1]} : vector<8x128xf32> to vector<1x128xf32>
    %130 = vector.broadcast %129 : vector<1x128xf32> to vector<4x128xf32>
    %131 = arith.mulf %19, %130 : vector<4x128xf32>
    %132 = arith.addf %128, %131 : vector<4x128xf32>
    %133 = vector.extract_strided_slice %90 {offsets = [3, 0], sizes = [1, 128], strides = [1, 1]} : vector<8x128xf32> to vector<1x128xf32>
    %134 = vector.broadcast %133 : vector<1x128xf32> to vector<4x128xf32>
    %135 = arith.mulf %22, %134 : vector<4x128xf32>
    %136 = arith.addf %132, %135 : vector<4x128xf32>
    %137 = vector.extract_strided_slice %90 {offsets = [4, 0], sizes = [1, 128], strides = [1, 1]} : vector<8x128xf32> to vector<1x128xf32>
    %138 = vector.broadcast %137 : vector<1x128xf32> to vector<4x128xf32>
    %139 = arith.mulf %25, %138 : vector<4x128xf32>
    %140 = arith.addf %136, %139 : vector<4x128xf32>
    %141 = vector.extract_strided_slice %90 {offsets = [5, 0], sizes = [1, 128], strides = [1, 1]} : vector<8x128xf32> to vector<1x128xf32>
    %142 = vector.broadcast %141 : vector<1x128xf32> to vector<4x128xf32>
    %143 = arith.mulf %28, %142 : vector<4x128xf32>
    %144 = arith.addf %140, %143 : vector<4x128xf32>
    %145 = vector.extract_strided_slice %90 {offsets = [6, 0], sizes = [1, 128], strides = [1, 1]} : vector<8x128xf32> to vector<1x128xf32>
    %146 = vector.broadcast %145 : vector<1x128xf32> to vector<4x128xf32>
    %147 = arith.mulf %31, %146 : vector<4x128xf32>
    %148 = arith.addf %144, %147 : vector<4x128xf32>
    %149 = vector.extract_strided_slice %90 {offsets = [7, 0], sizes = [1, 128], strides = [1, 1]} : vector<8x128xf32> to vector<1x128xf32>
    %150 = vector.broadcast %149 : vector<1x128xf32> to vector<4x128xf32>
    %151 = arith.mulf %34, %150 : vector<4x128xf32>
    %152 = arith.addf %148, %151 : vector<4x128xf32>
    %153 = tpu.concatenate %121, %152 in 0 : vector<4x128xf32>, vector<4x128xf32> -> vector<8x128xf32>
    %154 = arith.subf %4, %153 : vector<8x128xf32>
    %cst_11 = arith.constant 0.000000e+00 : f32
    %155 = arith.subf %cst_11, %7 : f32
    %156 = vector.broadcast %155 : f32 to vector<8x128xf32>
    %157 = arith.maximumf %156, %154 : vector<8x128xf32>
    %158 = vector.broadcast %7 : f32 to vector<8x128xf32>
    %159 = arith.minimumf %158, %157 : vector<8x128xf32>
    %160 = arith.subf %154, %159 : vector<8x128xf32>
    %161 = vector.extract_strided_slice %160 {offsets = [0, 0], sizes = [1, 128], strides = [1, 1]} : vector<8x128xf32> to vector<1x128xf32>
    %162 = vector.broadcast %161 : vector<1x128xf32> to vector<8x128xf32>
    %163 = arith.mulf %37, %162 : vector<8x128xf32>
    %164 = vector.extract_strided_slice %160 {offsets = [1, 0], sizes = [1, 128], strides = [1, 1]} : vector<8x128xf32> to vector<1x128xf32>
    %165 = vector.broadcast %164 : vector<1x128xf32> to vector<8x128xf32>
    %166 = arith.mulf %40, %165 : vector<8x128xf32>
    %167 = arith.addf %163, %166 : vector<8x128xf32>
    %168 = vector.extract_strided_slice %160 {offsets = [2, 0], sizes = [1, 128], strides = [1, 1]} : vector<8x128xf32> to vector<1x128xf32>
    %169 = vector.broadcast %168 : vector<1x128xf32> to vector<8x128xf32>
    %170 = arith.mulf %43, %169 : vector<8x128xf32>
    %171 = arith.addf %167, %170 : vector<8x128xf32>
    %172 = vector.extract_strided_slice %160 {offsets = [3, 0], sizes = [1, 128], strides = [1, 1]} : vector<8x128xf32> to vector<1x128xf32>
    %173 = vector.broadcast %172 : vector<1x128xf32> to vector<8x128xf32>
    %174 = arith.mulf %46, %173 : vector<8x128xf32>
    %175 = arith.addf %171, %174 : vector<8x128xf32>
    %176 = arith.subf %1, %175 : vector<8x128xf32>
    %177 = vector.extract_strided_slice %160 {offsets = [0, 0], sizes = [4, 128], strides = [1, 1]} : vector<8x128xf32> to vector<4x128xf32>
    %cst_12 = arith.constant dense<0.000000e+00> : vector<8x4xf32>
    %178 = tpu.matmul %176, %177, %cst_12 {dimension_numbers = #tpu.dot_dimension_numbers<[1], [1], [0], [0], [0, 0, 1, 0], [], []>} : vector<8x128xf32>, vector<4x128xf32>, vector<8x4xf32> -> vector<8x4xf32>
    %179 = vector.broadcast %8 : f32 to vector<8x4xf32>
    %180 = arith.mulf %179, %178 : vector<8x4xf32>
    %181 = arith.addf %5, %180 : vector<8x4xf32>
    %182 = vector.extract_strided_slice %160 {offsets = [4, 0], sizes = [1, 128], strides = [1, 1]} : vector<8x128xf32> to vector<1x128xf32>
    %183 = vector.broadcast %182 : vector<1x128xf32> to vector<8x128xf32>
    %184 = arith.mulf %49, %183 : vector<8x128xf32>
    %185 = vector.extract_strided_slice %160 {offsets = [5, 0], sizes = [1, 128], strides = [1, 1]} : vector<8x128xf32> to vector<1x128xf32>
    %186 = vector.broadcast %185 : vector<1x128xf32> to vector<8x128xf32>
    %187 = arith.mulf %52, %186 : vector<8x128xf32>
    %188 = arith.addf %184, %187 : vector<8x128xf32>
    %189 = vector.extract_strided_slice %160 {offsets = [6, 0], sizes = [1, 128], strides = [1, 1]} : vector<8x128xf32> to vector<1x128xf32>
    %190 = vector.broadcast %189 : vector<1x128xf32> to vector<8x128xf32>
    %191 = arith.mulf %55, %190 : vector<8x128xf32>
    %192 = arith.addf %188, %191 : vector<8x128xf32>
    %193 = vector.extract_strided_slice %160 {offsets = [7, 0], sizes = [1, 128], strides = [1, 1]} : vector<8x128xf32> to vector<1x128xf32>
    %194 = vector.broadcast %193 : vector<1x128xf32> to vector<8x128xf32>
    %195 = arith.mulf %58, %194 : vector<8x128xf32>
    %196 = arith.addf %192, %195 : vector<8x128xf32>
    %197 = arith.subf %3, %196 : vector<8x128xf32>
    %198 = vector.extract_strided_slice %160 {offsets = [4, 0], sizes = [4, 128], strides = [1, 1]} : vector<8x128xf32> to vector<4x128xf32>
    %cst_13 = arith.constant dense<0.000000e+00> : vector<8x4xf32>
    %199 = tpu.matmul %197, %198, %cst_13 {dimension_numbers = #tpu.dot_dimension_numbers<[1], [1], [0], [0], [0, 0, 1, 0], [], []>} : vector<8x128xf32>, vector<4x128xf32>, vector<8x4xf32> -> vector<8x4xf32>
    %200 = vector.broadcast %8 : f32 to vector<8x4xf32>
    %201 = arith.mulf %200, %199 : vector<8x4xf32>
    %202 = arith.addf %6, %201 : vector<8x4xf32>
    %203 = arith.mulf %181, %181 : vector<8x4xf32>
    %cst_14 = arith.constant dense<0.000000e+00> : vector<8xf32>
    %204 = vector.multi_reduction <add>, %203, %cst_14 [1] : vector<8x4xf32> to vector<8xf32>
    %205 = vector.shape_cast %204 : vector<8xf32> to vector<8x1xf32>
    %206 = arith.mulf %202, %202 : vector<8x4xf32>
    %cst_15 = arith.constant dense<0.000000e+00> : vector<8xf32>
    %207 = vector.multi_reduction <add>, %206, %cst_15 [1] : vector<8x4xf32> to vector<8xf32>
    %208 = vector.shape_cast %207 : vector<8xf32> to vector<8x1xf32>
    %209 = arith.addf %205, %208 : vector<8x1xf32>
    %cst_16 = arith.constant 1.000000e+00 : f32
    %210 = vector.broadcast %cst_16 : f32 to vector<8x1xf32>
    %211 = arith.cmpf ogt, %209, %210 : vector<8x1xf32>
    %212 = math.rsqrt %209 : vector<8x1xf32>
    %cst_17 = arith.constant 1.000000e+00 : f32
    %213 = vector.broadcast %cst_17 : f32 to vector<8x1xf32>
    %214 = arith.select %211, %212, %213 : vector<8x1xi1>, vector<8x1xf32>
    %215 = vector.broadcast %214 : vector<8x1xf32> to vector<8x4xf32>
    %216 = arith.mulf %181, %215 : vector<8x4xf32>
    %217 = vector.broadcast %214 : vector<8x1xf32> to vector<8x4xf32>
    %218 = arith.mulf %202, %217 : vector<8x4xf32>
    %c1_18 = arith.constant 1 : index
    %219 = memref.load %arg2[%c1_18] : memref<10xf32, #tpu.memory_space<smem>>
    %c1_19 = arith.constant 1 : index
    %220 = memref.load %arg3[%c1_19] : memref<10xf32, #tpu.memory_space<smem>>
    %c1_20 = arith.constant 1 : index
    %c0_21 = arith.constant 0 : index
    %c0_22 = arith.constant 0 : index
    %221 = vector.load %arg1[%c1_20, %c0_21, %c0_22] : memref<10x4x8xf32, #tpu.memory_space<vmem>>, vector<1x4x8xf32>
    %222 = vector.shape_cast %221 : vector<1x4x8xf32> to vector<4x8xf32>
    %223 = vector.extract_strided_slice %222 {offsets = [0, 0], sizes = [4, 1], strides = [1, 1]} : vector<4x8xf32> to vector<4x1xf32>
    %224 = vector.shape_cast %223 : vector<4x1xf32> to vector<4x1xf32>
    %225 = vector.broadcast %224 : vector<4x1xf32> to vector<4x128xf32>
    %226 = vector.extract_strided_slice %222 {offsets = [0, 1], sizes = [4, 1], strides = [1, 1]} : vector<4x8xf32> to vector<4x1xf32>
    %227 = vector.shape_cast %226 : vector<4x1xf32> to vector<4x1xf32>
    %228 = vector.broadcast %227 : vector<4x1xf32> to vector<4x128xf32>
    %229 = vector.extract_strided_slice %222 {offsets = [0, 2], sizes = [4, 1], strides = [1, 1]} : vector<4x8xf32> to vector<4x1xf32>
    %230 = vector.shape_cast %229 : vector<4x1xf32> to vector<4x1xf32>
    %231 = vector.broadcast %230 : vector<4x1xf32> to vector<4x128xf32>
    %232 = vector.extract_strided_slice %222 {offsets = [0, 3], sizes = [4, 1], strides = [1, 1]} : vector<4x8xf32> to vector<4x1xf32>
    %233 = vector.shape_cast %232 : vector<4x1xf32> to vector<4x1xf32>
    %234 = vector.broadcast %233 : vector<4x1xf32> to vector<4x128xf32>
    %235 = vector.extract_strided_slice %222 {offsets = [0, 4], sizes = [4, 1], strides = [1, 1]} : vector<4x8xf32> to vector<4x1xf32>
    %236 = vector.shape_cast %235 : vector<4x1xf32> to vector<4x1xf32>
    %237 = vector.broadcast %236 : vector<4x1xf32> to vector<4x128xf32>
    %238 = vector.extract_strided_slice %222 {offsets = [0, 5], sizes = [4, 1], strides = [1, 1]} : vector<4x8xf32> to vector<4x1xf32>
    %239 = vector.shape_cast %238 : vector<4x1xf32> to vector<4x1xf32>
    %240 = vector.broadcast %239 : vector<4x1xf32> to vector<4x128xf32>
    %241 = vector.extract_strided_slice %222 {offsets = [0, 6], sizes = [4, 1], strides = [1, 1]} : vector<4x8xf32> to vector<4x1xf32>
    %242 = vector.shape_cast %241 : vector<4x1xf32> to vector<4x1xf32>
    %243 = vector.broadcast %242 : vector<4x1xf32> to vector<4x128xf32>
    %244 = vector.extract_strided_slice %222 {offsets = [0, 7], sizes = [4, 1], strides = [1, 1]} : vector<4x8xf32> to vector<4x1xf32>
    %245 = vector.shape_cast %244 : vector<4x1xf32> to vector<4x1xf32>
    %246 = vector.broadcast %245 : vector<4x1xf32> to vector<4x128xf32>
    %247 = vector.extract_strided_slice %216 {offsets = [0, 0], sizes = [8, 1], strides = [1, 1]} : vector<8x4xf32> to vector<8x1xf32>
    %248 = vector.shape_cast %247 : vector<8x1xf32> to vector<8x1xf32>
    %249 = vector.broadcast %248 : vector<8x1xf32> to vector<8x128xf32>
    %250 = vector.extract_strided_slice %216 {offsets = [0, 1], sizes = [8, 1], strides = [1, 1]} : vector<8x4xf32> to vector<8x1xf32>
    %251 = vector.shape_cast %250 : vector<8x1xf32> to vector<8x1xf32>
    %252 = vector.broadcast %251 : vector<8x1xf32> to vector<8x128xf32>
    %253 = vector.extract_strided_slice %216 {offsets = [0, 2], sizes = [8, 1], strides = [1, 1]} : vector<8x4xf32> to vector<8x1xf32>
    %254 = vector.shape_cast %253 : vector<8x1xf32> to vector<8x1xf32>
    %255 = vector.broadcast %254 : vector<8x1xf32> to vector<8x128xf32>
    %256 = vector.extract_strided_slice %216 {offsets = [0, 3], sizes = [8, 1], strides = [1, 1]} : vector<8x4xf32> to vector<8x1xf32>
    %257 = vector.shape_cast %256 : vector<8x1xf32> to vector<8x1xf32>
    %258 = vector.broadcast %257 : vector<8x1xf32> to vector<8x128xf32>
    %259 = vector.extract_strided_slice %218 {offsets = [0, 0], sizes = [8, 1], strides = [1, 1]} : vector<8x4xf32> to vector<8x1xf32>
    %260 = vector.shape_cast %259 : vector<8x1xf32> to vector<8x1xf32>
    %261 = vector.broadcast %260 : vector<8x1xf32> to vector<8x128xf32>
    %262 = vector.extract_strided_slice %218 {offsets = [0, 1], sizes = [8, 1], strides = [1, 1]} : vector<8x4xf32> to vector<8x1xf32>
    %263 = vector.shape_cast %262 : vector<8x1xf32> to vector<8x1xf32>
    %264 = vector.broadcast %263 : vector<8x1xf32> to vector<8x128xf32>
    %265 = vector.extract_strided_slice %218 {offsets = [0, 2], sizes = [8, 1], strides = [1, 1]} : vector<8x4xf32> to vector<8x1xf32>
    %266 = vector.shape_cast %265 : vector<8x1xf32> to vector<8x1xf32>
    %267 = vector.broadcast %266 : vector<8x1xf32> to vector<8x128xf32>
    %268 = vector.extract_strided_slice %218 {offsets = [0, 3], sizes = [8, 1], strides = [1, 1]} : vector<8x4xf32> to vector<8x1xf32>
    %269 = vector.shape_cast %268 : vector<8x1xf32> to vector<8x1xf32>
    %270 = vector.broadcast %269 : vector<8x1xf32> to vector<8x128xf32>
    %271 = vector.extract_strided_slice %160 {offsets = [0, 0], sizes = [1, 128], strides = [1, 1]} : vector<8x128xf32> to vector<1x128xf32>
    %272 = vector.broadcast %271 : vector<1x128xf32> to vector<8x128xf32>
    %273 = arith.mulf %249, %272 : vector<8x128xf32>
    %274 = vector.extract_strided_slice %160 {offsets = [1, 0], sizes = [1, 128], strides = [1, 1]} : vector<8x128xf32> to vector<1x128xf32>
    %275 = vector.broadcast %274 : vector<1x128xf32> to vector<8x128xf32>
    %276 = arith.mulf %252, %275 : vector<8x128xf32>
    %277 = arith.addf %273, %276 : vector<8x128xf32>
    %278 = vector.extract_strided_slice %160 {offsets = [2, 0], sizes = [1, 128], strides = [1, 1]} : vector<8x128xf32> to vector<1x128xf32>
    %279 = vector.broadcast %278 : vector<1x128xf32> to vector<8x128xf32>
    %280 = arith.mulf %255, %279 : vector<8x128xf32>
    %281 = arith.addf %277, %280 : vector<8x128xf32>
    %282 = vector.extract_strided_slice %160 {offsets = [3, 0], sizes = [1, 128], strides = [1, 1]} : vector<8x128xf32> to vector<1x128xf32>
    %283 = vector.broadcast %282 : vector<1x128xf32> to vector<8x128xf32>
    %284 = arith.mulf %258, %283 : vector<8x128xf32>
    %285 = arith.addf %281, %284 : vector<8x128xf32>
    %286 = arith.subf %285, %1 : vector<8x128xf32>
    %287 = vector.extract_strided_slice %160 {offsets = [4, 0], sizes = [1, 128], strides = [1, 1]} : vector<8x128xf32> to vector<1x128xf32>
    %288 = vector.broadcast %287 : vector<1x128xf32> to vector<8x128xf32>
    %289 = arith.mulf %261, %288 : vector<8x128xf32>
    %290 = vector.extract_strided_slice %160 {offsets = [5, 0], sizes = [1, 128], strides = [1, 1]} : vector<8x128xf32> to vector<1x128xf32>
    %291 = vector.broadcast %290 : vector<1x128xf32> to vector<8x128xf32>
    %292 = arith.mulf %264, %291 : vector<8x128xf32>
    %293 = arith.addf %289, %292 : vector<8x128xf32>
    %294 = vector.extract_strided_slice %160 {offsets = [6, 0], sizes = [1, 128], strides = [1, 1]} : vector<8x128xf32> to vector<1x128xf32>
    %295 = vector.broadcast %294 : vector<1x128xf32> to vector<8x128xf32>
    %296 = arith.mulf %267, %295 : vector<8x128xf32>
    %297 = arith.addf %293, %296 : vector<8x128xf32>
    %298 = vector.extract_strided_slice %160 {offsets = [7, 0], sizes = [1, 128], strides = [1, 1]} : vector<8x128xf32> to vector<1x128xf32>
    %299 = vector.broadcast %298 : vector<1x128xf32> to vector<8x128xf32>
    %300 = arith.mulf %270, %299 : vector<8x128xf32>
    %301 = arith.addf %297, %300 : vector<8x128xf32>
    %302 = arith.subf %301, %3 : vector<8x128xf32>
    %303 = vector.extract_strided_slice %286 {offsets = [0, 0], sizes = [1, 128], strides = [1, 1]} : vector<8x128xf32> to vector<1x128xf32>
    %304 = vector.broadcast %303 : vector<1x128xf32> to vector<4x128xf32>
    %305 = arith.mulf %225, %304 : vector<4x128xf32>
    %306 = vector.extract_strided_slice %286 {offsets = [1, 0], sizes = [1, 128], strides = [1, 1]} : vector<8x128xf32> to vector<1x128xf32>
    %307 = vector.broadcast %306 : vector<1x128xf32> to vector<4x128xf32>
    %308 = arith.mulf %228, %307 : vector<4x128xf32>
    %309 = arith.addf %305, %308 : vector<4x128xf32>
    %310 = vector.extract_strided_slice %286 {offsets = [2, 0], sizes = [1, 128], strides = [1, 1]} : vector<8x128xf32> to vector<1x128xf32>
    %311 = vector.broadcast %310 : vector<1x128xf32> to vector<4x128xf32>
    %312 = arith.mulf %231, %311 : vector<4x128xf32>
    %313 = arith.addf %309, %312 : vector<4x128xf32>
    %314 = vector.extract_strided_slice %286 {offsets = [3, 0], sizes = [1, 128], strides = [1, 1]} : vector<8x128xf32> to vector<1x128xf32>
    %315 = vector.broadcast %314 : vector<1x128xf32> to vector<4x128xf32>
    %316 = arith.mulf %234, %315 : vector<4x128xf32>
    %317 = arith.addf %313, %316 : vector<4x128xf32>
    %318 = vector.extract_strided_slice %286 {offsets = [4, 0], sizes = [1, 128], strides = [1, 1]} : vector<8x128xf32> to vector<1x128xf32>
    %319 = vector.broadcast %318 : vector<1x128xf32> to vector<4x128xf32>
    %320 = arith.mulf %237, %319 : vector<4x128xf32>
    %321 = arith.addf %317, %320 : vector<4x128xf32>
    %322 = vector.extract_strided_slice %286 {offsets = [5, 0], sizes = [1, 128], strides = [1, 1]} : vector<8x128xf32> to vector<1x128xf32>
    %323 = vector.broadcast %322 : vector<1x128xf32> to vector<4x128xf32>
    %324 = arith.mulf %240, %323 : vector<4x128xf32>
    %325 = arith.addf %321, %324 : vector<4x128xf32>
    %326 = vector.extract_strided_slice %286 {offsets = [6, 0], sizes = [1, 128], strides = [1, 1]} : vector<8x128xf32> to vector<1x128xf32>
    %327 = vector.broadcast %326 : vector<1x128xf32> to vector<4x128xf32>
    %328 = arith.mulf %243, %327 : vector<4x128xf32>
    %329 = arith.addf %325, %328 : vector<4x128xf32>
    %330 = vector.extract_strided_slice %286 {offsets = [7, 0], sizes = [1, 128], strides = [1, 1]} : vector<8x128xf32> to vector<1x128xf32>
    %331 = vector.broadcast %330 : vector<1x128xf32> to vector<4x128xf32>
    %332 = arith.mulf %246, %331 : vector<4x128xf32>
    %333 = arith.addf %329, %332 : vector<4x128xf32>
    %334 = vector.extract_strided_slice %302 {offsets = [0, 0], sizes = [1, 128], strides = [1, 1]} : vector<8x128xf32> to vector<1x128xf32>
    %335 = vector.broadcast %334 : vector<1x128xf32> to vector<4x128xf32>
    %336 = arith.mulf %225, %335 : vector<4x128xf32>
    %337 = vector.extract_strided_slice %302 {offsets = [1, 0], sizes = [1, 128], strides = [1, 1]} : vector<8x128xf32> to vector<1x128xf32>
    %338 = vector.broadcast %337 : vector<1x128xf32> to vector<4x128xf32>
    %339 = arith.mulf %228, %338 : vector<4x128xf32>
    %340 = arith.addf %336, %339 : vector<4x128xf32>
    %341 = vector.extract_strided_slice %302 {offsets = [2, 0], sizes = [1, 128], strides = [1, 1]} : vector<8x128xf32> to vector<1x128xf32>
    %342 = vector.broadcast %341 : vector<1x128xf32> to vector<4x128xf32>
    %343 = arith.mulf %231, %342 : vector<4x128xf32>
    %344 = arith.addf %340, %343 : vector<4x128xf32>
    %345 = vector.extract_strided_slice %302 {offsets = [3, 0], sizes = [1, 128], strides = [1, 1]} : vector<8x128xf32> to vector<1x128xf32>
    %346 = vector.broadcast %345 : vector<1x128xf32> to vector<4x128xf32>
    %347 = arith.mulf %234, %346 : vector<4x128xf32>
    %348 = arith.addf %344, %347 : vector<4x128xf32>
    %349 = vector.extract_strided_slice %302 {offsets = [4, 0], sizes = [1, 128], strides = [1, 1]} : vector<8x128xf32> to vector<1x128xf32>
    %350 = vector.broadcast %349 : vector<1x128xf32> to vector<4x128xf32>
    %351 = arith.mulf %237, %350 : vector<4x128xf32>
    %352 = arith.addf %348, %351 : vector<4x128xf32>
    %353 = vector.extract_strided_slice %302 {offsets = [5, 0], sizes = [1, 128], strides = [1, 1]} : vector<8x128xf32> to vector<1x128xf32>
    %354 = vector.broadcast %353 : vector<1x128xf32> to vector<4x128xf32>
    %355 = arith.mulf %240, %354 : vector<4x128xf32>
    %356 = arith.addf %352, %355 : vector<4x128xf32>
    %357 = vector.extract_strided_slice %302 {offsets = [6, 0], sizes = [1, 128], strides = [1, 1]} : vector<8x128xf32> to vector<1x128xf32>
    %358 = vector.broadcast %357 : vector<1x128xf32> to vector<4x128xf32>
    %359 = arith.mulf %243, %358 : vector<4x128xf32>
    %360 = arith.addf %356, %359 : vector<4x128xf32>
    %361 = vector.extract_strided_slice %302 {offsets = [7, 0], sizes = [1, 128], strides = [1, 1]} : vector<8x128xf32> to vector<1x128xf32>
    %362 = vector.broadcast %361 : vector<1x128xf32> to vector<4x128xf32>
    %363 = arith.mulf %246, %362 : vector<4x128xf32>
    %364 = arith.addf %360, %363 : vector<4x128xf32>
    %365 = tpu.concatenate %333, %364 in 0 : vector<4x128xf32>, vector<4x128xf32> -> vector<8x128xf32>
    %366 = arith.subf %160, %365 : vector<8x128xf32>
    %cst_23 = arith.constant 0.000000e+00 : f32
    %367 = arith.subf %cst_23, %219 : f32
    %368 = vector.broadcast %367 : f32 to vector<8x128xf32>
    %369 = arith.maximumf %368, %366 : vector<8x128xf32>
    %370 = vector.broadcast %219 : f32 to vector<8x128xf32>
    %371 = arith.minimumf %370, %369 : vector<8x128xf32>
    %372 = arith.subf %366, %371 : vector<8x128xf32>
    %373 = vector.extract_strided_slice %372 {offsets = [0, 0], sizes = [1, 128], strides = [1, 1]} : vector<8x128xf32> to vector<1x128xf32>
    %374 = vector.broadcast %373 : vector<1x128xf32> to vector<8x128xf32>
    %375 = arith.mulf %249, %374 : vector<8x128xf32>
    %376 = vector.extract_strided_slice %372 {offsets = [1, 0], sizes = [1, 128], strides = [1, 1]} : vector<8x128xf32> to vector<1x128xf32>
    %377 = vector.broadcast %376 : vector<1x128xf32> to vector<8x128xf32>
    %378 = arith.mulf %252, %377 : vector<8x128xf32>
    %379 = arith.addf %375, %378 : vector<8x128xf32>
    %380 = vector.extract_strided_slice %372 {offsets = [2, 0], sizes = [1, 128], strides = [1, 1]} : vector<8x128xf32> to vector<1x128xf32>
    %381 = vector.broadcast %380 : vector<1x128xf32> to vector<8x128xf32>
    %382 = arith.mulf %255, %381 : vector<8x128xf32>
    %383 = arith.addf %379, %382 : vector<8x128xf32>
    %384 = vector.extract_strided_slice %372 {offsets = [3, 0], sizes = [1, 128], strides = [1, 1]} : vector<8x128xf32> to vector<1x128xf32>
    %385 = vector.broadcast %384 : vector<1x128xf32> to vector<8x128xf32>
    %386 = arith.mulf %258, %385 : vector<8x128xf32>
    %387 = arith.addf %383, %386 : vector<8x128xf32>
    %388 = arith.subf %1, %387 : vector<8x128xf32>
    %389 = vector.extract_strided_slice %372 {offsets = [0, 0], sizes = [4, 128], strides = [1, 1]} : vector<8x128xf32> to vector<4x128xf32>
    %cst_24 = arith.constant dense<0.000000e+00> : vector<8x4xf32>
    %390 = tpu.matmul %388, %389, %cst_24 {dimension_numbers = #tpu.dot_dimension_numbers<[1], [1], [0], [0], [0, 0, 1, 0], [], []>} : vector<8x128xf32>, vector<4x128xf32>, vector<8x4xf32> -> vector<8x4xf32>
    %391 = vector.broadcast %220 : f32 to vector<8x4xf32>
    %392 = arith.mulf %391, %390 : vector<8x4xf32>
    %393 = arith.addf %216, %392 : vector<8x4xf32>
    %394 = vector.extract_strided_slice %372 {offsets = [4, 0], sizes = [1, 128], strides = [1, 1]} : vector<8x128xf32> to vector<1x128xf32>
    %395 = vector.broadcast %394 : vector<1x128xf32> to vector<8x128xf32>
    %396 = arith.mulf %261, %395 : vector<8x128xf32>
    %397 = vector.extract_strided_slice %372 {offsets = [5, 0], sizes = [1, 128], strides = [1, 1]} : vector<8x128xf32> to vector<1x128xf32>
    %398 = vector.broadcast %397 : vector<1x128xf32> to vector<8x128xf32>
    %399 = arith.mulf %264, %398 : vector<8x128xf32>
    %400 = arith.addf %396, %399 : vector<8x128xf32>
    %401 = vector.extract_strided_slice %372 {offsets = [6, 0], sizes = [1, 128], strides = [1, 1]} : vector<8x128xf32> to vector<1x128xf32>
    %402 = vector.broadcast %401 : vector<1x128xf32> to vector<8x128xf32>
    %403 = arith.mulf %267, %402 : vector<8x128xf32>
    %404 = arith.addf %400, %403 : vector<8x128xf32>
    %405 = vector.extract_strided_slice %372 {offsets = [7, 0], sizes = [1, 128], strides = [1, 1]} : vector<8x128xf32> to vector<1x128xf32>
    %406 = vector.broadcast %405 : vector<1x128xf32> to vector<8x128xf32>
    %407 = arith.mulf %270, %406 : vector<8x128xf32>
    %408 = arith.addf %404, %407 : vector<8x128xf32>
    %409 = arith.subf %3, %408 : vector<8x128xf32>
    %410 = vector.extract_strided_slice %372 {offsets = [4, 0], sizes = [4, 128], strides = [1, 1]} : vector<8x128xf32> to vector<4x128xf32>
    %cst_25 = arith.constant dense<0.000000e+00> : vector<8x4xf32>
    %411 = tpu.matmul %409, %410, %cst_25 {dimension_numbers = #tpu.dot_dimension_numbers<[1], [1], [0], [0], [0, 0, 1, 0], [], []>} : vector<8x128xf32>, vector<4x128xf32>, vector<8x4xf32> -> vector<8x4xf32>
    %412 = vector.broadcast %220 : f32 to vector<8x4xf32>
    %413 = arith.mulf %412, %411 : vector<8x4xf32>
    %414 = arith.addf %218, %413 : vector<8x4xf32>
    %415 = arith.mulf %393, %393 : vector<8x4xf32>
    %cst_26 = arith.constant dense<0.000000e+00> : vector<8xf32>
    %416 = vector.multi_reduction <add>, %415, %cst_26 [1] : vector<8x4xf32> to vector<8xf32>
    %417 = vector.shape_cast %416 : vector<8xf32> to vector<8x1xf32>
    %418 = arith.mulf %414, %414 : vector<8x4xf32>
    %cst_27 = arith.constant dense<0.000000e+00> : vector<8xf32>
    %419 = vector.multi_reduction <add>, %418, %cst_27 [1] : vector<8x4xf32> to vector<8xf32>
    %420 = vector.shape_cast %419 : vector<8xf32> to vector<8x1xf32>
    %421 = arith.addf %417, %420 : vector<8x1xf32>
    %cst_28 = arith.constant 1.000000e+00 : f32
    %422 = vector.broadcast %cst_28 : f32 to vector<8x1xf32>
    %423 = arith.cmpf ogt, %421, %422 : vector<8x1xf32>
    %424 = math.rsqrt %421 : vector<8x1xf32>
    %cst_29 = arith.constant 1.000000e+00 : f32
    %425 = vector.broadcast %cst_29 : f32 to vector<8x1xf32>
    %426 = arith.select %423, %424, %425 : vector<8x1xi1>, vector<8x1xf32>
    %427 = vector.broadcast %426 : vector<8x1xf32> to vector<8x4xf32>
    %428 = arith.mulf %393, %427 : vector<8x4xf32>
    %429 = vector.broadcast %426 : vector<8x1xf32> to vector<8x4xf32>
    %430 = arith.mulf %414, %429 : vector<8x4xf32>
    %c2 = arith.constant 2 : index
    %431 = memref.load %arg2[%c2] : memref<10xf32, #tpu.memory_space<smem>>
    %c2_30 = arith.constant 2 : index
    %432 = memref.load %arg3[%c2_30] : memref<10xf32, #tpu.memory_space<smem>>
    %c2_31 = arith.constant 2 : index
    %c0_32 = arith.constant 0 : index
    %c0_33 = arith.constant 0 : index
    %433 = vector.load %arg1[%c2_31, %c0_32, %c0_33] : memref<10x4x8xf32, #tpu.memory_space<vmem>>, vector<1x4x8xf32>
    %434 = vector.shape_cast %433 : vector<1x4x8xf32> to vector<4x8xf32>
    %435 = vector.extract_strided_slice %434 {offsets = [0, 0], sizes = [4, 1], strides = [1, 1]} : vector<4x8xf32> to vector<4x1xf32>
    %436 = vector.shape_cast %435 : vector<4x1xf32> to vector<4x1xf32>
    %437 = vector.broadcast %436 : vector<4x1xf32> to vector<4x128xf32>
    %438 = vector.extract_strided_slice %434 {offsets = [0, 1], sizes = [4, 1], strides = [1, 1]} : vector<4x8xf32> to vector<4x1xf32>
    %439 = vector.shape_cast %438 : vector<4x1xf32> to vector<4x1xf32>
    %440 = vector.broadcast %439 : vector<4x1xf32> to vector<4x128xf32>
    %441 = vector.extract_strided_slice %434 {offsets = [0, 2], sizes = [4, 1], strides = [1, 1]} : vector<4x8xf32> to vector<4x1xf32>
    %442 = vector.shape_cast %441 : vector<4x1xf32> to vector<4x1xf32>
    %443 = vector.broadcast %442 : vector<4x1xf32> to vector<4x128xf32>
    %444 = vector.extract_strided_slice %434 {offsets = [0, 3], sizes = [4, 1], strides = [1, 1]} : vector<4x8xf32> to vector<4x1xf32>
    %445 = vector.shape_cast %444 : vector<4x1xf32> to vector<4x1xf32>
    %446 = vector.broadcast %445 : vector<4x1xf32> to vector<4x128xf32>
    %447 = vector.extract_strided_slice %434 {offsets = [0, 4], sizes = [4, 1], strides = [1, 1]} : vector<4x8xf32> to vector<4x1xf32>
    %448 = vector.shape_cast %447 : vector<4x1xf32> to vector<4x1xf32>
    %449 = vector.broadcast %448 : vector<4x1xf32> to vector<4x128xf32>
    %450 = vector.extract_strided_slice %434 {offsets = [0, 5], sizes = [4, 1], strides = [1, 1]} : vector<4x8xf32> to vector<4x1xf32>
    %451 = vector.shape_cast %450 : vector<4x1xf32> to vector<4x1xf32>
    %452 = vector.broadcast %451 : vector<4x1xf32> to vector<4x128xf32>
    %453 = vector.extract_strided_slice %434 {offsets = [0, 6], sizes = [4, 1], strides = [1, 1]} : vector<4x8xf32> to vector<4x1xf32>
    %454 = vector.shape_cast %453 : vector<4x1xf32> to vector<4x1xf32>
    %455 = vector.broadcast %454 : vector<4x1xf32> to vector<4x128xf32>
    %456 = vector.extract_strided_slice %434 {offsets = [0, 7], sizes = [4, 1], strides = [1, 1]} : vector<4x8xf32> to vector<4x1xf32>
    %457 = vector.shape_cast %456 : vector<4x1xf32> to vector<4x1xf32>
    %458 = vector.broadcast %457 : vector<4x1xf32> to vector<4x128xf32>
    %459 = vector.extract_strided_slice %428 {offsets = [0, 0], sizes = [8, 1], strides = [1, 1]} : vector<8x4xf32> to vector<8x1xf32>
    %460 = vector.shape_cast %459 : vector<8x1xf32> to vector<8x1xf32>
    %461 = vector.broadcast %460 : vector<8x1xf32> to vector<8x128xf32>
    %462 = vector.extract_strided_slice %428 {offsets = [0, 1], sizes = [8, 1], strides = [1, 1]} : vector<8x4xf32> to vector<8x1xf32>
    %463 = vector.shape_cast %462 : vector<8x1xf32> to vector<8x1xf32>
    %464 = vector.broadcast %463 : vector<8x1xf32> to vector<8x128xf32>
    %465 = vector.extract_strided_slice %428 {offsets = [0, 2], sizes = [8, 1], strides = [1, 1]} : vector<8x4xf32> to vector<8x1xf32>
    %466 = vector.shape_cast %465 : vector<8x1xf32> to vector<8x1xf32>
    %467 = vector.broadcast %466 : vector<8x1xf32> to vector<8x128xf32>
    %468 = vector.extract_strided_slice %428 {offsets = [0, 3], sizes = [8, 1], strides = [1, 1]} : vector<8x4xf32> to vector<8x1xf32>
    %469 = vector.shape_cast %468 : vector<8x1xf32> to vector<8x1xf32>
    %470 = vector.broadcast %469 : vector<8x1xf32> to vector<8x128xf32>
    %471 = vector.extract_strided_slice %430 {offsets = [0, 0], sizes = [8, 1], strides = [1, 1]} : vector<8x4xf32> to vector<8x1xf32>
    %472 = vector.shape_cast %471 : vector<8x1xf32> to vector<8x1xf32>
    %473 = vector.broadcast %472 : vector<8x1xf32> to vector<8x128xf32>
    %474 = vector.extract_strided_slice %430 {offsets = [0, 1], sizes = [8, 1], strides = [1, 1]} : vector<8x4xf32> to vector<8x1xf32>
    %475 = vector.shape_cast %474 : vector<8x1xf32> to vector<8x1xf32>
    %476 = vector.broadcast %475 : vector<8x1xf32> to vector<8x128xf32>
    %477 = vector.extract_strided_slice %430 {offsets = [0, 2], sizes = [8, 1], strides = [1, 1]} : vector<8x4xf32> to vector<8x1xf32>
    %478 = vector.shape_cast %477 : vector<8x1xf32> to vector<8x1xf32>
    %479 = vector.broadcast %478 : vector<8x1xf32> to vector<8x128xf32>
    %480 = vector.extract_strided_slice %430 {offsets = [0, 3], sizes = [8, 1], strides = [1, 1]} : vector<8x4xf32> to vector<8x1xf32>
    %481 = vector.shape_cast %480 : vector<8x1xf32> to vector<8x1xf32>
    %482 = vector.broadcast %481 : vector<8x1xf32> to vector<8x128xf32>
    %483 = vector.extract_strided_slice %372 {offsets = [0, 0], sizes = [1, 128], strides = [1, 1]} : vector<8x128xf32> to vector<1x128xf32>
    %484 = vector.broadcast %483 : vector<1x128xf32> to vector<8x128xf32>
    %485 = arith.mulf %461, %484 : vector<8x128xf32>
    %486 = vector.extract_strided_slice %372 {offsets = [1, 0], sizes = [1, 128], strides = [1, 1]} : vector<8x128xf32> to vector<1x128xf32>
    %487 = vector.broadcast %486 : vector<1x128xf32> to vector<8x128xf32>
    %488 = arith.mulf %464, %487 : vector<8x128xf32>
    %489 = arith.addf %485, %488 : vector<8x128xf32>
    %490 = vector.extract_strided_slice %372 {offsets = [2, 0], sizes = [1, 128], strides = [1, 1]} : vector<8x128xf32> to vector<1x128xf32>
    %491 = vector.broadcast %490 : vector<1x128xf32> to vector<8x128xf32>
    %492 = arith.mulf %467, %491 : vector<8x128xf32>
    %493 = arith.addf %489, %492 : vector<8x128xf32>
    %494 = vector.extract_strided_slice %372 {offsets = [3, 0], sizes = [1, 128], strides = [1, 1]} : vector<8x128xf32> to vector<1x128xf32>
    %495 = vector.broadcast %494 : vector<1x128xf32> to vector<8x128xf32>
    %496 = arith.mulf %470, %495 : vector<8x128xf32>
    %497 = arith.addf %493, %496 : vector<8x128xf32>
    %498 = arith.subf %497, %1 : vector<8x128xf32>
    %499 = vector.extract_strided_slice %372 {offsets = [4, 0], sizes = [1, 128], strides = [1, 1]} : vector<8x128xf32> to vector<1x128xf32>
    %500 = vector.broadcast %499 : vector<1x128xf32> to vector<8x128xf32>
    %501 = arith.mulf %473, %500 : vector<8x128xf32>
    %502 = vector.extract_strided_slice %372 {offsets = [5, 0], sizes = [1, 128], strides = [1, 1]} : vector<8x128xf32> to vector<1x128xf32>
    %503 = vector.broadcast %502 : vector<1x128xf32> to vector<8x128xf32>
    %504 = arith.mulf %476, %503 : vector<8x128xf32>
    %505 = arith.addf %501, %504 : vector<8x128xf32>
    %506 = vector.extract_strided_slice %372 {offsets = [6, 0], sizes = [1, 128], strides = [1, 1]} : vector<8x128xf32> to vector<1x128xf32>
    %507 = vector.broadcast %506 : vector<1x128xf32> to vector<8x128xf32>
    %508 = arith.mulf %479, %507 : vector<8x128xf32>
    %509 = arith.addf %505, %508 : vector<8x128xf32>
    %510 = vector.extract_strided_slice %372 {offsets = [7, 0], sizes = [1, 128], strides = [1, 1]} : vector<8x128xf32> to vector<1x128xf32>
    %511 = vector.broadcast %510 : vector<1x128xf32> to vector<8x128xf32>
    %512 = arith.mulf %482, %511 : vector<8x128xf32>
    %513 = arith.addf %509, %512 : vector<8x128xf32>
    %514 = arith.subf %513, %3 : vector<8x128xf32>
    %515 = vector.extract_strided_slice %498 {offsets = [0, 0], sizes = [1, 128], strides = [1, 1]} : vector<8x128xf32> to vector<1x128xf32>
    %516 = vector.broadcast %515 : vector<1x128xf32> to vector<4x128xf32>
    %517 = arith.mulf %437, %516 : vector<4x128xf32>
    %518 = vector.extract_strided_slice %498 {offsets = [1, 0], sizes = [1, 128], strides = [1, 1]} : vector<8x128xf32> to vector<1x128xf32>
    %519 = vector.broadcast %518 : vector<1x128xf32> to vector<4x128xf32>
    %520 = arith.mulf %440, %519 : vector<4x128xf32>
    %521 = arith.addf %517, %520 : vector<4x128xf32>
    %522 = vector.extract_strided_slice %498 {offsets = [2, 0], sizes = [1, 128], strides = [1, 1]} : vector<8x128xf32> to vector<1x128xf32>
    %523 = vector.broadcast %522 : vector<1x128xf32> to vector<4x128xf32>
    %524 = arith.mulf %443, %523 : vector<4x128xf32>
    %525 = arith.addf %521, %524 : vector<4x128xf32>
    %526 = vector.extract_strided_slice %498 {offsets = [3, 0], sizes = [1, 128], strides = [1, 1]} : vector<8x128xf32> to vector<1x128xf32>
    %527 = vector.broadcast %526 : vector<1x128xf32> to vector<4x128xf32>
    %528 = arith.mulf %446, %527 : vector<4x128xf32>
    %529 = arith.addf %525, %528 : vector<4x128xf32>
    %530 = vector.extract_strided_slice %498 {offsets = [4, 0], sizes = [1, 128], strides = [1, 1]} : vector<8x128xf32> to vector<1x128xf32>
    %531 = vector.broadcast %530 : vector<1x128xf32> to vector<4x128xf32>
    %532 = arith.mulf %449, %531 : vector<4x128xf32>
    %533 = arith.addf %529, %532 : vector<4x128xf32>
    %534 = vector.extract_strided_slice %498 {offsets = [5, 0], sizes = [1, 128], strides = [1, 1]} : vector<8x128xf32> to vector<1x128xf32>
    %535 = vector.broadcast %534 : vector<1x128xf32> to vector<4x128xf32>
    %536 = arith.mulf %452, %535 : vector<4x128xf32>
    %537 = arith.addf %533, %536 : vector<4x128xf32>
    %538 = vector.extract_strided_slice %498 {offsets = [6, 0], sizes = [1, 128], strides = [1, 1]} : vector<8x128xf32> to vector<1x128xf32>
    %539 = vector.broadcast %538 : vector<1x128xf32> to vector<4x128xf32>
    %540 = arith.mulf %455, %539 : vector<4x128xf32>
    %541 = arith.addf %537, %540 : vector<4x128xf32>
    %542 = vector.extract_strided_slice %498 {offsets = [7, 0], sizes = [1, 128], strides = [1, 1]} : vector<8x128xf32> to vector<1x128xf32>
    %543 = vector.broadcast %542 : vector<1x128xf32> to vector<4x128xf32>
    %544 = arith.mulf %458, %543 : vector<4x128xf32>
    %545 = arith.addf %541, %544 : vector<4x128xf32>
    %546 = vector.extract_strided_slice %514 {offsets = [0, 0], sizes = [1, 128], strides = [1, 1]} : vector<8x128xf32> to vector<1x128xf32>
    %547 = vector.broadcast %546 : vector<1x128xf32> to vector<4x128xf32>
    %548 = arith.mulf %437, %547 : vector<4x128xf32>
    %549 = vector.extract_strided_slice %514 {offsets = [1, 0], sizes = [1, 128], strides = [1, 1]} : vector<8x128xf32> to vector<1x128xf32>
    %550 = vector.broadcast %549 : vector<1x128xf32> to vector<4x128xf32>
    %551 = arith.mulf %440, %550 : vector<4x128xf32>
    %552 = arith.addf %548, %551 : vector<4x128xf32>
    %553 = vector.extract_strided_slice %514 {offsets = [2, 0], sizes = [1, 128], strides = [1, 1]} : vector<8x128xf32> to vector<1x128xf32>
    %554 = vector.broadcast %553 : vector<1x128xf32> to vector<4x128xf32>
    %555 = arith.mulf %443, %554 : vector<4x128xf32>
    %556 = arith.addf %552, %555 : vector<4x128xf32>
    %557 = vector.extract_strided_slice %514 {offsets = [3, 0], sizes = [1, 128], strides = [1, 1]} : vector<8x128xf32> to vector<1x128xf32>
    %558 = vector.broadcast %557 : vector<1x128xf32> to vector<4x128xf32>
    %559 = arith.mulf %446, %558 : vector<4x128xf32>
    %560 = arith.addf %556, %559 : vector<4x128xf32>
    %561 = vector.extract_strided_slice %514 {offsets = [4, 0], sizes = [1, 128], strides = [1, 1]} : vector<8x128xf32> to vector<1x128xf32>
    %562 = vector.broadcast %561 : vector<1x128xf32> to vector<4x128xf32>
    %563 = arith.mulf %449, %562 : vector<4x128xf32>
    %564 = arith.addf %560, %563 : vector<4x128xf32>
    %565 = vector.extract_strided_slice %514 {offsets = [5, 0], sizes = [1, 128], strides = [1, 1]} : vector<8x128xf32> to vector<1x128xf32>
    %566 = vector.broadcast %565 : vector<1x128xf32> to vector<4x128xf32>
    %567 = arith.mulf %452, %566 : vector<4x128xf32>
    %568 = arith.addf %564, %567 : vector<4x128xf32>
    %569 = vector.extract_strided_slice %514 {offsets = [6, 0], sizes = [1, 128], strides = [1, 1]} : vector<8x128xf32> to vector<1x128xf32>
    %570 = vector.broadcast %569 : vector<1x128xf32> to vector<4x128xf32>
    %571 = arith.mulf %455, %570 : vector<4x128xf32>
    %572 = arith.addf %568, %571 : vector<4x128xf32>
    %573 = vector.extract_strided_slice %514 {offsets = [7, 0], sizes = [1, 128], strides = [1, 1]} : vector<8x128xf32> to vector<1x128xf32>
    %574 = vector.broadcast %573 : vector<1x128xf32> to vector<4x128xf32>
    %575 = arith.mulf %458, %574 : vector<4x128xf32>
    %576 = arith.addf %572, %575 : vector<4x128xf32>
    %577 = tpu.concatenate %545, %576 in 0 : vector<4x128xf32>, vector<4x128xf32> -> vector<8x128xf32>
    %578 = arith.subf %372, %577 : vector<8x128xf32>
    %cst_34 = arith.constant 0.000000e+00 : f32
    %579 = arith.subf %cst_34, %431 : f32
    %580 = vector.broadcast %579 : f32 to vector<8x128xf32>
    %581 = arith.maximumf %580, %578 : vector<8x128xf32>
    %582 = vector.broadcast %431 : f32 to vector<8x128xf32>
    %583 = arith.minimumf %582, %581 : vector<8x128xf32>
    %584 = arith.subf %578, %583 : vector<8x128xf32>
    %585 = vector.extract_strided_slice %584 {offsets = [0, 0], sizes = [1, 128], strides = [1, 1]} : vector<8x128xf32> to vector<1x128xf32>
    %586 = vector.broadcast %585 : vector<1x128xf32> to vector<8x128xf32>
    %587 = arith.mulf %461, %586 : vector<8x128xf32>
    %588 = vector.extract_strided_slice %584 {offsets = [1, 0], sizes = [1, 128], strides = [1, 1]} : vector<8x128xf32> to vector<1x128xf32>
    %589 = vector.broadcast %588 : vector<1x128xf32> to vector<8x128xf32>
    %590 = arith.mulf %464, %589 : vector<8x128xf32>
    %591 = arith.addf %587, %590 : vector<8x128xf32>
    %592 = vector.extract_strided_slice %584 {offsets = [2, 0], sizes = [1, 128], strides = [1, 1]} : vector<8x128xf32> to vector<1x128xf32>
    %593 = vector.broadcast %592 : vector<1x128xf32> to vector<8x128xf32>
    %594 = arith.mulf %467, %593 : vector<8x128xf32>
    %595 = arith.addf %591, %594 : vector<8x128xf32>
    %596 = vector.extract_strided_slice %584 {offsets = [3, 0], sizes = [1, 128], strides = [1, 1]} : vector<8x128xf32> to vector<1x128xf32>
    %597 = vector.broadcast %596 : vector<1x128xf32> to vector<8x128xf32>
    %598 = arith.mulf %470, %597 : vector<8x128xf32>
    %599 = arith.addf %595, %598 : vector<8x128xf32>
    %600 = arith.subf %1, %599 : vector<8x128xf32>
    %601 = vector.extract_strided_slice %584 {offsets = [0, 0], sizes = [4, 128], strides = [1, 1]} : vector<8x128xf32> to vector<4x128xf32>
    %cst_35 = arith.constant dense<0.000000e+00> : vector<8x4xf32>
    %602 = tpu.matmul %600, %601, %cst_35 {dimension_numbers = #tpu.dot_dimension_numbers<[1], [1], [0], [0], [0, 0, 1, 0], [], []>} : vector<8x128xf32>, vector<4x128xf32>, vector<8x4xf32> -> vector<8x4xf32>
    %603 = vector.broadcast %432 : f32 to vector<8x4xf32>
    %604 = arith.mulf %603, %602 : vector<8x4xf32>
    %605 = arith.addf %428, %604 : vector<8x4xf32>
    %606 = vector.extract_strided_slice %584 {offsets = [4, 0], sizes = [1, 128], strides = [1, 1]} : vector<8x128xf32> to vector<1x128xf32>
    %607 = vector.broadcast %606 : vector<1x128xf32> to vector<8x128xf32>
    %608 = arith.mulf %473, %607 : vector<8x128xf32>
    %609 = vector.extract_strided_slice %584 {offsets = [5, 0], sizes = [1, 128], strides = [1, 1]} : vector<8x128xf32> to vector<1x128xf32>
    %610 = vector.broadcast %609 : vector<1x128xf32> to vector<8x128xf32>
    %611 = arith.mulf %476, %610 : vector<8x128xf32>
    %612 = arith.addf %608, %611 : vector<8x128xf32>
    %613 = vector.extract_strided_slice %584 {offsets = [6, 0], sizes = [1, 128], strides = [1, 1]} : vector<8x128xf32> to vector<1x128xf32>
    %614 = vector.broadcast %613 : vector<1x128xf32> to vector<8x128xf32>
    %615 = arith.mulf %479, %614 : vector<8x128xf32>
    %616 = arith.addf %612, %615 : vector<8x128xf32>
    %617 = vector.extract_strided_slice %584 {offsets = [7, 0], sizes = [1, 128], strides = [1, 1]} : vector<8x128xf32> to vector<1x128xf32>
    %618 = vector.broadcast %617 : vector<1x128xf32> to vector<8x128xf32>
    %619 = arith.mulf %482, %618 : vector<8x128xf32>
    %620 = arith.addf %616, %619 : vector<8x128xf32>
    %621 = arith.subf %3, %620 : vector<8x128xf32>
    %622 = vector.extract_strided_slice %584 {offsets = [4, 0], sizes = [4, 128], strides = [1, 1]} : vector<8x128xf32> to vector<4x128xf32>
    %cst_36 = arith.constant dense<0.000000e+00> : vector<8x4xf32>
    %623 = tpu.matmul %621, %622, %cst_36 {dimension_numbers = #tpu.dot_dimension_numbers<[1], [1], [0], [0], [0, 0, 1, 0], [], []>} : vector<8x128xf32>, vector<4x128xf32>, vector<8x4xf32> -> vector<8x4xf32>
    %624 = vector.broadcast %432 : f32 to vector<8x4xf32>
    %625 = arith.mulf %624, %623 : vector<8x4xf32>
    %626 = arith.addf %430, %625 : vector<8x4xf32>
    %627 = arith.mulf %605, %605 : vector<8x4xf32>
    %cst_37 = arith.constant dense<0.000000e+00> : vector<8xf32>
    %628 = vector.multi_reduction <add>, %627, %cst_37 [1] : vector<8x4xf32> to vector<8xf32>
    %629 = vector.shape_cast %628 : vector<8xf32> to vector<8x1xf32>
    %630 = arith.mulf %626, %626 : vector<8x4xf32>
    %cst_38 = arith.constant dense<0.000000e+00> : vector<8xf32>
    %631 = vector.multi_reduction <add>, %630, %cst_38 [1] : vector<8x4xf32> to vector<8xf32>
    %632 = vector.shape_cast %631 : vector<8xf32> to vector<8x1xf32>
    %633 = arith.addf %629, %632 : vector<8x1xf32>
    %cst_39 = arith.constant 1.000000e+00 : f32
    %634 = vector.broadcast %cst_39 : f32 to vector<8x1xf32>
    %635 = arith.cmpf ogt, %633, %634 : vector<8x1xf32>
    %636 = math.rsqrt %633 : vector<8x1xf32>
    %cst_40 = arith.constant 1.000000e+00 : f32
    %637 = vector.broadcast %cst_40 : f32 to vector<8x1xf32>
    %638 = arith.select %635, %636, %637 : vector<8x1xi1>, vector<8x1xf32>
    %639 = vector.broadcast %638 : vector<8x1xf32> to vector<8x4xf32>
    %640 = arith.mulf %605, %639 : vector<8x4xf32>
    %641 = vector.broadcast %638 : vector<8x1xf32> to vector<8x4xf32>
    %642 = arith.mulf %626, %641 : vector<8x4xf32>
    %c3 = arith.constant 3 : index
    %643 = memref.load %arg2[%c3] : memref<10xf32, #tpu.memory_space<smem>>
    %c3_41 = arith.constant 3 : index
    %644 = memref.load %arg3[%c3_41] : memref<10xf32, #tpu.memory_space<smem>>
    %c3_42 = arith.constant 3 : index
    %c0_43 = arith.constant 0 : index
    %c0_44 = arith.constant 0 : index
    %645 = vector.load %arg1[%c3_42, %c0_43, %c0_44] : memref<10x4x8xf32, #tpu.memory_space<vmem>>, vector<1x4x8xf32>
    %646 = vector.shape_cast %645 : vector<1x4x8xf32> to vector<4x8xf32>
    %647 = vector.extract_strided_slice %646 {offsets = [0, 0], sizes = [4, 1], strides = [1, 1]} : vector<4x8xf32> to vector<4x1xf32>
    %648 = vector.shape_cast %647 : vector<4x1xf32> to vector<4x1xf32>
    %649 = vector.broadcast %648 : vector<4x1xf32> to vector<4x128xf32>
    %650 = vector.extract_strided_slice %646 {offsets = [0, 1], sizes = [4, 1], strides = [1, 1]} : vector<4x8xf32> to vector<4x1xf32>
    %651 = vector.shape_cast %650 : vector<4x1xf32> to vector<4x1xf32>
    %652 = vector.broadcast %651 : vector<4x1xf32> to vector<4x128xf32>
    %653 = vector.extract_strided_slice %646 {offsets = [0, 2], sizes = [4, 1], strides = [1, 1]} : vector<4x8xf32> to vector<4x1xf32>
    %654 = vector.shape_cast %653 : vector<4x1xf32> to vector<4x1xf32>
    %655 = vector.broadcast %654 : vector<4x1xf32> to vector<4x128xf32>
    %656 = vector.extract_strided_slice %646 {offsets = [0, 3], sizes = [4, 1], strides = [1, 1]} : vector<4x8xf32> to vector<4x1xf32>
    %657 = vector.shape_cast %656 : vector<4x1xf32> to vector<4x1xf32>
    %658 = vector.broadcast %657 : vector<4x1xf32> to vector<4x128xf32>
    %659 = vector.extract_strided_slice %646 {offsets = [0, 4], sizes = [4, 1], strides = [1, 1]} : vector<4x8xf32> to vector<4x1xf32>
    %660 = vector.shape_cast %659 : vector<4x1xf32> to vector<4x1xf32>
    %661 = vector.broadcast %660 : vector<4x1xf32> to vector<4x128xf32>
    %662 = vector.extract_strided_slice %646 {offsets = [0, 5], sizes = [4, 1], strides = [1, 1]} : vector<4x8xf32> to vector<4x1xf32>
    %663 = vector.shape_cast %662 : vector<4x1xf32> to vector<4x1xf32>
    %664 = vector.broadcast %663 : vector<4x1xf32> to vector<4x128xf32>
    %665 = vector.extract_strided_slice %646 {offsets = [0, 6], sizes = [4, 1], strides = [1, 1]} : vector<4x8xf32> to vector<4x1xf32>
    %666 = vector.shape_cast %665 : vector<4x1xf32> to vector<4x1xf32>
    %667 = vector.broadcast %666 : vector<4x1xf32> to vector<4x128xf32>
    %668 = vector.extract_strided_slice %646 {offsets = [0, 7], sizes = [4, 1], strides = [1, 1]} : vector<4x8xf32> to vector<4x1xf32>
    %669 = vector.shape_cast %668 : vector<4x1xf32> to vector<4x1xf32>
    %670 = vector.broadcast %669 : vector<4x1xf32> to vector<4x128xf32>
    %671 = vector.extract_strided_slice %640 {offsets = [0, 0], sizes = [8, 1], strides = [1, 1]} : vector<8x4xf32> to vector<8x1xf32>
    %672 = vector.shape_cast %671 : vector<8x1xf32> to vector<8x1xf32>
    %673 = vector.broadcast %672 : vector<8x1xf32> to vector<8x128xf32>
    %674 = vector.extract_strided_slice %640 {offsets = [0, 1], sizes = [8, 1], strides = [1, 1]} : vector<8x4xf32> to vector<8x1xf32>
    %675 = vector.shape_cast %674 : vector<8x1xf32> to vector<8x1xf32>
    %676 = vector.broadcast %675 : vector<8x1xf32> to vector<8x128xf32>
    %677 = vector.extract_strided_slice %640 {offsets = [0, 2], sizes = [8, 1], strides = [1, 1]} : vector<8x4xf32> to vector<8x1xf32>
    %678 = vector.shape_cast %677 : vector<8x1xf32> to vector<8x1xf32>
    %679 = vector.broadcast %678 : vector<8x1xf32> to vector<8x128xf32>
    %680 = vector.extract_strided_slice %640 {offsets = [0, 3], sizes = [8, 1], strides = [1, 1]} : vector<8x4xf32> to vector<8x1xf32>
    %681 = vector.shape_cast %680 : vector<8x1xf32> to vector<8x1xf32>
    %682 = vector.broadcast %681 : vector<8x1xf32> to vector<8x128xf32>
    %683 = vector.extract_strided_slice %642 {offsets = [0, 0], sizes = [8, 1], strides = [1, 1]} : vector<8x4xf32> to vector<8x1xf32>
    %684 = vector.shape_cast %683 : vector<8x1xf32> to vector<8x1xf32>
    %685 = vector.broadcast %684 : vector<8x1xf32> to vector<8x128xf32>
    %686 = vector.extract_strided_slice %642 {offsets = [0, 1], sizes = [8, 1], strides = [1, 1]} : vector<8x4xf32> to vector<8x1xf32>
    %687 = vector.shape_cast %686 : vector<8x1xf32> to vector<8x1xf32>
    %688 = vector.broadcast %687 : vector<8x1xf32> to vector<8x128xf32>
    %689 = vector.extract_strided_slice %642 {offsets = [0, 2], sizes = [8, 1], strides = [1, 1]} : vector<8x4xf32> to vector<8x1xf32>
    %690 = vector.shape_cast %689 : vector<8x1xf32> to vector<8x1xf32>
    %691 = vector.broadcast %690 : vector<8x1xf32> to vector<8x128xf32>
    %692 = vector.extract_strided_slice %642 {offsets = [0, 3], sizes = [8, 1], strides = [1, 1]} : vector<8x4xf32> to vector<8x1xf32>
    %693 = vector.shape_cast %692 : vector<8x1xf32> to vector<8x1xf32>
    %694 = vector.broadcast %693 : vector<8x1xf32> to vector<8x128xf32>
    %695 = vector.extract_strided_slice %584 {offsets = [0, 0], sizes = [1, 128], strides = [1, 1]} : vector<8x128xf32> to vector<1x128xf32>
    %696 = vector.broadcast %695 : vector<1x128xf32> to vector<8x128xf32>
    %697 = arith.mulf %673, %696 : vector<8x128xf32>
    %698 = vector.extract_strided_slice %584 {offsets = [1, 0], sizes = [1, 128], strides = [1, 1]} : vector<8x128xf32> to vector<1x128xf32>
    %699 = vector.broadcast %698 : vector<1x128xf32> to vector<8x128xf32>
    %700 = arith.mulf %676, %699 : vector<8x128xf32>
    %701 = arith.addf %697, %700 : vector<8x128xf32>
    %702 = vector.extract_strided_slice %584 {offsets = [2, 0], sizes = [1, 128], strides = [1, 1]} : vector<8x128xf32> to vector<1x128xf32>
    %703 = vector.broadcast %702 : vector<1x128xf32> to vector<8x128xf32>
    %704 = arith.mulf %679, %703 : vector<8x128xf32>
    %705 = arith.addf %701, %704 : vector<8x128xf32>
    %706 = vector.extract_strided_slice %584 {offsets = [3, 0], sizes = [1, 128], strides = [1, 1]} : vector<8x128xf32> to vector<1x128xf32>
    %707 = vector.broadcast %706 : vector<1x128xf32> to vector<8x128xf32>
    %708 = arith.mulf %682, %707 : vector<8x128xf32>
    %709 = arith.addf %705, %708 : vector<8x128xf32>
    %710 = arith.subf %709, %1 : vector<8x128xf32>
    %711 = vector.extract_strided_slice %584 {offsets = [4, 0], sizes = [1, 128], strides = [1, 1]} : vector<8x128xf32> to vector<1x128xf32>
    %712 = vector.broadcast %711 : vector<1x128xf32> to vector<8x128xf32>
    %713 = arith.mulf %685, %712 : vector<8x128xf32>
    %714 = vector.extract_strided_slice %584 {offsets = [5, 0], sizes = [1, 128], strides = [1, 1]} : vector<8x128xf32> to vector<1x128xf32>
    %715 = vector.broadcast %714 : vector<1x128xf32> to vector<8x128xf32>
    %716 = arith.mulf %688, %715 : vector<8x128xf32>
    %717 = arith.addf %713, %716 : vector<8x128xf32>
    %718 = vector.extract_strided_slice %584 {offsets = [6, 0], sizes = [1, 128], strides = [1, 1]} : vector<8x128xf32> to vector<1x128xf32>
    %719 = vector.broadcast %718 : vector<1x128xf32> to vector<8x128xf32>
    %720 = arith.mulf %691, %719 : vector<8x128xf32>
    %721 = arith.addf %717, %720 : vector<8x128xf32>
    %722 = vector.extract_strided_slice %584 {offsets = [7, 0], sizes = [1, 128], strides = [1, 1]} : vector<8x128xf32> to vector<1x128xf32>
    %723 = vector.broadcast %722 : vector<1x128xf32> to vector<8x128xf32>
    %724 = arith.mulf %694, %723 : vector<8x128xf32>
    %725 = arith.addf %721, %724 : vector<8x128xf32>
    %726 = arith.subf %725, %3 : vector<8x128xf32>
    %727 = vector.extract_strided_slice %710 {offsets = [0, 0], sizes = [1, 128], strides = [1, 1]} : vector<8x128xf32> to vector<1x128xf32>
    %728 = vector.broadcast %727 : vector<1x128xf32> to vector<4x128xf32>
    %729 = arith.mulf %649, %728 : vector<4x128xf32>
    %730 = vector.extract_strided_slice %710 {offsets = [1, 0], sizes = [1, 128], strides = [1, 1]} : vector<8x128xf32> to vector<1x128xf32>
    %731 = vector.broadcast %730 : vector<1x128xf32> to vector<4x128xf32>
    %732 = arith.mulf %652, %731 : vector<4x128xf32>
    %733 = arith.addf %729, %732 : vector<4x128xf32>
    %734 = vector.extract_strided_slice %710 {offsets = [2, 0], sizes = [1, 128], strides = [1, 1]} : vector<8x128xf32> to vector<1x128xf32>
    %735 = vector.broadcast %734 : vector<1x128xf32> to vector<4x128xf32>
    %736 = arith.mulf %655, %735 : vector<4x128xf32>
    %737 = arith.addf %733, %736 : vector<4x128xf32>
    %738 = vector.extract_strided_slice %710 {offsets = [3, 0], sizes = [1, 128], strides = [1, 1]} : vector<8x128xf32> to vector<1x128xf32>
    %739 = vector.broadcast %738 : vector<1x128xf32> to vector<4x128xf32>
    %740 = arith.mulf %658, %739 : vector<4x128xf32>
    %741 = arith.addf %737, %740 : vector<4x128xf32>
    %742 = vector.extract_strided_slice %710 {offsets = [4, 0], sizes = [1, 128], strides = [1, 1]} : vector<8x128xf32> to vector<1x128xf32>
    %743 = vector.broadcast %742 : vector<1x128xf32> to vector<4x128xf32>
    %744 = arith.mulf %661, %743 : vector<4x128xf32>
    %745 = arith.addf %741, %744 : vector<4x128xf32>
    %746 = vector.extract_strided_slice %710 {offsets = [5, 0], sizes = [1, 128], strides = [1, 1]} : vector<8x128xf32> to vector<1x128xf32>
    %747 = vector.broadcast %746 : vector<1x128xf32> to vector<4x128xf32>
    %748 = arith.mulf %664, %747 : vector<4x128xf32>
    %749 = arith.addf %745, %748 : vector<4x128xf32>
    %750 = vector.extract_strided_slice %710 {offsets = [6, 0], sizes = [1, 128], strides = [1, 1]} : vector<8x128xf32> to vector<1x128xf32>
    %751 = vector.broadcast %750 : vector<1x128xf32> to vector<4x128xf32>
    %752 = arith.mulf %667, %751 : vector<4x128xf32>
    %753 = arith.addf %749, %752 : vector<4x128xf32>
    %754 = vector.extract_strided_slice %710 {offsets = [7, 0], sizes = [1, 128], strides = [1, 1]} : vector<8x128xf32> to vector<1x128xf32>
    %755 = vector.broadcast %754 : vector<1x128xf32> to vector<4x128xf32>
    %756 = arith.mulf %670, %755 : vector<4x128xf32>
    %757 = arith.addf %753, %756 : vector<4x128xf32>
    %758 = vector.extract_strided_slice %726 {offsets = [0, 0], sizes = [1, 128], strides = [1, 1]} : vector<8x128xf32> to vector<1x128xf32>
    %759 = vector.broadcast %758 : vector<1x128xf32> to vector<4x128xf32>
    %760 = arith.mulf %649, %759 : vector<4x128xf32>
    %761 = vector.extract_strided_slice %726 {offsets = [1, 0], sizes = [1, 128], strides = [1, 1]} : vector<8x128xf32> to vector<1x128xf32>
    %762 = vector.broadcast %761 : vector<1x128xf32> to vector<4x128xf32>
    %763 = arith.mulf %652, %762 : vector<4x128xf32>
    %764 = arith.addf %760, %763 : vector<4x128xf32>
    %765 = vector.extract_strided_slice %726 {offsets = [2, 0], sizes = [1, 128], strides = [1, 1]} : vector<8x128xf32> to vector<1x128xf32>
    %766 = vector.broadcast %765 : vector<1x128xf32> to vector<4x128xf32>
    %767 = arith.mulf %655, %766 : vector<4x128xf32>
    %768 = arith.addf %764, %767 : vector<4x128xf32>
    %769 = vector.extract_strided_slice %726 {offsets = [3, 0], sizes = [1, 128], strides = [1, 1]} : vector<8x128xf32> to vector<1x128xf32>
    %770 = vector.broadcast %769 : vector<1x128xf32> to vector<4x128xf32>
    %771 = arith.mulf %658, %770 : vector<4x128xf32>
    %772 = arith.addf %768, %771 : vector<4x128xf32>
    %773 = vector.extract_strided_slice %726 {offsets = [4, 0], sizes = [1, 128], strides = [1, 1]} : vector<8x128xf32> to vector<1x128xf32>
    %774 = vector.broadcast %773 : vector<1x128xf32> to vector<4x128xf32>
    %775 = arith.mulf %661, %774 : vector<4x128xf32>
    %776 = arith.addf %772, %775 : vector<4x128xf32>
    %777 = vector.extract_strided_slice %726 {offsets = [5, 0], sizes = [1, 128], strides = [1, 1]} : vector<8x128xf32> to vector<1x128xf32>
    %778 = vector.broadcast %777 : vector<1x128xf32> to vector<4x128xf32>
    %779 = arith.mulf %664, %778 : vector<4x128xf32>
    %780 = arith.addf %776, %779 : vector<4x128xf32>
    %781 = vector.extract_strided_slice %726 {offsets = [6, 0], sizes = [1, 128], strides = [1, 1]} : vector<8x128xf32> to vector<1x128xf32>
    %782 = vector.broadcast %781 : vector<1x128xf32> to vector<4x128xf32>
    %783 = arith.mulf %667, %782 : vector<4x128xf32>
    %784 = arith.addf %780, %783 : vector<4x128xf32>
    %785 = vector.extract_strided_slice %726 {offsets = [7, 0], sizes = [1, 128], strides = [1, 1]} : vector<8x128xf32> to vector<1x128xf32>
    %786 = vector.broadcast %785 : vector<1x128xf32> to vector<4x128xf32>
    %787 = arith.mulf %670, %786 : vector<4x128xf32>
    %788 = arith.addf %784, %787 : vector<4x128xf32>
    %789 = tpu.concatenate %757, %788 in 0 : vector<4x128xf32>, vector<4x128xf32> -> vector<8x128xf32>
    %790 = arith.subf %584, %789 : vector<8x128xf32>
    %cst_45 = arith.constant 0.000000e+00 : f32
    %791 = arith.subf %cst_45, %643 : f32
    %792 = vector.broadcast %791 : f32 to vector<8x128xf32>
    %793 = arith.maximumf %792, %790 : vector<8x128xf32>
    %794 = vector.broadcast %643 : f32 to vector<8x128xf32>
    %795 = arith.minimumf %794, %793 : vector<8x128xf32>
    %796 = arith.subf %790, %795 : vector<8x128xf32>
    %797 = vector.extract_strided_slice %796 {offsets = [0, 0], sizes = [1, 128], strides = [1, 1]} : vector<8x128xf32> to vector<1x128xf32>
    %798 = vector.broadcast %797 : vector<1x128xf32> to vector<8x128xf32>
    %799 = arith.mulf %673, %798 : vector<8x128xf32>
    %800 = vector.extract_strided_slice %796 {offsets = [1, 0], sizes = [1, 128], strides = [1, 1]} : vector<8x128xf32> to vector<1x128xf32>
    %801 = vector.broadcast %800 : vector<1x128xf32> to vector<8x128xf32>
    %802 = arith.mulf %676, %801 : vector<8x128xf32>
    %803 = arith.addf %799, %802 : vector<8x128xf32>
    %804 = vector.extract_strided_slice %796 {offsets = [2, 0], sizes = [1, 128], strides = [1, 1]} : vector<8x128xf32> to vector<1x128xf32>
    %805 = vector.broadcast %804 : vector<1x128xf32> to vector<8x128xf32>
    %806 = arith.mulf %679, %805 : vector<8x128xf32>
    %807 = arith.addf %803, %806 : vector<8x128xf32>
    %808 = vector.extract_strided_slice %796 {offsets = [3, 0], sizes = [1, 128], strides = [1, 1]} : vector<8x128xf32> to vector<1x128xf32>
    %809 = vector.broadcast %808 : vector<1x128xf32> to vector<8x128xf32>
    %810 = arith.mulf %682, %809 : vector<8x128xf32>
    %811 = arith.addf %807, %810 : vector<8x128xf32>
    %812 = arith.subf %1, %811 : vector<8x128xf32>
    %813 = vector.extract_strided_slice %796 {offsets = [0, 0], sizes = [4, 128], strides = [1, 1]} : vector<8x128xf32> to vector<4x128xf32>
    %cst_46 = arith.constant dense<0.000000e+00> : vector<8x4xf32>
    %814 = tpu.matmul %812, %813, %cst_46 {dimension_numbers = #tpu.dot_dimension_numbers<[1], [1], [0], [0], [0, 0, 1, 0], [], []>} : vector<8x128xf32>, vector<4x128xf32>, vector<8x4xf32> -> vector<8x4xf32>
    %815 = vector.broadcast %644 : f32 to vector<8x4xf32>
    %816 = arith.mulf %815, %814 : vector<8x4xf32>
    %817 = arith.addf %640, %816 : vector<8x4xf32>
    %818 = vector.extract_strided_slice %796 {offsets = [4, 0], sizes = [1, 128], strides = [1, 1]} : vector<8x128xf32> to vector<1x128xf32>
    %819 = vector.broadcast %818 : vector<1x128xf32> to vector<8x128xf32>
    %820 = arith.mulf %685, %819 : vector<8x128xf32>
    %821 = vector.extract_strided_slice %796 {offsets = [5, 0], sizes = [1, 128], strides = [1, 1]} : vector<8x128xf32> to vector<1x128xf32>
    %822 = vector.broadcast %821 : vector<1x128xf32> to vector<8x128xf32>
    %823 = arith.mulf %688, %822 : vector<8x128xf32>
    %824 = arith.addf %820, %823 : vector<8x128xf32>
    %825 = vector.extract_strided_slice %796 {offsets = [6, 0], sizes = [1, 128], strides = [1, 1]} : vector<8x128xf32> to vector<1x128xf32>
    %826 = vector.broadcast %825 : vector<1x128xf32> to vector<8x128xf32>
    %827 = arith.mulf %691, %826 : vector<8x128xf32>
    %828 = arith.addf %824, %827 : vector<8x128xf32>
    %829 = vector.extract_strided_slice %796 {offsets = [7, 0], sizes = [1, 128], strides = [1, 1]} : vector<8x128xf32> to vector<1x128xf32>
    %830 = vector.broadcast %829 : vector<1x128xf32> to vector<8x128xf32>
    %831 = arith.mulf %694, %830 : vector<8x128xf32>
    %832 = arith.addf %828, %831 : vector<8x128xf32>
    %833 = arith.subf %3, %832 : vector<8x128xf32>
    %834 = vector.extract_strided_slice %796 {offsets = [4, 0], sizes = [4, 128], strides = [1, 1]} : vector<8x128xf32> to vector<4x128xf32>
    %cst_47 = arith.constant dense<0.000000e+00> : vector<8x4xf32>
    %835 = tpu.matmul %833, %834, %cst_47 {dimension_numbers = #tpu.dot_dimension_numbers<[1], [1], [0], [0], [0, 0, 1, 0], [], []>} : vector<8x128xf32>, vector<4x128xf32>, vector<8x4xf32> -> vector<8x4xf32>
    %836 = vector.broadcast %644 : f32 to vector<8x4xf32>
    %837 = arith.mulf %836, %835 : vector<8x4xf32>
    %838 = arith.addf %642, %837 : vector<8x4xf32>
    %839 = arith.mulf %817, %817 : vector<8x4xf32>
    %cst_48 = arith.constant dense<0.000000e+00> : vector<8xf32>
    %840 = vector.multi_reduction <add>, %839, %cst_48 [1] : vector<8x4xf32> to vector<8xf32>
    %841 = vector.shape_cast %840 : vector<8xf32> to vector<8x1xf32>
    %842 = arith.mulf %838, %838 : vector<8x4xf32>
    %cst_49 = arith.constant dense<0.000000e+00> : vector<8xf32>
    %843 = vector.multi_reduction <add>, %842, %cst_49 [1] : vector<8x4xf32> to vector<8xf32>
    %844 = vector.shape_cast %843 : vector<8xf32> to vector<8x1xf32>
    %845 = arith.addf %841, %844 : vector<8x1xf32>
    %cst_50 = arith.constant 1.000000e+00 : f32
    %846 = vector.broadcast %cst_50 : f32 to vector<8x1xf32>
    %847 = arith.cmpf ogt, %845, %846 : vector<8x1xf32>
    %848 = math.rsqrt %845 : vector<8x1xf32>
    %cst_51 = arith.constant 1.000000e+00 : f32
    %849 = vector.broadcast %cst_51 : f32 to vector<8x1xf32>
    %850 = arith.select %847, %848, %849 : vector<8x1xi1>, vector<8x1xf32>
    %851 = vector.broadcast %850 : vector<8x1xf32> to vector<8x4xf32>
    %852 = arith.mulf %817, %851 : vector<8x4xf32>
    %853 = vector.broadcast %850 : vector<8x1xf32> to vector<8x4xf32>
    %854 = arith.mulf %838, %853 : vector<8x4xf32>
    %c4 = arith.constant 4 : index
    %855 = memref.load %arg2[%c4] : memref<10xf32, #tpu.memory_space<smem>>
    %c4_52 = arith.constant 4 : index
    %856 = memref.load %arg3[%c4_52] : memref<10xf32, #tpu.memory_space<smem>>
    %c4_53 = arith.constant 4 : index
    %c0_54 = arith.constant 0 : index
    %c0_55 = arith.constant 0 : index
    %857 = vector.load %arg1[%c4_53, %c0_54, %c0_55] : memref<10x4x8xf32, #tpu.memory_space<vmem>>, vector<1x4x8xf32>
    %858 = vector.shape_cast %857 : vector<1x4x8xf32> to vector<4x8xf32>
    %859 = vector.extract_strided_slice %858 {offsets = [0, 0], sizes = [4, 1], strides = [1, 1]} : vector<4x8xf32> to vector<4x1xf32>
    %860 = vector.shape_cast %859 : vector<4x1xf32> to vector<4x1xf32>
    %861 = vector.broadcast %860 : vector<4x1xf32> to vector<4x128xf32>
    %862 = vector.extract_strided_slice %858 {offsets = [0, 1], sizes = [4, 1], strides = [1, 1]} : vector<4x8xf32> to vector<4x1xf32>
    %863 = vector.shape_cast %862 : vector<4x1xf32> to vector<4x1xf32>
    %864 = vector.broadcast %863 : vector<4x1xf32> to vector<4x128xf32>
    %865 = vector.extract_strided_slice %858 {offsets = [0, 2], sizes = [4, 1], strides = [1, 1]} : vector<4x8xf32> to vector<4x1xf32>
    %866 = vector.shape_cast %865 : vector<4x1xf32> to vector<4x1xf32>
    %867 = vector.broadcast %866 : vector<4x1xf32> to vector<4x128xf32>
    %868 = vector.extract_strided_slice %858 {offsets = [0, 3], sizes = [4, 1], strides = [1, 1]} : vector<4x8xf32> to vector<4x1xf32>
    %869 = vector.shape_cast %868 : vector<4x1xf32> to vector<4x1xf32>
    %870 = vector.broadcast %869 : vector<4x1xf32> to vector<4x128xf32>
    %871 = vector.extract_strided_slice %858 {offsets = [0, 4], sizes = [4, 1], strides = [1, 1]} : vector<4x8xf32> to vector<4x1xf32>
    %872 = vector.shape_cast %871 : vector<4x1xf32> to vector<4x1xf32>
    %873 = vector.broadcast %872 : vector<4x1xf32> to vector<4x128xf32>
    %874 = vector.extract_strided_slice %858 {offsets = [0, 5], sizes = [4, 1], strides = [1, 1]} : vector<4x8xf32> to vector<4x1xf32>
    %875 = vector.shape_cast %874 : vector<4x1xf32> to vector<4x1xf32>
    %876 = vector.broadcast %875 : vector<4x1xf32> to vector<4x128xf32>
    %877 = vector.extract_strided_slice %858 {offsets = [0, 6], sizes = [4, 1], strides = [1, 1]} : vector<4x8xf32> to vector<4x1xf32>
    %878 = vector.shape_cast %877 : vector<4x1xf32> to vector<4x1xf32>
    %879 = vector.broadcast %878 : vector<4x1xf32> to vector<4x128xf32>
    %880 = vector.extract_strided_slice %858 {offsets = [0, 7], sizes = [4, 1], strides = [1, 1]} : vector<4x8xf32> to vector<4x1xf32>
    %881 = vector.shape_cast %880 : vector<4x1xf32> to vector<4x1xf32>
    %882 = vector.broadcast %881 : vector<4x1xf32> to vector<4x128xf32>
    %883 = vector.extract_strided_slice %852 {offsets = [0, 0], sizes = [8, 1], strides = [1, 1]} : vector<8x4xf32> to vector<8x1xf32>
    %884 = vector.shape_cast %883 : vector<8x1xf32> to vector<8x1xf32>
    %885 = vector.broadcast %884 : vector<8x1xf32> to vector<8x128xf32>
    %886 = vector.extract_strided_slice %852 {offsets = [0, 1], sizes = [8, 1], strides = [1, 1]} : vector<8x4xf32> to vector<8x1xf32>
    %887 = vector.shape_cast %886 : vector<8x1xf32> to vector<8x1xf32>
    %888 = vector.broadcast %887 : vector<8x1xf32> to vector<8x128xf32>
    %889 = vector.extract_strided_slice %852 {offsets = [0, 2], sizes = [8, 1], strides = [1, 1]} : vector<8x4xf32> to vector<8x1xf32>
    %890 = vector.shape_cast %889 : vector<8x1xf32> to vector<8x1xf32>
    %891 = vector.broadcast %890 : vector<8x1xf32> to vector<8x128xf32>
    %892 = vector.extract_strided_slice %852 {offsets = [0, 3], sizes = [8, 1], strides = [1, 1]} : vector<8x4xf32> to vector<8x1xf32>
    %893 = vector.shape_cast %892 : vector<8x1xf32> to vector<8x1xf32>
    %894 = vector.broadcast %893 : vector<8x1xf32> to vector<8x128xf32>
    %895 = vector.extract_strided_slice %854 {offsets = [0, 0], sizes = [8, 1], strides = [1, 1]} : vector<8x4xf32> to vector<8x1xf32>
    %896 = vector.shape_cast %895 : vector<8x1xf32> to vector<8x1xf32>
    %897 = vector.broadcast %896 : vector<8x1xf32> to vector<8x128xf32>
    %898 = vector.extract_strided_slice %854 {offsets = [0, 1], sizes = [8, 1], strides = [1, 1]} : vector<8x4xf32> to vector<8x1xf32>
    %899 = vector.shape_cast %898 : vector<8x1xf32> to vector<8x1xf32>
    %900 = vector.broadcast %899 : vector<8x1xf32> to vector<8x128xf32>
    %901 = vector.extract_strided_slice %854 {offsets = [0, 2], sizes = [8, 1], strides = [1, 1]} : vector<8x4xf32> to vector<8x1xf32>
    %902 = vector.shape_cast %901 : vector<8x1xf32> to vector<8x1xf32>
    %903 = vector.broadcast %902 : vector<8x1xf32> to vector<8x128xf32>
    %904 = vector.extract_strided_slice %854 {offsets = [0, 3], sizes = [8, 1], strides = [1, 1]} : vector<8x4xf32> to vector<8x1xf32>
    %905 = vector.shape_cast %904 : vector<8x1xf32> to vector<8x1xf32>
    %906 = vector.broadcast %905 : vector<8x1xf32> to vector<8x128xf32>
    %907 = vector.extract_strided_slice %796 {offsets = [0, 0], sizes = [1, 128], strides = [1, 1]} : vector<8x128xf32> to vector<1x128xf32>
    %908 = vector.broadcast %907 : vector<1x128xf32> to vector<8x128xf32>
    %909 = arith.mulf %885, %908 : vector<8x128xf32>
    %910 = vector.extract_strided_slice %796 {offsets = [1, 0], sizes = [1, 128], strides = [1, 1]} : vector<8x128xf32> to vector<1x128xf32>
    %911 = vector.broadcast %910 : vector<1x128xf32> to vector<8x128xf32>
    %912 = arith.mulf %888, %911 : vector<8x128xf32>
    %913 = arith.addf %909, %912 : vector<8x128xf32>
    %914 = vector.extract_strided_slice %796 {offsets = [2, 0], sizes = [1, 128], strides = [1, 1]} : vector<8x128xf32> to vector<1x128xf32>
    %915 = vector.broadcast %914 : vector<1x128xf32> to vector<8x128xf32>
    %916 = arith.mulf %891, %915 : vector<8x128xf32>
    %917 = arith.addf %913, %916 : vector<8x128xf32>
    %918 = vector.extract_strided_slice %796 {offsets = [3, 0], sizes = [1, 128], strides = [1, 1]} : vector<8x128xf32> to vector<1x128xf32>
    %919 = vector.broadcast %918 : vector<1x128xf32> to vector<8x128xf32>
    %920 = arith.mulf %894, %919 : vector<8x128xf32>
    %921 = arith.addf %917, %920 : vector<8x128xf32>
    %922 = arith.subf %921, %1 : vector<8x128xf32>
    %923 = vector.extract_strided_slice %796 {offsets = [4, 0], sizes = [1, 128], strides = [1, 1]} : vector<8x128xf32> to vector<1x128xf32>
    %924 = vector.broadcast %923 : vector<1x128xf32> to vector<8x128xf32>
    %925 = arith.mulf %897, %924 : vector<8x128xf32>
    %926 = vector.extract_strided_slice %796 {offsets = [5, 0], sizes = [1, 128], strides = [1, 1]} : vector<8x128xf32> to vector<1x128xf32>
    %927 = vector.broadcast %926 : vector<1x128xf32> to vector<8x128xf32>
    %928 = arith.mulf %900, %927 : vector<8x128xf32>
    %929 = arith.addf %925, %928 : vector<8x128xf32>
    %930 = vector.extract_strided_slice %796 {offsets = [6, 0], sizes = [1, 128], strides = [1, 1]} : vector<8x128xf32> to vector<1x128xf32>
    %931 = vector.broadcast %930 : vector<1x128xf32> to vector<8x128xf32>
    %932 = arith.mulf %903, %931 : vector<8x128xf32>
    %933 = arith.addf %929, %932 : vector<8x128xf32>
    %934 = vector.extract_strided_slice %796 {offsets = [7, 0], sizes = [1, 128], strides = [1, 1]} : vector<8x128xf32> to vector<1x128xf32>
    %935 = vector.broadcast %934 : vector<1x128xf32> to vector<8x128xf32>
    %936 = arith.mulf %906, %935 : vector<8x128xf32>
    %937 = arith.addf %933, %936 : vector<8x128xf32>
    %938 = arith.subf %937, %3 : vector<8x128xf32>
    %939 = vector.extract_strided_slice %922 {offsets = [0, 0], sizes = [1, 128], strides = [1, 1]} : vector<8x128xf32> to vector<1x128xf32>
    %940 = vector.broadcast %939 : vector<1x128xf32> to vector<4x128xf32>
    %941 = arith.mulf %861, %940 : vector<4x128xf32>
    %942 = vector.extract_strided_slice %922 {offsets = [1, 0], sizes = [1, 128], strides = [1, 1]} : vector<8x128xf32> to vector<1x128xf32>
    %943 = vector.broadcast %942 : vector<1x128xf32> to vector<4x128xf32>
    %944 = arith.mulf %864, %943 : vector<4x128xf32>
    %945 = arith.addf %941, %944 : vector<4x128xf32>
    %946 = vector.extract_strided_slice %922 {offsets = [2, 0], sizes = [1, 128], strides = [1, 1]} : vector<8x128xf32> to vector<1x128xf32>
    %947 = vector.broadcast %946 : vector<1x128xf32> to vector<4x128xf32>
    %948 = arith.mulf %867, %947 : vector<4x128xf32>
    %949 = arith.addf %945, %948 : vector<4x128xf32>
    %950 = vector.extract_strided_slice %922 {offsets = [3, 0], sizes = [1, 128], strides = [1, 1]} : vector<8x128xf32> to vector<1x128xf32>
    %951 = vector.broadcast %950 : vector<1x128xf32> to vector<4x128xf32>
    %952 = arith.mulf %870, %951 : vector<4x128xf32>
    %953 = arith.addf %949, %952 : vector<4x128xf32>
    %954 = vector.extract_strided_slice %922 {offsets = [4, 0], sizes = [1, 128], strides = [1, 1]} : vector<8x128xf32> to vector<1x128xf32>
    %955 = vector.broadcast %954 : vector<1x128xf32> to vector<4x128xf32>
    %956 = arith.mulf %873, %955 : vector<4x128xf32>
    %957 = arith.addf %953, %956 : vector<4x128xf32>
    %958 = vector.extract_strided_slice %922 {offsets = [5, 0], sizes = [1, 128], strides = [1, 1]} : vector<8x128xf32> to vector<1x128xf32>
    %959 = vector.broadcast %958 : vector<1x128xf32> to vector<4x128xf32>
    %960 = arith.mulf %876, %959 : vector<4x128xf32>
    %961 = arith.addf %957, %960 : vector<4x128xf32>
    %962 = vector.extract_strided_slice %922 {offsets = [6, 0], sizes = [1, 128], strides = [1, 1]} : vector<8x128xf32> to vector<1x128xf32>
    %963 = vector.broadcast %962 : vector<1x128xf32> to vector<4x128xf32>
    %964 = arith.mulf %879, %963 : vector<4x128xf32>
    %965 = arith.addf %961, %964 : vector<4x128xf32>
    %966 = vector.extract_strided_slice %922 {offsets = [7, 0], sizes = [1, 128], strides = [1, 1]} : vector<8x128xf32> to vector<1x128xf32>
    %967 = vector.broadcast %966 : vector<1x128xf32> to vector<4x128xf32>
    %968 = arith.mulf %882, %967 : vector<4x128xf32>
    %969 = arith.addf %965, %968 : vector<4x128xf32>
    %970 = vector.extract_strided_slice %938 {offsets = [0, 0], sizes = [1, 128], strides = [1, 1]} : vector<8x128xf32> to vector<1x128xf32>
    %971 = vector.broadcast %970 : vector<1x128xf32> to vector<4x128xf32>
    %972 = arith.mulf %861, %971 : vector<4x128xf32>
    %973 = vector.extract_strided_slice %938 {offsets = [1, 0], sizes = [1, 128], strides = [1, 1]} : vector<8x128xf32> to vector<1x128xf32>
    %974 = vector.broadcast %973 : vector<1x128xf32> to vector<4x128xf32>
    %975 = arith.mulf %864, %974 : vector<4x128xf32>
    %976 = arith.addf %972, %975 : vector<4x128xf32>
    %977 = vector.extract_strided_slice %938 {offsets = [2, 0], sizes = [1, 128], strides = [1, 1]} : vector<8x128xf32> to vector<1x128xf32>
    %978 = vector.broadcast %977 : vector<1x128xf32> to vector<4x128xf32>
    %979 = arith.mulf %867, %978 : vector<4x128xf32>
    %980 = arith.addf %976, %979 : vector<4x128xf32>
    %981 = vector.extract_strided_slice %938 {offsets = [3, 0], sizes = [1, 128], strides = [1, 1]} : vector<8x128xf32> to vector<1x128xf32>
    %982 = vector.broadcast %981 : vector<1x128xf32> to vector<4x128xf32>
    %983 = arith.mulf %870, %982 : vector<4x128xf32>
    %984 = arith.addf %980, %983 : vector<4x128xf32>
    %985 = vector.extract_strided_slice %938 {offsets = [4, 0], sizes = [1, 128], strides = [1, 1]} : vector<8x128xf32> to vector<1x128xf32>
    %986 = vector.broadcast %985 : vector<1x128xf32> to vector<4x128xf32>
    %987 = arith.mulf %873, %986 : vector<4x128xf32>
    %988 = arith.addf %984, %987 : vector<4x128xf32>
    %989 = vector.extract_strided_slice %938 {offsets = [5, 0], sizes = [1, 128], strides = [1, 1]} : vector<8x128xf32> to vector<1x128xf32>
    %990 = vector.broadcast %989 : vector<1x128xf32> to vector<4x128xf32>
    %991 = arith.mulf %876, %990 : vector<4x128xf32>
    %992 = arith.addf %988, %991 : vector<4x128xf32>
    %993 = vector.extract_strided_slice %938 {offsets = [6, 0], sizes = [1, 128], strides = [1, 1]} : vector<8x128xf32> to vector<1x128xf32>
    %994 = vector.broadcast %993 : vector<1x128xf32> to vector<4x128xf32>
    %995 = arith.mulf %879, %994 : vector<4x128xf32>
    %996 = arith.addf %992, %995 : vector<4x128xf32>
    %997 = vector.extract_strided_slice %938 {offsets = [7, 0], sizes = [1, 128], strides = [1, 1]} : vector<8x128xf32> to vector<1x128xf32>
    %998 = vector.broadcast %997 : vector<1x128xf32> to vector<4x128xf32>
    %999 = arith.mulf %882, %998 : vector<4x128xf32>
    %1000 = arith.addf %996, %999 : vector<4x128xf32>
    %1001 = tpu.concatenate %969, %1000 in 0 : vector<4x128xf32>, vector<4x128xf32> -> vector<8x128xf32>
    %1002 = arith.subf %796, %1001 : vector<8x128xf32>
    %cst_56 = arith.constant 0.000000e+00 : f32
    %1003 = arith.subf %cst_56, %855 : f32
    %1004 = vector.broadcast %1003 : f32 to vector<8x128xf32>
    %1005 = arith.maximumf %1004, %1002 : vector<8x128xf32>
    %1006 = vector.broadcast %855 : f32 to vector<8x128xf32>
    %1007 = arith.minimumf %1006, %1005 : vector<8x128xf32>
    %1008 = arith.subf %1002, %1007 : vector<8x128xf32>
    %1009 = vector.extract_strided_slice %1008 {offsets = [0, 0], sizes = [1, 128], strides = [1, 1]} : vector<8x128xf32> to vector<1x128xf32>
    %1010 = vector.broadcast %1009 : vector<1x128xf32> to vector<8x128xf32>
    %1011 = arith.mulf %885, %1010 : vector<8x128xf32>
    %1012 = vector.extract_strided_slice %1008 {offsets = [1, 0], sizes = [1, 128], strides = [1, 1]} : vector<8x128xf32> to vector<1x128xf32>
    %1013 = vector.broadcast %1012 : vector<1x128xf32> to vector<8x128xf32>
    %1014 = arith.mulf %888, %1013 : vector<8x128xf32>
    %1015 = arith.addf %1011, %1014 : vector<8x128xf32>
    %1016 = vector.extract_strided_slice %1008 {offsets = [2, 0], sizes = [1, 128], strides = [1, 1]} : vector<8x128xf32> to vector<1x128xf32>
    %1017 = vector.broadcast %1016 : vector<1x128xf32> to vector<8x128xf32>
    %1018 = arith.mulf %891, %1017 : vector<8x128xf32>
    %1019 = arith.addf %1015, %1018 : vector<8x128xf32>
    %1020 = vector.extract_strided_slice %1008 {offsets = [3, 0], sizes = [1, 128], strides = [1, 1]} : vector<8x128xf32> to vector<1x128xf32>
    %1021 = vector.broadcast %1020 : vector<1x128xf32> to vector<8x128xf32>
    %1022 = arith.mulf %894, %1021 : vector<8x128xf32>
    %1023 = arith.addf %1019, %1022 : vector<8x128xf32>
    %1024 = arith.subf %1, %1023 : vector<8x128xf32>
    %1025 = vector.extract_strided_slice %1008 {offsets = [0, 0], sizes = [4, 128], strides = [1, 1]} : vector<8x128xf32> to vector<4x128xf32>
    %cst_57 = arith.constant dense<0.000000e+00> : vector<8x4xf32>
    %1026 = tpu.matmul %1024, %1025, %cst_57 {dimension_numbers = #tpu.dot_dimension_numbers<[1], [1], [0], [0], [0, 0, 1, 0], [], []>} : vector<8x128xf32>, vector<4x128xf32>, vector<8x4xf32> -> vector<8x4xf32>
    %1027 = vector.broadcast %856 : f32 to vector<8x4xf32>
    %1028 = arith.mulf %1027, %1026 : vector<8x4xf32>
    %1029 = arith.addf %852, %1028 : vector<8x4xf32>
    %1030 = vector.extract_strided_slice %1008 {offsets = [4, 0], sizes = [1, 128], strides = [1, 1]} : vector<8x128xf32> to vector<1x128xf32>
    %1031 = vector.broadcast %1030 : vector<1x128xf32> to vector<8x128xf32>
    %1032 = arith.mulf %897, %1031 : vector<8x128xf32>
    %1033 = vector.extract_strided_slice %1008 {offsets = [5, 0], sizes = [1, 128], strides = [1, 1]} : vector<8x128xf32> to vector<1x128xf32>
    %1034 = vector.broadcast %1033 : vector<1x128xf32> to vector<8x128xf32>
    %1035 = arith.mulf %900, %1034 : vector<8x128xf32>
    %1036 = arith.addf %1032, %1035 : vector<8x128xf32>
    %1037 = vector.extract_strided_slice %1008 {offsets = [6, 0], sizes = [1, 128], strides = [1, 1]} : vector<8x128xf32> to vector<1x128xf32>
    %1038 = vector.broadcast %1037 : vector<1x128xf32> to vector<8x128xf32>
    %1039 = arith.mulf %903, %1038 : vector<8x128xf32>
    %1040 = arith.addf %1036, %1039 : vector<8x128xf32>
    %1041 = vector.extract_strided_slice %1008 {offsets = [7, 0], sizes = [1, 128], strides = [1, 1]} : vector<8x128xf32> to vector<1x128xf32>
    %1042 = vector.broadcast %1041 : vector<1x128xf32> to vector<8x128xf32>
    %1043 = arith.mulf %906, %1042 : vector<8x128xf32>
    %1044 = arith.addf %1040, %1043 : vector<8x128xf32>
    %1045 = arith.subf %3, %1044 : vector<8x128xf32>
    %1046 = vector.extract_strided_slice %1008 {offsets = [4, 0], sizes = [4, 128], strides = [1, 1]} : vector<8x128xf32> to vector<4x128xf32>
    %cst_58 = arith.constant dense<0.000000e+00> : vector<8x4xf32>
    %1047 = tpu.matmul %1045, %1046, %cst_58 {dimension_numbers = #tpu.dot_dimension_numbers<[1], [1], [0], [0], [0, 0, 1, 0], [], []>} : vector<8x128xf32>, vector<4x128xf32>, vector<8x4xf32> -> vector<8x4xf32>
    %1048 = vector.broadcast %856 : f32 to vector<8x4xf32>
    %1049 = arith.mulf %1048, %1047 : vector<8x4xf32>
    %1050 = arith.addf %854, %1049 : vector<8x4xf32>
    %1051 = arith.mulf %1029, %1029 : vector<8x4xf32>
    %cst_59 = arith.constant dense<0.000000e+00> : vector<8xf32>
    %1052 = vector.multi_reduction <add>, %1051, %cst_59 [1] : vector<8x4xf32> to vector<8xf32>
    %1053 = vector.shape_cast %1052 : vector<8xf32> to vector<8x1xf32>
    %1054 = arith.mulf %1050, %1050 : vector<8x4xf32>
    %cst_60 = arith.constant dense<0.000000e+00> : vector<8xf32>
    %1055 = vector.multi_reduction <add>, %1054, %cst_60 [1] : vector<8x4xf32> to vector<8xf32>
    %1056 = vector.shape_cast %1055 : vector<8xf32> to vector<8x1xf32>
    %1057 = arith.addf %1053, %1056 : vector<8x1xf32>
    %cst_61 = arith.constant 1.000000e+00 : f32
    %1058 = vector.broadcast %cst_61 : f32 to vector<8x1xf32>
    %1059 = arith.cmpf ogt, %1057, %1058 : vector<8x1xf32>
    %1060 = math.rsqrt %1057 : vector<8x1xf32>
    %cst_62 = arith.constant 1.000000e+00 : f32
    %1061 = vector.broadcast %cst_62 : f32 to vector<8x1xf32>
    %1062 = arith.select %1059, %1060, %1061 : vector<8x1xi1>, vector<8x1xf32>
    %1063 = vector.broadcast %1062 : vector<8x1xf32> to vector<8x4xf32>
    %1064 = arith.mulf %1029, %1063 : vector<8x4xf32>
    %1065 = vector.broadcast %1062 : vector<8x1xf32> to vector<8x4xf32>
    %1066 = arith.mulf %1050, %1065 : vector<8x4xf32>
    %c5 = arith.constant 5 : index
    %1067 = memref.load %arg2[%c5] : memref<10xf32, #tpu.memory_space<smem>>
    %c5_63 = arith.constant 5 : index
    %1068 = memref.load %arg3[%c5_63] : memref<10xf32, #tpu.memory_space<smem>>
    %c5_64 = arith.constant 5 : index
    %c0_65 = arith.constant 0 : index
    %c0_66 = arith.constant 0 : index
    %1069 = vector.load %arg1[%c5_64, %c0_65, %c0_66] : memref<10x4x8xf32, #tpu.memory_space<vmem>>, vector<1x4x8xf32>
    %1070 = vector.shape_cast %1069 : vector<1x4x8xf32> to vector<4x8xf32>
    %1071 = vector.extract_strided_slice %1070 {offsets = [0, 0], sizes = [4, 1], strides = [1, 1]} : vector<4x8xf32> to vector<4x1xf32>
    %1072 = vector.shape_cast %1071 : vector<4x1xf32> to vector<4x1xf32>
    %1073 = vector.broadcast %1072 : vector<4x1xf32> to vector<4x128xf32>
    %1074 = vector.extract_strided_slice %1070 {offsets = [0, 1], sizes = [4, 1], strides = [1, 1]} : vector<4x8xf32> to vector<4x1xf32>
    %1075 = vector.shape_cast %1074 : vector<4x1xf32> to vector<4x1xf32>
    %1076 = vector.broadcast %1075 : vector<4x1xf32> to vector<4x128xf32>
    %1077 = vector.extract_strided_slice %1070 {offsets = [0, 2], sizes = [4, 1], strides = [1, 1]} : vector<4x8xf32> to vector<4x1xf32>
    %1078 = vector.shape_cast %1077 : vector<4x1xf32> to vector<4x1xf32>
    %1079 = vector.broadcast %1078 : vector<4x1xf32> to vector<4x128xf32>
    %1080 = vector.extract_strided_slice %1070 {offsets = [0, 3], sizes = [4, 1], strides = [1, 1]} : vector<4x8xf32> to vector<4x1xf32>
    %1081 = vector.shape_cast %1080 : vector<4x1xf32> to vector<4x1xf32>
    %1082 = vector.broadcast %1081 : vector<4x1xf32> to vector<4x128xf32>
    %1083 = vector.extract_strided_slice %1070 {offsets = [0, 4], sizes = [4, 1], strides = [1, 1]} : vector<4x8xf32> to vector<4x1xf32>
    %1084 = vector.shape_cast %1083 : vector<4x1xf32> to vector<4x1xf32>
    %1085 = vector.broadcast %1084 : vector<4x1xf32> to vector<4x128xf32>
    %1086 = vector.extract_strided_slice %1070 {offsets = [0, 5], sizes = [4, 1], strides = [1, 1]} : vector<4x8xf32> to vector<4x1xf32>
    %1087 = vector.shape_cast %1086 : vector<4x1xf32> to vector<4x1xf32>
    %1088 = vector.broadcast %1087 : vector<4x1xf32> to vector<4x128xf32>
    %1089 = vector.extract_strided_slice %1070 {offsets = [0, 6], sizes = [4, 1], strides = [1, 1]} : vector<4x8xf32> to vector<4x1xf32>
    %1090 = vector.shape_cast %1089 : vector<4x1xf32> to vector<4x1xf32>
    %1091 = vector.broadcast %1090 : vector<4x1xf32> to vector<4x128xf32>
    %1092 = vector.extract_strided_slice %1070 {offsets = [0, 7], sizes = [4, 1], strides = [1, 1]} : vector<4x8xf32> to vector<4x1xf32>
    %1093 = vector.shape_cast %1092 : vector<4x1xf32> to vector<4x1xf32>
    %1094 = vector.broadcast %1093 : vector<4x1xf32> to vector<4x128xf32>
    %1095 = vector.extract_strided_slice %1064 {offsets = [0, 0], sizes = [8, 1], strides = [1, 1]} : vector<8x4xf32> to vector<8x1xf32>
    %1096 = vector.shape_cast %1095 : vector<8x1xf32> to vector<8x1xf32>
    %1097 = vector.broadcast %1096 : vector<8x1xf32> to vector<8x128xf32>
    %1098 = vector.extract_strided_slice %1064 {offsets = [0, 1], sizes = [8, 1], strides = [1, 1]} : vector<8x4xf32> to vector<8x1xf32>
    %1099 = vector.shape_cast %1098 : vector<8x1xf32> to vector<8x1xf32>
    %1100 = vector.broadcast %1099 : vector<8x1xf32> to vector<8x128xf32>
    %1101 = vector.extract_strided_slice %1064 {offsets = [0, 2], sizes = [8, 1], strides = [1, 1]} : vector<8x4xf32> to vector<8x1xf32>
    %1102 = vector.shape_cast %1101 : vector<8x1xf32> to vector<8x1xf32>
    %1103 = vector.broadcast %1102 : vector<8x1xf32> to vector<8x128xf32>
    %1104 = vector.extract_strided_slice %1064 {offsets = [0, 3], sizes = [8, 1], strides = [1, 1]} : vector<8x4xf32> to vector<8x1xf32>
    %1105 = vector.shape_cast %1104 : vector<8x1xf32> to vector<8x1xf32>
    %1106 = vector.broadcast %1105 : vector<8x1xf32> to vector<8x128xf32>
    %1107 = vector.extract_strided_slice %1066 {offsets = [0, 0], sizes = [8, 1], strides = [1, 1]} : vector<8x4xf32> to vector<8x1xf32>
    %1108 = vector.shape_cast %1107 : vector<8x1xf32> to vector<8x1xf32>
    %1109 = vector.broadcast %1108 : vector<8x1xf32> to vector<8x128xf32>
    %1110 = vector.extract_strided_slice %1066 {offsets = [0, 1], sizes = [8, 1], strides = [1, 1]} : vector<8x4xf32> to vector<8x1xf32>
    %1111 = vector.shape_cast %1110 : vector<8x1xf32> to vector<8x1xf32>
    %1112 = vector.broadcast %1111 : vector<8x1xf32> to vector<8x128xf32>
    %1113 = vector.extract_strided_slice %1066 {offsets = [0, 2], sizes = [8, 1], strides = [1, 1]} : vector<8x4xf32> to vector<8x1xf32>
    %1114 = vector.shape_cast %1113 : vector<8x1xf32> to vector<8x1xf32>
    %1115 = vector.broadcast %1114 : vector<8x1xf32> to vector<8x128xf32>
    %1116 = vector.extract_strided_slice %1066 {offsets = [0, 3], sizes = [8, 1], strides = [1, 1]} : vector<8x4xf32> to vector<8x1xf32>
    %1117 = vector.shape_cast %1116 : vector<8x1xf32> to vector<8x1xf32>
    %1118 = vector.broadcast %1117 : vector<8x1xf32> to vector<8x128xf32>
    %1119 = vector.extract_strided_slice %1008 {offsets = [0, 0], sizes = [1, 128], strides = [1, 1]} : vector<8x128xf32> to vector<1x128xf32>
    %1120 = vector.broadcast %1119 : vector<1x128xf32> to vector<8x128xf32>
    %1121 = arith.mulf %1097, %1120 : vector<8x128xf32>
    %1122 = vector.extract_strided_slice %1008 {offsets = [1, 0], sizes = [1, 128], strides = [1, 1]} : vector<8x128xf32> to vector<1x128xf32>
    %1123 = vector.broadcast %1122 : vector<1x128xf32> to vector<8x128xf32>
    %1124 = arith.mulf %1100, %1123 : vector<8x128xf32>
    %1125 = arith.addf %1121, %1124 : vector<8x128xf32>
    %1126 = vector.extract_strided_slice %1008 {offsets = [2, 0], sizes = [1, 128], strides = [1, 1]} : vector<8x128xf32> to vector<1x128xf32>
    %1127 = vector.broadcast %1126 : vector<1x128xf32> to vector<8x128xf32>
    %1128 = arith.mulf %1103, %1127 : vector<8x128xf32>
    %1129 = arith.addf %1125, %1128 : vector<8x128xf32>
    %1130 = vector.extract_strided_slice %1008 {offsets = [3, 0], sizes = [1, 128], strides = [1, 1]} : vector<8x128xf32> to vector<1x128xf32>
    %1131 = vector.broadcast %1130 : vector<1x128xf32> to vector<8x128xf32>
    %1132 = arith.mulf %1106, %1131 : vector<8x128xf32>
    %1133 = arith.addf %1129, %1132 : vector<8x128xf32>
    %1134 = arith.subf %1133, %1 : vector<8x128xf32>
    %1135 = vector.extract_strided_slice %1008 {offsets = [4, 0], sizes = [1, 128], strides = [1, 1]} : vector<8x128xf32> to vector<1x128xf32>
    %1136 = vector.broadcast %1135 : vector<1x128xf32> to vector<8x128xf32>
    %1137 = arith.mulf %1109, %1136 : vector<8x128xf32>
    %1138 = vector.extract_strided_slice %1008 {offsets = [5, 0], sizes = [1, 128], strides = [1, 1]} : vector<8x128xf32> to vector<1x128xf32>
    %1139 = vector.broadcast %1138 : vector<1x128xf32> to vector<8x128xf32>
    %1140 = arith.mulf %1112, %1139 : vector<8x128xf32>
    %1141 = arith.addf %1137, %1140 : vector<8x128xf32>
    %1142 = vector.extract_strided_slice %1008 {offsets = [6, 0], sizes = [1, 128], strides = [1, 1]} : vector<8x128xf32> to vector<1x128xf32>
    %1143 = vector.broadcast %1142 : vector<1x128xf32> to vector<8x128xf32>
    %1144 = arith.mulf %1115, %1143 : vector<8x128xf32>
    %1145 = arith.addf %1141, %1144 : vector<8x128xf32>
    %1146 = vector.extract_strided_slice %1008 {offsets = [7, 0], sizes = [1, 128], strides = [1, 1]} : vector<8x128xf32> to vector<1x128xf32>
    %1147 = vector.broadcast %1146 : vector<1x128xf32> to vector<8x128xf32>
    %1148 = arith.mulf %1118, %1147 : vector<8x128xf32>
    %1149 = arith.addf %1145, %1148 : vector<8x128xf32>
    %1150 = arith.subf %1149, %3 : vector<8x128xf32>
    %1151 = vector.extract_strided_slice %1134 {offsets = [0, 0], sizes = [1, 128], strides = [1, 1]} : vector<8x128xf32> to vector<1x128xf32>
    %1152 = vector.broadcast %1151 : vector<1x128xf32> to vector<4x128xf32>
    %1153 = arith.mulf %1073, %1152 : vector<4x128xf32>
    %1154 = vector.extract_strided_slice %1134 {offsets = [1, 0], sizes = [1, 128], strides = [1, 1]} : vector<8x128xf32> to vector<1x128xf32>
    %1155 = vector.broadcast %1154 : vector<1x128xf32> to vector<4x128xf32>
    %1156 = arith.mulf %1076, %1155 : vector<4x128xf32>
    %1157 = arith.addf %1153, %1156 : vector<4x128xf32>
    %1158 = vector.extract_strided_slice %1134 {offsets = [2, 0], sizes = [1, 128], strides = [1, 1]} : vector<8x128xf32> to vector<1x128xf32>
    %1159 = vector.broadcast %1158 : vector<1x128xf32> to vector<4x128xf32>
    %1160 = arith.mulf %1079, %1159 : vector<4x128xf32>
    %1161 = arith.addf %1157, %1160 : vector<4x128xf32>
    %1162 = vector.extract_strided_slice %1134 {offsets = [3, 0], sizes = [1, 128], strides = [1, 1]} : vector<8x128xf32> to vector<1x128xf32>
    %1163 = vector.broadcast %1162 : vector<1x128xf32> to vector<4x128xf32>
    %1164 = arith.mulf %1082, %1163 : vector<4x128xf32>
    %1165 = arith.addf %1161, %1164 : vector<4x128xf32>
    %1166 = vector.extract_strided_slice %1134 {offsets = [4, 0], sizes = [1, 128], strides = [1, 1]} : vector<8x128xf32> to vector<1x128xf32>
    %1167 = vector.broadcast %1166 : vector<1x128xf32> to vector<4x128xf32>
    %1168 = arith.mulf %1085, %1167 : vector<4x128xf32>
    %1169 = arith.addf %1165, %1168 : vector<4x128xf32>
    %1170 = vector.extract_strided_slice %1134 {offsets = [5, 0], sizes = [1, 128], strides = [1, 1]} : vector<8x128xf32> to vector<1x128xf32>
    %1171 = vector.broadcast %1170 : vector<1x128xf32> to vector<4x128xf32>
    %1172 = arith.mulf %1088, %1171 : vector<4x128xf32>
    %1173 = arith.addf %1169, %1172 : vector<4x128xf32>
    %1174 = vector.extract_strided_slice %1134 {offsets = [6, 0], sizes = [1, 128], strides = [1, 1]} : vector<8x128xf32> to vector<1x128xf32>
    %1175 = vector.broadcast %1174 : vector<1x128xf32> to vector<4x128xf32>
    %1176 = arith.mulf %1091, %1175 : vector<4x128xf32>
    %1177 = arith.addf %1173, %1176 : vector<4x128xf32>
    %1178 = vector.extract_strided_slice %1134 {offsets = [7, 0], sizes = [1, 128], strides = [1, 1]} : vector<8x128xf32> to vector<1x128xf32>
    %1179 = vector.broadcast %1178 : vector<1x128xf32> to vector<4x128xf32>
    %1180 = arith.mulf %1094, %1179 : vector<4x128xf32>
    %1181 = arith.addf %1177, %1180 : vector<4x128xf32>
    %1182 = vector.extract_strided_slice %1150 {offsets = [0, 0], sizes = [1, 128], strides = [1, 1]} : vector<8x128xf32> to vector<1x128xf32>
    %1183 = vector.broadcast %1182 : vector<1x128xf32> to vector<4x128xf32>
    %1184 = arith.mulf %1073, %1183 : vector<4x128xf32>
    %1185 = vector.extract_strided_slice %1150 {offsets = [1, 0], sizes = [1, 128], strides = [1, 1]} : vector<8x128xf32> to vector<1x128xf32>
    %1186 = vector.broadcast %1185 : vector<1x128xf32> to vector<4x128xf32>
    %1187 = arith.mulf %1076, %1186 : vector<4x128xf32>
    %1188 = arith.addf %1184, %1187 : vector<4x128xf32>
    %1189 = vector.extract_strided_slice %1150 {offsets = [2, 0], sizes = [1, 128], strides = [1, 1]} : vector<8x128xf32> to vector<1x128xf32>
    %1190 = vector.broadcast %1189 : vector<1x128xf32> to vector<4x128xf32>
    %1191 = arith.mulf %1079, %1190 : vector<4x128xf32>
    %1192 = arith.addf %1188, %1191 : vector<4x128xf32>
    %1193 = vector.extract_strided_slice %1150 {offsets = [3, 0], sizes = [1, 128], strides = [1, 1]} : vector<8x128xf32> to vector<1x128xf32>
    %1194 = vector.broadcast %1193 : vector<1x128xf32> to vector<4x128xf32>
    %1195 = arith.mulf %1082, %1194 : vector<4x128xf32>
    %1196 = arith.addf %1192, %1195 : vector<4x128xf32>
    %1197 = vector.extract_strided_slice %1150 {offsets = [4, 0], sizes = [1, 128], strides = [1, 1]} : vector<8x128xf32> to vector<1x128xf32>
    %1198 = vector.broadcast %1197 : vector<1x128xf32> to vector<4x128xf32>
    %1199 = arith.mulf %1085, %1198 : vector<4x128xf32>
    %1200 = arith.addf %1196, %1199 : vector<4x128xf32>
    %1201 = vector.extract_strided_slice %1150 {offsets = [5, 0], sizes = [1, 128], strides = [1, 1]} : vector<8x128xf32> to vector<1x128xf32>
    %1202 = vector.broadcast %1201 : vector<1x128xf32> to vector<4x128xf32>
    %1203 = arith.mulf %1088, %1202 : vector<4x128xf32>
    %1204 = arith.addf %1200, %1203 : vector<4x128xf32>
    %1205 = vector.extract_strided_slice %1150 {offsets = [6, 0], sizes = [1, 128], strides = [1, 1]} : vector<8x128xf32> to vector<1x128xf32>
    %1206 = vector.broadcast %1205 : vector<1x128xf32> to vector<4x128xf32>
    %1207 = arith.mulf %1091, %1206 : vector<4x128xf32>
    %1208 = arith.addf %1204, %1207 : vector<4x128xf32>
    %1209 = vector.extract_strided_slice %1150 {offsets = [7, 0], sizes = [1, 128], strides = [1, 1]} : vector<8x128xf32> to vector<1x128xf32>
    %1210 = vector.broadcast %1209 : vector<1x128xf32> to vector<4x128xf32>
    %1211 = arith.mulf %1094, %1210 : vector<4x128xf32>
    %1212 = arith.addf %1208, %1211 : vector<4x128xf32>
    %1213 = tpu.concatenate %1181, %1212 in 0 : vector<4x128xf32>, vector<4x128xf32> -> vector<8x128xf32>
    %1214 = arith.subf %1008, %1213 : vector<8x128xf32>
    %cst_67 = arith.constant 0.000000e+00 : f32
    %1215 = arith.subf %cst_67, %1067 : f32
    %1216 = vector.broadcast %1215 : f32 to vector<8x128xf32>
    %1217 = arith.maximumf %1216, %1214 : vector<8x128xf32>
    %1218 = vector.broadcast %1067 : f32 to vector<8x128xf32>
    %1219 = arith.minimumf %1218, %1217 : vector<8x128xf32>
    %1220 = arith.subf %1214, %1219 : vector<8x128xf32>
    %1221 = vector.extract_strided_slice %1220 {offsets = [0, 0], sizes = [1, 128], strides = [1, 1]} : vector<8x128xf32> to vector<1x128xf32>
    %1222 = vector.broadcast %1221 : vector<1x128xf32> to vector<8x128xf32>
    %1223 = arith.mulf %1097, %1222 : vector<8x128xf32>
    %1224 = vector.extract_strided_slice %1220 {offsets = [1, 0], sizes = [1, 128], strides = [1, 1]} : vector<8x128xf32> to vector<1x128xf32>
    %1225 = vector.broadcast %1224 : vector<1x128xf32> to vector<8x128xf32>
    %1226 = arith.mulf %1100, %1225 : vector<8x128xf32>
    %1227 = arith.addf %1223, %1226 : vector<8x128xf32>
    %1228 = vector.extract_strided_slice %1220 {offsets = [2, 0], sizes = [1, 128], strides = [1, 1]} : vector<8x128xf32> to vector<1x128xf32>
    %1229 = vector.broadcast %1228 : vector<1x128xf32> to vector<8x128xf32>
    %1230 = arith.mulf %1103, %1229 : vector<8x128xf32>
    %1231 = arith.addf %1227, %1230 : vector<8x128xf32>
    %1232 = vector.extract_strided_slice %1220 {offsets = [3, 0], sizes = [1, 128], strides = [1, 1]} : vector<8x128xf32> to vector<1x128xf32>
    %1233 = vector.broadcast %1232 : vector<1x128xf32> to vector<8x128xf32>
    %1234 = arith.mulf %1106, %1233 : vector<8x128xf32>
    %1235 = arith.addf %1231, %1234 : vector<8x128xf32>
    %1236 = arith.subf %1, %1235 : vector<8x128xf32>
    %1237 = vector.extract_strided_slice %1220 {offsets = [0, 0], sizes = [4, 128], strides = [1, 1]} : vector<8x128xf32> to vector<4x128xf32>
    %cst_68 = arith.constant dense<0.000000e+00> : vector<8x4xf32>
    %1238 = tpu.matmul %1236, %1237, %cst_68 {dimension_numbers = #tpu.dot_dimension_numbers<[1], [1], [0], [0], [0, 0, 1, 0], [], []>} : vector<8x128xf32>, vector<4x128xf32>, vector<8x4xf32> -> vector<8x4xf32>
    %1239 = vector.broadcast %1068 : f32 to vector<8x4xf32>
    %1240 = arith.mulf %1239, %1238 : vector<8x4xf32>
    %1241 = arith.addf %1064, %1240 : vector<8x4xf32>
    %1242 = vector.extract_strided_slice %1220 {offsets = [4, 0], sizes = [1, 128], strides = [1, 1]} : vector<8x128xf32> to vector<1x128xf32>
    %1243 = vector.broadcast %1242 : vector<1x128xf32> to vector<8x128xf32>
    %1244 = arith.mulf %1109, %1243 : vector<8x128xf32>
    %1245 = vector.extract_strided_slice %1220 {offsets = [5, 0], sizes = [1, 128], strides = [1, 1]} : vector<8x128xf32> to vector<1x128xf32>
    %1246 = vector.broadcast %1245 : vector<1x128xf32> to vector<8x128xf32>
    %1247 = arith.mulf %1112, %1246 : vector<8x128xf32>
    %1248 = arith.addf %1244, %1247 : vector<8x128xf32>
    %1249 = vector.extract_strided_slice %1220 {offsets = [6, 0], sizes = [1, 128], strides = [1, 1]} : vector<8x128xf32> to vector<1x128xf32>
    %1250 = vector.broadcast %1249 : vector<1x128xf32> to vector<8x128xf32>
    %1251 = arith.mulf %1115, %1250 : vector<8x128xf32>
    %1252 = arith.addf %1248, %1251 : vector<8x128xf32>
    %1253 = vector.extract_strided_slice %1220 {offsets = [7, 0], sizes = [1, 128], strides = [1, 1]} : vector<8x128xf32> to vector<1x128xf32>
    %1254 = vector.broadcast %1253 : vector<1x128xf32> to vector<8x128xf32>
    %1255 = arith.mulf %1118, %1254 : vector<8x128xf32>
    %1256 = arith.addf %1252, %1255 : vector<8x128xf32>
    %1257 = arith.subf %3, %1256 : vector<8x128xf32>
    %1258 = vector.extract_strided_slice %1220 {offsets = [4, 0], sizes = [4, 128], strides = [1, 1]} : vector<8x128xf32> to vector<4x128xf32>
    %cst_69 = arith.constant dense<0.000000e+00> : vector<8x4xf32>
    %1259 = tpu.matmul %1257, %1258, %cst_69 {dimension_numbers = #tpu.dot_dimension_numbers<[1], [1], [0], [0], [0, 0, 1, 0], [], []>} : vector<8x128xf32>, vector<4x128xf32>, vector<8x4xf32> -> vector<8x4xf32>
    %1260 = vector.broadcast %1068 : f32 to vector<8x4xf32>
    %1261 = arith.mulf %1260, %1259 : vector<8x4xf32>
    %1262 = arith.addf %1066, %1261 : vector<8x4xf32>
    %1263 = arith.mulf %1241, %1241 : vector<8x4xf32>
    %cst_70 = arith.constant dense<0.000000e+00> : vector<8xf32>
    %1264 = vector.multi_reduction <add>, %1263, %cst_70 [1] : vector<8x4xf32> to vector<8xf32>
    %1265 = vector.shape_cast %1264 : vector<8xf32> to vector<8x1xf32>
    %1266 = arith.mulf %1262, %1262 : vector<8x4xf32>
    %cst_71 = arith.constant dense<0.000000e+00> : vector<8xf32>
    %1267 = vector.multi_reduction <add>, %1266, %cst_71 [1] : vector<8x4xf32> to vector<8xf32>
    %1268 = vector.shape_cast %1267 : vector<8xf32> to vector<8x1xf32>
    %1269 = arith.addf %1265, %1268 : vector<8x1xf32>
    %cst_72 = arith.constant 1.000000e+00 : f32
    %1270 = vector.broadcast %cst_72 : f32 to vector<8x1xf32>
    %1271 = arith.cmpf ogt, %1269, %1270 : vector<8x1xf32>
    %1272 = math.rsqrt %1269 : vector<8x1xf32>
    %cst_73 = arith.constant 1.000000e+00 : f32
    %1273 = vector.broadcast %cst_73 : f32 to vector<8x1xf32>
    %1274 = arith.select %1271, %1272, %1273 : vector<8x1xi1>, vector<8x1xf32>
    %1275 = vector.broadcast %1274 : vector<8x1xf32> to vector<8x4xf32>
    %1276 = arith.mulf %1241, %1275 : vector<8x4xf32>
    %1277 = vector.broadcast %1274 : vector<8x1xf32> to vector<8x4xf32>
    %1278 = arith.mulf %1262, %1277 : vector<8x4xf32>
    %c6 = arith.constant 6 : index
    %1279 = memref.load %arg2[%c6] : memref<10xf32, #tpu.memory_space<smem>>
    %c6_74 = arith.constant 6 : index
    %1280 = memref.load %arg3[%c6_74] : memref<10xf32, #tpu.memory_space<smem>>
    %c6_75 = arith.constant 6 : index
    %c0_76 = arith.constant 0 : index
    %c0_77 = arith.constant 0 : index
    %1281 = vector.load %arg1[%c6_75, %c0_76, %c0_77] : memref<10x4x8xf32, #tpu.memory_space<vmem>>, vector<1x4x8xf32>
    %1282 = vector.shape_cast %1281 : vector<1x4x8xf32> to vector<4x8xf32>
    %1283 = vector.extract_strided_slice %1282 {offsets = [0, 0], sizes = [4, 1], strides = [1, 1]} : vector<4x8xf32> to vector<4x1xf32>
    %1284 = vector.shape_cast %1283 : vector<4x1xf32> to vector<4x1xf32>
    %1285 = vector.broadcast %1284 : vector<4x1xf32> to vector<4x128xf32>
    %1286 = vector.extract_strided_slice %1282 {offsets = [0, 1], sizes = [4, 1], strides = [1, 1]} : vector<4x8xf32> to vector<4x1xf32>
    %1287 = vector.shape_cast %1286 : vector<4x1xf32> to vector<4x1xf32>
    %1288 = vector.broadcast %1287 : vector<4x1xf32> to vector<4x128xf32>
    %1289 = vector.extract_strided_slice %1282 {offsets = [0, 2], sizes = [4, 1], strides = [1, 1]} : vector<4x8xf32> to vector<4x1xf32>
    %1290 = vector.shape_cast %1289 : vector<4x1xf32> to vector<4x1xf32>
    %1291 = vector.broadcast %1290 : vector<4x1xf32> to vector<4x128xf32>
    %1292 = vector.extract_strided_slice %1282 {offsets = [0, 3], sizes = [4, 1], strides = [1, 1]} : vector<4x8xf32> to vector<4x1xf32>
    %1293 = vector.shape_cast %1292 : vector<4x1xf32> to vector<4x1xf32>
    %1294 = vector.broadcast %1293 : vector<4x1xf32> to vector<4x128xf32>
    %1295 = vector.extract_strided_slice %1282 {offsets = [0, 4], sizes = [4, 1], strides = [1, 1]} : vector<4x8xf32> to vector<4x1xf32>
    %1296 = vector.shape_cast %1295 : vector<4x1xf32> to vector<4x1xf32>
    %1297 = vector.broadcast %1296 : vector<4x1xf32> to vector<4x128xf32>
    %1298 = vector.extract_strided_slice %1282 {offsets = [0, 5], sizes = [4, 1], strides = [1, 1]} : vector<4x8xf32> to vector<4x1xf32>
    %1299 = vector.shape_cast %1298 : vector<4x1xf32> to vector<4x1xf32>
    %1300 = vector.broadcast %1299 : vector<4x1xf32> to vector<4x128xf32>
    %1301 = vector.extract_strided_slice %1282 {offsets = [0, 6], sizes = [4, 1], strides = [1, 1]} : vector<4x8xf32> to vector<4x1xf32>
    %1302 = vector.shape_cast %1301 : vector<4x1xf32> to vector<4x1xf32>
    %1303 = vector.broadcast %1302 : vector<4x1xf32> to vector<4x128xf32>
    %1304 = vector.extract_strided_slice %1282 {offsets = [0, 7], sizes = [4, 1], strides = [1, 1]} : vector<4x8xf32> to vector<4x1xf32>
    %1305 = vector.shape_cast %1304 : vector<4x1xf32> to vector<4x1xf32>
    %1306 = vector.broadcast %1305 : vector<4x1xf32> to vector<4x128xf32>
    %1307 = vector.extract_strided_slice %1276 {offsets = [0, 0], sizes = [8, 1], strides = [1, 1]} : vector<8x4xf32> to vector<8x1xf32>
    %1308 = vector.shape_cast %1307 : vector<8x1xf32> to vector<8x1xf32>
    %1309 = vector.broadcast %1308 : vector<8x1xf32> to vector<8x128xf32>
    %1310 = vector.extract_strided_slice %1276 {offsets = [0, 1], sizes = [8, 1], strides = [1, 1]} : vector<8x4xf32> to vector<8x1xf32>
    %1311 = vector.shape_cast %1310 : vector<8x1xf32> to vector<8x1xf32>
    %1312 = vector.broadcast %1311 : vector<8x1xf32> to vector<8x128xf32>
    %1313 = vector.extract_strided_slice %1276 {offsets = [0, 2], sizes = [8, 1], strides = [1, 1]} : vector<8x4xf32> to vector<8x1xf32>
    %1314 = vector.shape_cast %1313 : vector<8x1xf32> to vector<8x1xf32>
    %1315 = vector.broadcast %1314 : vector<8x1xf32> to vector<8x128xf32>
    %1316 = vector.extract_strided_slice %1276 {offsets = [0, 3], sizes = [8, 1], strides = [1, 1]} : vector<8x4xf32> to vector<8x1xf32>
    %1317 = vector.shape_cast %1316 : vector<8x1xf32> to vector<8x1xf32>
    %1318 = vector.broadcast %1317 : vector<8x1xf32> to vector<8x128xf32>
    %1319 = vector.extract_strided_slice %1278 {offsets = [0, 0], sizes = [8, 1], strides = [1, 1]} : vector<8x4xf32> to vector<8x1xf32>
    %1320 = vector.shape_cast %1319 : vector<8x1xf32> to vector<8x1xf32>
    %1321 = vector.broadcast %1320 : vector<8x1xf32> to vector<8x128xf32>
    %1322 = vector.extract_strided_slice %1278 {offsets = [0, 1], sizes = [8, 1], strides = [1, 1]} : vector<8x4xf32> to vector<8x1xf32>
    %1323 = vector.shape_cast %1322 : vector<8x1xf32> to vector<8x1xf32>
    %1324 = vector.broadcast %1323 : vector<8x1xf32> to vector<8x128xf32>
    %1325 = vector.extract_strided_slice %1278 {offsets = [0, 2], sizes = [8, 1], strides = [1, 1]} : vector<8x4xf32> to vector<8x1xf32>
    %1326 = vector.shape_cast %1325 : vector<8x1xf32> to vector<8x1xf32>
    %1327 = vector.broadcast %1326 : vector<8x1xf32> to vector<8x128xf32>
    %1328 = vector.extract_strided_slice %1278 {offsets = [0, 3], sizes = [8, 1], strides = [1, 1]} : vector<8x4xf32> to vector<8x1xf32>
    %1329 = vector.shape_cast %1328 : vector<8x1xf32> to vector<8x1xf32>
    %1330 = vector.broadcast %1329 : vector<8x1xf32> to vector<8x128xf32>
    %1331 = vector.extract_strided_slice %1220 {offsets = [0, 0], sizes = [1, 128], strides = [1, 1]} : vector<8x128xf32> to vector<1x128xf32>
    %1332 = vector.broadcast %1331 : vector<1x128xf32> to vector<8x128xf32>
    %1333 = arith.mulf %1309, %1332 : vector<8x128xf32>
    %1334 = vector.extract_strided_slice %1220 {offsets = [1, 0], sizes = [1, 128], strides = [1, 1]} : vector<8x128xf32> to vector<1x128xf32>
    %1335 = vector.broadcast %1334 : vector<1x128xf32> to vector<8x128xf32>
    %1336 = arith.mulf %1312, %1335 : vector<8x128xf32>
    %1337 = arith.addf %1333, %1336 : vector<8x128xf32>
    %1338 = vector.extract_strided_slice %1220 {offsets = [2, 0], sizes = [1, 128], strides = [1, 1]} : vector<8x128xf32> to vector<1x128xf32>
    %1339 = vector.broadcast %1338 : vector<1x128xf32> to vector<8x128xf32>
    %1340 = arith.mulf %1315, %1339 : vector<8x128xf32>
    %1341 = arith.addf %1337, %1340 : vector<8x128xf32>
    %1342 = vector.extract_strided_slice %1220 {offsets = [3, 0], sizes = [1, 128], strides = [1, 1]} : vector<8x128xf32> to vector<1x128xf32>
    %1343 = vector.broadcast %1342 : vector<1x128xf32> to vector<8x128xf32>
    %1344 = arith.mulf %1318, %1343 : vector<8x128xf32>
    %1345 = arith.addf %1341, %1344 : vector<8x128xf32>
    %1346 = arith.subf %1345, %1 : vector<8x128xf32>
    %1347 = vector.extract_strided_slice %1220 {offsets = [4, 0], sizes = [1, 128], strides = [1, 1]} : vector<8x128xf32> to vector<1x128xf32>
    %1348 = vector.broadcast %1347 : vector<1x128xf32> to vector<8x128xf32>
    %1349 = arith.mulf %1321, %1348 : vector<8x128xf32>
    %1350 = vector.extract_strided_slice %1220 {offsets = [5, 0], sizes = [1, 128], strides = [1, 1]} : vector<8x128xf32> to vector<1x128xf32>
    %1351 = vector.broadcast %1350 : vector<1x128xf32> to vector<8x128xf32>
    %1352 = arith.mulf %1324, %1351 : vector<8x128xf32>
    %1353 = arith.addf %1349, %1352 : vector<8x128xf32>
    %1354 = vector.extract_strided_slice %1220 {offsets = [6, 0], sizes = [1, 128], strides = [1, 1]} : vector<8x128xf32> to vector<1x128xf32>
    %1355 = vector.broadcast %1354 : vector<1x128xf32> to vector<8x128xf32>
    %1356 = arith.mulf %1327, %1355 : vector<8x128xf32>
    %1357 = arith.addf %1353, %1356 : vector<8x128xf32>
    %1358 = vector.extract_strided_slice %1220 {offsets = [7, 0], sizes = [1, 128], strides = [1, 1]} : vector<8x128xf32> to vector<1x128xf32>
    %1359 = vector.broadcast %1358 : vector<1x128xf32> to vector<8x128xf32>
    %1360 = arith.mulf %1330, %1359 : vector<8x128xf32>
    %1361 = arith.addf %1357, %1360 : vector<8x128xf32>
    %1362 = arith.subf %1361, %3 : vector<8x128xf32>
    %1363 = vector.extract_strided_slice %1346 {offsets = [0, 0], sizes = [1, 128], strides = [1, 1]} : vector<8x128xf32> to vector<1x128xf32>
    %1364 = vector.broadcast %1363 : vector<1x128xf32> to vector<4x128xf32>
    %1365 = arith.mulf %1285, %1364 : vector<4x128xf32>
    %1366 = vector.extract_strided_slice %1346 {offsets = [1, 0], sizes = [1, 128], strides = [1, 1]} : vector<8x128xf32> to vector<1x128xf32>
    %1367 = vector.broadcast %1366 : vector<1x128xf32> to vector<4x128xf32>
    %1368 = arith.mulf %1288, %1367 : vector<4x128xf32>
    %1369 = arith.addf %1365, %1368 : vector<4x128xf32>
    %1370 = vector.extract_strided_slice %1346 {offsets = [2, 0], sizes = [1, 128], strides = [1, 1]} : vector<8x128xf32> to vector<1x128xf32>
    %1371 = vector.broadcast %1370 : vector<1x128xf32> to vector<4x128xf32>
    %1372 = arith.mulf %1291, %1371 : vector<4x128xf32>
    %1373 = arith.addf %1369, %1372 : vector<4x128xf32>
    %1374 = vector.extract_strided_slice %1346 {offsets = [3, 0], sizes = [1, 128], strides = [1, 1]} : vector<8x128xf32> to vector<1x128xf32>
    %1375 = vector.broadcast %1374 : vector<1x128xf32> to vector<4x128xf32>
    %1376 = arith.mulf %1294, %1375 : vector<4x128xf32>
    %1377 = arith.addf %1373, %1376 : vector<4x128xf32>
    %1378 = vector.extract_strided_slice %1346 {offsets = [4, 0], sizes = [1, 128], strides = [1, 1]} : vector<8x128xf32> to vector<1x128xf32>
    %1379 = vector.broadcast %1378 : vector<1x128xf32> to vector<4x128xf32>
    %1380 = arith.mulf %1297, %1379 : vector<4x128xf32>
    %1381 = arith.addf %1377, %1380 : vector<4x128xf32>
    %1382 = vector.extract_strided_slice %1346 {offsets = [5, 0], sizes = [1, 128], strides = [1, 1]} : vector<8x128xf32> to vector<1x128xf32>
    %1383 = vector.broadcast %1382 : vector<1x128xf32> to vector<4x128xf32>
    %1384 = arith.mulf %1300, %1383 : vector<4x128xf32>
    %1385 = arith.addf %1381, %1384 : vector<4x128xf32>
    %1386 = vector.extract_strided_slice %1346 {offsets = [6, 0], sizes = [1, 128], strides = [1, 1]} : vector<8x128xf32> to vector<1x128xf32>
    %1387 = vector.broadcast %1386 : vector<1x128xf32> to vector<4x128xf32>
    %1388 = arith.mulf %1303, %1387 : vector<4x128xf32>
    %1389 = arith.addf %1385, %1388 : vector<4x128xf32>
    %1390 = vector.extract_strided_slice %1346 {offsets = [7, 0], sizes = [1, 128], strides = [1, 1]} : vector<8x128xf32> to vector<1x128xf32>
    %1391 = vector.broadcast %1390 : vector<1x128xf32> to vector<4x128xf32>
    %1392 = arith.mulf %1306, %1391 : vector<4x128xf32>
    %1393 = arith.addf %1389, %1392 : vector<4x128xf32>
    %1394 = vector.extract_strided_slice %1362 {offsets = [0, 0], sizes = [1, 128], strides = [1, 1]} : vector<8x128xf32> to vector<1x128xf32>
    %1395 = vector.broadcast %1394 : vector<1x128xf32> to vector<4x128xf32>
    %1396 = arith.mulf %1285, %1395 : vector<4x128xf32>
    %1397 = vector.extract_strided_slice %1362 {offsets = [1, 0], sizes = [1, 128], strides = [1, 1]} : vector<8x128xf32> to vector<1x128xf32>
    %1398 = vector.broadcast %1397 : vector<1x128xf32> to vector<4x128xf32>
    %1399 = arith.mulf %1288, %1398 : vector<4x128xf32>
    %1400 = arith.addf %1396, %1399 : vector<4x128xf32>
    %1401 = vector.extract_strided_slice %1362 {offsets = [2, 0], sizes = [1, 128], strides = [1, 1]} : vector<8x128xf32> to vector<1x128xf32>
    %1402 = vector.broadcast %1401 : vector<1x128xf32> to vector<4x128xf32>
    %1403 = arith.mulf %1291, %1402 : vector<4x128xf32>
    %1404 = arith.addf %1400, %1403 : vector<4x128xf32>
    %1405 = vector.extract_strided_slice %1362 {offsets = [3, 0], sizes = [1, 128], strides = [1, 1]} : vector<8x128xf32> to vector<1x128xf32>
    %1406 = vector.broadcast %1405 : vector<1x128xf32> to vector<4x128xf32>
    %1407 = arith.mulf %1294, %1406 : vector<4x128xf32>
    %1408 = arith.addf %1404, %1407 : vector<4x128xf32>
    %1409 = vector.extract_strided_slice %1362 {offsets = [4, 0], sizes = [1, 128], strides = [1, 1]} : vector<8x128xf32> to vector<1x128xf32>
    %1410 = vector.broadcast %1409 : vector<1x128xf32> to vector<4x128xf32>
    %1411 = arith.mulf %1297, %1410 : vector<4x128xf32>
    %1412 = arith.addf %1408, %1411 : vector<4x128xf32>
    %1413 = vector.extract_strided_slice %1362 {offsets = [5, 0], sizes = [1, 128], strides = [1, 1]} : vector<8x128xf32> to vector<1x128xf32>
    %1414 = vector.broadcast %1413 : vector<1x128xf32> to vector<4x128xf32>
    %1415 = arith.mulf %1300, %1414 : vector<4x128xf32>
    %1416 = arith.addf %1412, %1415 : vector<4x128xf32>
    %1417 = vector.extract_strided_slice %1362 {offsets = [6, 0], sizes = [1, 128], strides = [1, 1]} : vector<8x128xf32> to vector<1x128xf32>
    %1418 = vector.broadcast %1417 : vector<1x128xf32> to vector<4x128xf32>
    %1419 = arith.mulf %1303, %1418 : vector<4x128xf32>
    %1420 = arith.addf %1416, %1419 : vector<4x128xf32>
    %1421 = vector.extract_strided_slice %1362 {offsets = [7, 0], sizes = [1, 128], strides = [1, 1]} : vector<8x128xf32> to vector<1x128xf32>
    %1422 = vector.broadcast %1421 : vector<1x128xf32> to vector<4x128xf32>
    %1423 = arith.mulf %1306, %1422 : vector<4x128xf32>
    %1424 = arith.addf %1420, %1423 : vector<4x128xf32>
    %1425 = tpu.concatenate %1393, %1424 in 0 : vector<4x128xf32>, vector<4x128xf32> -> vector<8x128xf32>
    %1426 = arith.subf %1220, %1425 : vector<8x128xf32>
    %cst_78 = arith.constant 0.000000e+00 : f32
    %1427 = arith.subf %cst_78, %1279 : f32
    %1428 = vector.broadcast %1427 : f32 to vector<8x128xf32>
    %1429 = arith.maximumf %1428, %1426 : vector<8x128xf32>
    %1430 = vector.broadcast %1279 : f32 to vector<8x128xf32>
    %1431 = arith.minimumf %1430, %1429 : vector<8x128xf32>
    %1432 = arith.subf %1426, %1431 : vector<8x128xf32>
    %1433 = vector.extract_strided_slice %1432 {offsets = [0, 0], sizes = [1, 128], strides = [1, 1]} : vector<8x128xf32> to vector<1x128xf32>
    %1434 = vector.broadcast %1433 : vector<1x128xf32> to vector<8x128xf32>
    %1435 = arith.mulf %1309, %1434 : vector<8x128xf32>
    %1436 = vector.extract_strided_slice %1432 {offsets = [1, 0], sizes = [1, 128], strides = [1, 1]} : vector<8x128xf32> to vector<1x128xf32>
    %1437 = vector.broadcast %1436 : vector<1x128xf32> to vector<8x128xf32>
    %1438 = arith.mulf %1312, %1437 : vector<8x128xf32>
    %1439 = arith.addf %1435, %1438 : vector<8x128xf32>
    %1440 = vector.extract_strided_slice %1432 {offsets = [2, 0], sizes = [1, 128], strides = [1, 1]} : vector<8x128xf32> to vector<1x128xf32>
    %1441 = vector.broadcast %1440 : vector<1x128xf32> to vector<8x128xf32>
    %1442 = arith.mulf %1315, %1441 : vector<8x128xf32>
    %1443 = arith.addf %1439, %1442 : vector<8x128xf32>
    %1444 = vector.extract_strided_slice %1432 {offsets = [3, 0], sizes = [1, 128], strides = [1, 1]} : vector<8x128xf32> to vector<1x128xf32>
    %1445 = vector.broadcast %1444 : vector<1x128xf32> to vector<8x128xf32>
    %1446 = arith.mulf %1318, %1445 : vector<8x128xf32>
    %1447 = arith.addf %1443, %1446 : vector<8x128xf32>
    %1448 = arith.subf %1, %1447 : vector<8x128xf32>
    %1449 = vector.extract_strided_slice %1432 {offsets = [0, 0], sizes = [4, 128], strides = [1, 1]} : vector<8x128xf32> to vector<4x128xf32>
    %cst_79 = arith.constant dense<0.000000e+00> : vector<8x4xf32>
    %1450 = tpu.matmul %1448, %1449, %cst_79 {dimension_numbers = #tpu.dot_dimension_numbers<[1], [1], [0], [0], [0, 0, 1, 0], [], []>} : vector<8x128xf32>, vector<4x128xf32>, vector<8x4xf32> -> vector<8x4xf32>
    %1451 = vector.broadcast %1280 : f32 to vector<8x4xf32>
    %1452 = arith.mulf %1451, %1450 : vector<8x4xf32>
    %1453 = arith.addf %1276, %1452 : vector<8x4xf32>
    %1454 = vector.extract_strided_slice %1432 {offsets = [4, 0], sizes = [1, 128], strides = [1, 1]} : vector<8x128xf32> to vector<1x128xf32>
    %1455 = vector.broadcast %1454 : vector<1x128xf32> to vector<8x128xf32>
    %1456 = arith.mulf %1321, %1455 : vector<8x128xf32>
    %1457 = vector.extract_strided_slice %1432 {offsets = [5, 0], sizes = [1, 128], strides = [1, 1]} : vector<8x128xf32> to vector<1x128xf32>
    %1458 = vector.broadcast %1457 : vector<1x128xf32> to vector<8x128xf32>
    %1459 = arith.mulf %1324, %1458 : vector<8x128xf32>
    %1460 = arith.addf %1456, %1459 : vector<8x128xf32>
    %1461 = vector.extract_strided_slice %1432 {offsets = [6, 0], sizes = [1, 128], strides = [1, 1]} : vector<8x128xf32> to vector<1x128xf32>
    %1462 = vector.broadcast %1461 : vector<1x128xf32> to vector<8x128xf32>
    %1463 = arith.mulf %1327, %1462 : vector<8x128xf32>
    %1464 = arith.addf %1460, %1463 : vector<8x128xf32>
    %1465 = vector.extract_strided_slice %1432 {offsets = [7, 0], sizes = [1, 128], strides = [1, 1]} : vector<8x128xf32> to vector<1x128xf32>
    %1466 = vector.broadcast %1465 : vector<1x128xf32> to vector<8x128xf32>
    %1467 = arith.mulf %1330, %1466 : vector<8x128xf32>
    %1468 = arith.addf %1464, %1467 : vector<8x128xf32>
    %1469 = arith.subf %3, %1468 : vector<8x128xf32>
    %1470 = vector.extract_strided_slice %1432 {offsets = [4, 0], sizes = [4, 128], strides = [1, 1]} : vector<8x128xf32> to vector<4x128xf32>
    %cst_80 = arith.constant dense<0.000000e+00> : vector<8x4xf32>
    %1471 = tpu.matmul %1469, %1470, %cst_80 {dimension_numbers = #tpu.dot_dimension_numbers<[1], [1], [0], [0], [0, 0, 1, 0], [], []>} : vector<8x128xf32>, vector<4x128xf32>, vector<8x4xf32> -> vector<8x4xf32>
    %1472 = vector.broadcast %1280 : f32 to vector<8x4xf32>
    %1473 = arith.mulf %1472, %1471 : vector<8x4xf32>
    %1474 = arith.addf %1278, %1473 : vector<8x4xf32>
    %1475 = arith.mulf %1453, %1453 : vector<8x4xf32>
    %cst_81 = arith.constant dense<0.000000e+00> : vector<8xf32>
    %1476 = vector.multi_reduction <add>, %1475, %cst_81 [1] : vector<8x4xf32> to vector<8xf32>
    %1477 = vector.shape_cast %1476 : vector<8xf32> to vector<8x1xf32>
    %1478 = arith.mulf %1474, %1474 : vector<8x4xf32>
    %cst_82 = arith.constant dense<0.000000e+00> : vector<8xf32>
    %1479 = vector.multi_reduction <add>, %1478, %cst_82 [1] : vector<8x4xf32> to vector<8xf32>
    %1480 = vector.shape_cast %1479 : vector<8xf32> to vector<8x1xf32>
    %1481 = arith.addf %1477, %1480 : vector<8x1xf32>
    %cst_83 = arith.constant 1.000000e+00 : f32
    %1482 = vector.broadcast %cst_83 : f32 to vector<8x1xf32>
    %1483 = arith.cmpf ogt, %1481, %1482 : vector<8x1xf32>
    %1484 = math.rsqrt %1481 : vector<8x1xf32>
    %cst_84 = arith.constant 1.000000e+00 : f32
    %1485 = vector.broadcast %cst_84 : f32 to vector<8x1xf32>
    %1486 = arith.select %1483, %1484, %1485 : vector<8x1xi1>, vector<8x1xf32>
    %1487 = vector.broadcast %1486 : vector<8x1xf32> to vector<8x4xf32>
    %1488 = arith.mulf %1453, %1487 : vector<8x4xf32>
    %1489 = vector.broadcast %1486 : vector<8x1xf32> to vector<8x4xf32>
    %1490 = arith.mulf %1474, %1489 : vector<8x4xf32>
    %c7 = arith.constant 7 : index
    %1491 = memref.load %arg2[%c7] : memref<10xf32, #tpu.memory_space<smem>>
    %c7_85 = arith.constant 7 : index
    %1492 = memref.load %arg3[%c7_85] : memref<10xf32, #tpu.memory_space<smem>>
    %c7_86 = arith.constant 7 : index
    %c0_87 = arith.constant 0 : index
    %c0_88 = arith.constant 0 : index
    %1493 = vector.load %arg1[%c7_86, %c0_87, %c0_88] : memref<10x4x8xf32, #tpu.memory_space<vmem>>, vector<1x4x8xf32>
    %1494 = vector.shape_cast %1493 : vector<1x4x8xf32> to vector<4x8xf32>
    %1495 = vector.extract_strided_slice %1494 {offsets = [0, 0], sizes = [4, 1], strides = [1, 1]} : vector<4x8xf32> to vector<4x1xf32>
    %1496 = vector.shape_cast %1495 : vector<4x1xf32> to vector<4x1xf32>
    %1497 = vector.broadcast %1496 : vector<4x1xf32> to vector<4x128xf32>
    %1498 = vector.extract_strided_slice %1494 {offsets = [0, 1], sizes = [4, 1], strides = [1, 1]} : vector<4x8xf32> to vector<4x1xf32>
    %1499 = vector.shape_cast %1498 : vector<4x1xf32> to vector<4x1xf32>
    %1500 = vector.broadcast %1499 : vector<4x1xf32> to vector<4x128xf32>
    %1501 = vector.extract_strided_slice %1494 {offsets = [0, 2], sizes = [4, 1], strides = [1, 1]} : vector<4x8xf32> to vector<4x1xf32>
    %1502 = vector.shape_cast %1501 : vector<4x1xf32> to vector<4x1xf32>
    %1503 = vector.broadcast %1502 : vector<4x1xf32> to vector<4x128xf32>
    %1504 = vector.extract_strided_slice %1494 {offsets = [0, 3], sizes = [4, 1], strides = [1, 1]} : vector<4x8xf32> to vector<4x1xf32>
    %1505 = vector.shape_cast %1504 : vector<4x1xf32> to vector<4x1xf32>
    %1506 = vector.broadcast %1505 : vector<4x1xf32> to vector<4x128xf32>
    %1507 = vector.extract_strided_slice %1494 {offsets = [0, 4], sizes = [4, 1], strides = [1, 1]} : vector<4x8xf32> to vector<4x1xf32>
    %1508 = vector.shape_cast %1507 : vector<4x1xf32> to vector<4x1xf32>
    %1509 = vector.broadcast %1508 : vector<4x1xf32> to vector<4x128xf32>
    %1510 = vector.extract_strided_slice %1494 {offsets = [0, 5], sizes = [4, 1], strides = [1, 1]} : vector<4x8xf32> to vector<4x1xf32>
    %1511 = vector.shape_cast %1510 : vector<4x1xf32> to vector<4x1xf32>
    %1512 = vector.broadcast %1511 : vector<4x1xf32> to vector<4x128xf32>
    %1513 = vector.extract_strided_slice %1494 {offsets = [0, 6], sizes = [4, 1], strides = [1, 1]} : vector<4x8xf32> to vector<4x1xf32>
    %1514 = vector.shape_cast %1513 : vector<4x1xf32> to vector<4x1xf32>
    %1515 = vector.broadcast %1514 : vector<4x1xf32> to vector<4x128xf32>
    %1516 = vector.extract_strided_slice %1494 {offsets = [0, 7], sizes = [4, 1], strides = [1, 1]} : vector<4x8xf32> to vector<4x1xf32>
    %1517 = vector.shape_cast %1516 : vector<4x1xf32> to vector<4x1xf32>
    %1518 = vector.broadcast %1517 : vector<4x1xf32> to vector<4x128xf32>
    %1519 = vector.extract_strided_slice %1488 {offsets = [0, 0], sizes = [8, 1], strides = [1, 1]} : vector<8x4xf32> to vector<8x1xf32>
    %1520 = vector.shape_cast %1519 : vector<8x1xf32> to vector<8x1xf32>
    %1521 = vector.broadcast %1520 : vector<8x1xf32> to vector<8x128xf32>
    %1522 = vector.extract_strided_slice %1488 {offsets = [0, 1], sizes = [8, 1], strides = [1, 1]} : vector<8x4xf32> to vector<8x1xf32>
    %1523 = vector.shape_cast %1522 : vector<8x1xf32> to vector<8x1xf32>
    %1524 = vector.broadcast %1523 : vector<8x1xf32> to vector<8x128xf32>
    %1525 = vector.extract_strided_slice %1488 {offsets = [0, 2], sizes = [8, 1], strides = [1, 1]} : vector<8x4xf32> to vector<8x1xf32>
    %1526 = vector.shape_cast %1525 : vector<8x1xf32> to vector<8x1xf32>
    %1527 = vector.broadcast %1526 : vector<8x1xf32> to vector<8x128xf32>
    %1528 = vector.extract_strided_slice %1488 {offsets = [0, 3], sizes = [8, 1], strides = [1, 1]} : vector<8x4xf32> to vector<8x1xf32>
    %1529 = vector.shape_cast %1528 : vector<8x1xf32> to vector<8x1xf32>
    %1530 = vector.broadcast %1529 : vector<8x1xf32> to vector<8x128xf32>
    %1531 = vector.extract_strided_slice %1490 {offsets = [0, 0], sizes = [8, 1], strides = [1, 1]} : vector<8x4xf32> to vector<8x1xf32>
    %1532 = vector.shape_cast %1531 : vector<8x1xf32> to vector<8x1xf32>
    %1533 = vector.broadcast %1532 : vector<8x1xf32> to vector<8x128xf32>
    %1534 = vector.extract_strided_slice %1490 {offsets = [0, 1], sizes = [8, 1], strides = [1, 1]} : vector<8x4xf32> to vector<8x1xf32>
    %1535 = vector.shape_cast %1534 : vector<8x1xf32> to vector<8x1xf32>
    %1536 = vector.broadcast %1535 : vector<8x1xf32> to vector<8x128xf32>
    %1537 = vector.extract_strided_slice %1490 {offsets = [0, 2], sizes = [8, 1], strides = [1, 1]} : vector<8x4xf32> to vector<8x1xf32>
    %1538 = vector.shape_cast %1537 : vector<8x1xf32> to vector<8x1xf32>
    %1539 = vector.broadcast %1538 : vector<8x1xf32> to vector<8x128xf32>
    %1540 = vector.extract_strided_slice %1490 {offsets = [0, 3], sizes = [8, 1], strides = [1, 1]} : vector<8x4xf32> to vector<8x1xf32>
    %1541 = vector.shape_cast %1540 : vector<8x1xf32> to vector<8x1xf32>
    %1542 = vector.broadcast %1541 : vector<8x1xf32> to vector<8x128xf32>
    %1543 = vector.extract_strided_slice %1432 {offsets = [0, 0], sizes = [1, 128], strides = [1, 1]} : vector<8x128xf32> to vector<1x128xf32>
    %1544 = vector.broadcast %1543 : vector<1x128xf32> to vector<8x128xf32>
    %1545 = arith.mulf %1521, %1544 : vector<8x128xf32>
    %1546 = vector.extract_strided_slice %1432 {offsets = [1, 0], sizes = [1, 128], strides = [1, 1]} : vector<8x128xf32> to vector<1x128xf32>
    %1547 = vector.broadcast %1546 : vector<1x128xf32> to vector<8x128xf32>
    %1548 = arith.mulf %1524, %1547 : vector<8x128xf32>
    %1549 = arith.addf %1545, %1548 : vector<8x128xf32>
    %1550 = vector.extract_strided_slice %1432 {offsets = [2, 0], sizes = [1, 128], strides = [1, 1]} : vector<8x128xf32> to vector<1x128xf32>
    %1551 = vector.broadcast %1550 : vector<1x128xf32> to vector<8x128xf32>
    %1552 = arith.mulf %1527, %1551 : vector<8x128xf32>
    %1553 = arith.addf %1549, %1552 : vector<8x128xf32>
    %1554 = vector.extract_strided_slice %1432 {offsets = [3, 0], sizes = [1, 128], strides = [1, 1]} : vector<8x128xf32> to vector<1x128xf32>
    %1555 = vector.broadcast %1554 : vector<1x128xf32> to vector<8x128xf32>
    %1556 = arith.mulf %1530, %1555 : vector<8x128xf32>
    %1557 = arith.addf %1553, %1556 : vector<8x128xf32>
    %1558 = arith.subf %1557, %1 : vector<8x128xf32>
    %1559 = vector.extract_strided_slice %1432 {offsets = [4, 0], sizes = [1, 128], strides = [1, 1]} : vector<8x128xf32> to vector<1x128xf32>
    %1560 = vector.broadcast %1559 : vector<1x128xf32> to vector<8x128xf32>
    %1561 = arith.mulf %1533, %1560 : vector<8x128xf32>
    %1562 = vector.extract_strided_slice %1432 {offsets = [5, 0], sizes = [1, 128], strides = [1, 1]} : vector<8x128xf32> to vector<1x128xf32>
    %1563 = vector.broadcast %1562 : vector<1x128xf32> to vector<8x128xf32>
    %1564 = arith.mulf %1536, %1563 : vector<8x128xf32>
    %1565 = arith.addf %1561, %1564 : vector<8x128xf32>
    %1566 = vector.extract_strided_slice %1432 {offsets = [6, 0], sizes = [1, 128], strides = [1, 1]} : vector<8x128xf32> to vector<1x128xf32>
    %1567 = vector.broadcast %1566 : vector<1x128xf32> to vector<8x128xf32>
    %1568 = arith.mulf %1539, %1567 : vector<8x128xf32>
    %1569 = arith.addf %1565, %1568 : vector<8x128xf32>
    %1570 = vector.extract_strided_slice %1432 {offsets = [7, 0], sizes = [1, 128], strides = [1, 1]} : vector<8x128xf32> to vector<1x128xf32>
    %1571 = vector.broadcast %1570 : vector<1x128xf32> to vector<8x128xf32>
    %1572 = arith.mulf %1542, %1571 : vector<8x128xf32>
    %1573 = arith.addf %1569, %1572 : vector<8x128xf32>
    %1574 = arith.subf %1573, %3 : vector<8x128xf32>
    %1575 = vector.extract_strided_slice %1558 {offsets = [0, 0], sizes = [1, 128], strides = [1, 1]} : vector<8x128xf32> to vector<1x128xf32>
    %1576 = vector.broadcast %1575 : vector<1x128xf32> to vector<4x128xf32>
    %1577 = arith.mulf %1497, %1576 : vector<4x128xf32>
    %1578 = vector.extract_strided_slice %1558 {offsets = [1, 0], sizes = [1, 128], strides = [1, 1]} : vector<8x128xf32> to vector<1x128xf32>
    %1579 = vector.broadcast %1578 : vector<1x128xf32> to vector<4x128xf32>
    %1580 = arith.mulf %1500, %1579 : vector<4x128xf32>
    %1581 = arith.addf %1577, %1580 : vector<4x128xf32>
    %1582 = vector.extract_strided_slice %1558 {offsets = [2, 0], sizes = [1, 128], strides = [1, 1]} : vector<8x128xf32> to vector<1x128xf32>
    %1583 = vector.broadcast %1582 : vector<1x128xf32> to vector<4x128xf32>
    %1584 = arith.mulf %1503, %1583 : vector<4x128xf32>
    %1585 = arith.addf %1581, %1584 : vector<4x128xf32>
    %1586 = vector.extract_strided_slice %1558 {offsets = [3, 0], sizes = [1, 128], strides = [1, 1]} : vector<8x128xf32> to vector<1x128xf32>
    %1587 = vector.broadcast %1586 : vector<1x128xf32> to vector<4x128xf32>
    %1588 = arith.mulf %1506, %1587 : vector<4x128xf32>
    %1589 = arith.addf %1585, %1588 : vector<4x128xf32>
    %1590 = vector.extract_strided_slice %1558 {offsets = [4, 0], sizes = [1, 128], strides = [1, 1]} : vector<8x128xf32> to vector<1x128xf32>
    %1591 = vector.broadcast %1590 : vector<1x128xf32> to vector<4x128xf32>
    %1592 = arith.mulf %1509, %1591 : vector<4x128xf32>
    %1593 = arith.addf %1589, %1592 : vector<4x128xf32>
    %1594 = vector.extract_strided_slice %1558 {offsets = [5, 0], sizes = [1, 128], strides = [1, 1]} : vector<8x128xf32> to vector<1x128xf32>
    %1595 = vector.broadcast %1594 : vector<1x128xf32> to vector<4x128xf32>
    %1596 = arith.mulf %1512, %1595 : vector<4x128xf32>
    %1597 = arith.addf %1593, %1596 : vector<4x128xf32>
    %1598 = vector.extract_strided_slice %1558 {offsets = [6, 0], sizes = [1, 128], strides = [1, 1]} : vector<8x128xf32> to vector<1x128xf32>
    %1599 = vector.broadcast %1598 : vector<1x128xf32> to vector<4x128xf32>
    %1600 = arith.mulf %1515, %1599 : vector<4x128xf32>
    %1601 = arith.addf %1597, %1600 : vector<4x128xf32>
    %1602 = vector.extract_strided_slice %1558 {offsets = [7, 0], sizes = [1, 128], strides = [1, 1]} : vector<8x128xf32> to vector<1x128xf32>
    %1603 = vector.broadcast %1602 : vector<1x128xf32> to vector<4x128xf32>
    %1604 = arith.mulf %1518, %1603 : vector<4x128xf32>
    %1605 = arith.addf %1601, %1604 : vector<4x128xf32>
    %1606 = vector.extract_strided_slice %1574 {offsets = [0, 0], sizes = [1, 128], strides = [1, 1]} : vector<8x128xf32> to vector<1x128xf32>
    %1607 = vector.broadcast %1606 : vector<1x128xf32> to vector<4x128xf32>
    %1608 = arith.mulf %1497, %1607 : vector<4x128xf32>
    %1609 = vector.extract_strided_slice %1574 {offsets = [1, 0], sizes = [1, 128], strides = [1, 1]} : vector<8x128xf32> to vector<1x128xf32>
    %1610 = vector.broadcast %1609 : vector<1x128xf32> to vector<4x128xf32>
    %1611 = arith.mulf %1500, %1610 : vector<4x128xf32>
    %1612 = arith.addf %1608, %1611 : vector<4x128xf32>
    %1613 = vector.extract_strided_slice %1574 {offsets = [2, 0], sizes = [1, 128], strides = [1, 1]} : vector<8x128xf32> to vector<1x128xf32>
    %1614 = vector.broadcast %1613 : vector<1x128xf32> to vector<4x128xf32>
    %1615 = arith.mulf %1503, %1614 : vector<4x128xf32>
    %1616 = arith.addf %1612, %1615 : vector<4x128xf32>
    %1617 = vector.extract_strided_slice %1574 {offsets = [3, 0], sizes = [1, 128], strides = [1, 1]} : vector<8x128xf32> to vector<1x128xf32>
    %1618 = vector.broadcast %1617 : vector<1x128xf32> to vector<4x128xf32>
    %1619 = arith.mulf %1506, %1618 : vector<4x128xf32>
    %1620 = arith.addf %1616, %1619 : vector<4x128xf32>
    %1621 = vector.extract_strided_slice %1574 {offsets = [4, 0], sizes = [1, 128], strides = [1, 1]} : vector<8x128xf32> to vector<1x128xf32>
    %1622 = vector.broadcast %1621 : vector<1x128xf32> to vector<4x128xf32>
    %1623 = arith.mulf %1509, %1622 : vector<4x128xf32>
    %1624 = arith.addf %1620, %1623 : vector<4x128xf32>
    %1625 = vector.extract_strided_slice %1574 {offsets = [5, 0], sizes = [1, 128], strides = [1, 1]} : vector<8x128xf32> to vector<1x128xf32>
    %1626 = vector.broadcast %1625 : vector<1x128xf32> to vector<4x128xf32>
    %1627 = arith.mulf %1512, %1626 : vector<4x128xf32>
    %1628 = arith.addf %1624, %1627 : vector<4x128xf32>
    %1629 = vector.extract_strided_slice %1574 {offsets = [6, 0], sizes = [1, 128], strides = [1, 1]} : vector<8x128xf32> to vector<1x128xf32>
    %1630 = vector.broadcast %1629 : vector<1x128xf32> to vector<4x128xf32>
    %1631 = arith.mulf %1515, %1630 : vector<4x128xf32>
    %1632 = arith.addf %1628, %1631 : vector<4x128xf32>
    %1633 = vector.extract_strided_slice %1574 {offsets = [7, 0], sizes = [1, 128], strides = [1, 1]} : vector<8x128xf32> to vector<1x128xf32>
    %1634 = vector.broadcast %1633 : vector<1x128xf32> to vector<4x128xf32>
    %1635 = arith.mulf %1518, %1634 : vector<4x128xf32>
    %1636 = arith.addf %1632, %1635 : vector<4x128xf32>
    %1637 = tpu.concatenate %1605, %1636 in 0 : vector<4x128xf32>, vector<4x128xf32> -> vector<8x128xf32>
    %1638 = arith.subf %1432, %1637 : vector<8x128xf32>
    %cst_89 = arith.constant 0.000000e+00 : f32
    %1639 = arith.subf %cst_89, %1491 : f32
    %1640 = vector.broadcast %1639 : f32 to vector<8x128xf32>
    %1641 = arith.maximumf %1640, %1638 : vector<8x128xf32>
    %1642 = vector.broadcast %1491 : f32 to vector<8x128xf32>
    %1643 = arith.minimumf %1642, %1641 : vector<8x128xf32>
    %1644 = arith.subf %1638, %1643 : vector<8x128xf32>
    %1645 = vector.extract_strided_slice %1644 {offsets = [0, 0], sizes = [1, 128], strides = [1, 1]} : vector<8x128xf32> to vector<1x128xf32>
    %1646 = vector.broadcast %1645 : vector<1x128xf32> to vector<8x128xf32>
    %1647 = arith.mulf %1521, %1646 : vector<8x128xf32>
    %1648 = vector.extract_strided_slice %1644 {offsets = [1, 0], sizes = [1, 128], strides = [1, 1]} : vector<8x128xf32> to vector<1x128xf32>
    %1649 = vector.broadcast %1648 : vector<1x128xf32> to vector<8x128xf32>
    %1650 = arith.mulf %1524, %1649 : vector<8x128xf32>
    %1651 = arith.addf %1647, %1650 : vector<8x128xf32>
    %1652 = vector.extract_strided_slice %1644 {offsets = [2, 0], sizes = [1, 128], strides = [1, 1]} : vector<8x128xf32> to vector<1x128xf32>
    %1653 = vector.broadcast %1652 : vector<1x128xf32> to vector<8x128xf32>
    %1654 = arith.mulf %1527, %1653 : vector<8x128xf32>
    %1655 = arith.addf %1651, %1654 : vector<8x128xf32>
    %1656 = vector.extract_strided_slice %1644 {offsets = [3, 0], sizes = [1, 128], strides = [1, 1]} : vector<8x128xf32> to vector<1x128xf32>
    %1657 = vector.broadcast %1656 : vector<1x128xf32> to vector<8x128xf32>
    %1658 = arith.mulf %1530, %1657 : vector<8x128xf32>
    %1659 = arith.addf %1655, %1658 : vector<8x128xf32>
    %1660 = arith.subf %1, %1659 : vector<8x128xf32>
    %1661 = vector.extract_strided_slice %1644 {offsets = [0, 0], sizes = [4, 128], strides = [1, 1]} : vector<8x128xf32> to vector<4x128xf32>
    %cst_90 = arith.constant dense<0.000000e+00> : vector<8x4xf32>
    %1662 = tpu.matmul %1660, %1661, %cst_90 {dimension_numbers = #tpu.dot_dimension_numbers<[1], [1], [0], [0], [0, 0, 1, 0], [], []>} : vector<8x128xf32>, vector<4x128xf32>, vector<8x4xf32> -> vector<8x4xf32>
    %1663 = vector.broadcast %1492 : f32 to vector<8x4xf32>
    %1664 = arith.mulf %1663, %1662 : vector<8x4xf32>
    %1665 = arith.addf %1488, %1664 : vector<8x4xf32>
    %1666 = vector.extract_strided_slice %1644 {offsets = [4, 0], sizes = [1, 128], strides = [1, 1]} : vector<8x128xf32> to vector<1x128xf32>
    %1667 = vector.broadcast %1666 : vector<1x128xf32> to vector<8x128xf32>
    %1668 = arith.mulf %1533, %1667 : vector<8x128xf32>
    %1669 = vector.extract_strided_slice %1644 {offsets = [5, 0], sizes = [1, 128], strides = [1, 1]} : vector<8x128xf32> to vector<1x128xf32>
    %1670 = vector.broadcast %1669 : vector<1x128xf32> to vector<8x128xf32>
    %1671 = arith.mulf %1536, %1670 : vector<8x128xf32>
    %1672 = arith.addf %1668, %1671 : vector<8x128xf32>
    %1673 = vector.extract_strided_slice %1644 {offsets = [6, 0], sizes = [1, 128], strides = [1, 1]} : vector<8x128xf32> to vector<1x128xf32>
    %1674 = vector.broadcast %1673 : vector<1x128xf32> to vector<8x128xf32>
    %1675 = arith.mulf %1539, %1674 : vector<8x128xf32>
    %1676 = arith.addf %1672, %1675 : vector<8x128xf32>
    %1677 = vector.extract_strided_slice %1644 {offsets = [7, 0], sizes = [1, 128], strides = [1, 1]} : vector<8x128xf32> to vector<1x128xf32>
    %1678 = vector.broadcast %1677 : vector<1x128xf32> to vector<8x128xf32>
    %1679 = arith.mulf %1542, %1678 : vector<8x128xf32>
    %1680 = arith.addf %1676, %1679 : vector<8x128xf32>
    %1681 = arith.subf %3, %1680 : vector<8x128xf32>
    %1682 = vector.extract_strided_slice %1644 {offsets = [4, 0], sizes = [4, 128], strides = [1, 1]} : vector<8x128xf32> to vector<4x128xf32>
    %cst_91 = arith.constant dense<0.000000e+00> : vector<8x4xf32>
    %1683 = tpu.matmul %1681, %1682, %cst_91 {dimension_numbers = #tpu.dot_dimension_numbers<[1], [1], [0], [0], [0, 0, 1, 0], [], []>} : vector<8x128xf32>, vector<4x128xf32>, vector<8x4xf32> -> vector<8x4xf32>
    %1684 = vector.broadcast %1492 : f32 to vector<8x4xf32>
    %1685 = arith.mulf %1684, %1683 : vector<8x4xf32>
    %1686 = arith.addf %1490, %1685 : vector<8x4xf32>
    %1687 = arith.mulf %1665, %1665 : vector<8x4xf32>
    %cst_92 = arith.constant dense<0.000000e+00> : vector<8xf32>
    %1688 = vector.multi_reduction <add>, %1687, %cst_92 [1] : vector<8x4xf32> to vector<8xf32>
    %1689 = vector.shape_cast %1688 : vector<8xf32> to vector<8x1xf32>
    %1690 = arith.mulf %1686, %1686 : vector<8x4xf32>
    %cst_93 = arith.constant dense<0.000000e+00> : vector<8xf32>
    %1691 = vector.multi_reduction <add>, %1690, %cst_93 [1] : vector<8x4xf32> to vector<8xf32>
    %1692 = vector.shape_cast %1691 : vector<8xf32> to vector<8x1xf32>
    %1693 = arith.addf %1689, %1692 : vector<8x1xf32>
    %cst_94 = arith.constant 1.000000e+00 : f32
    %1694 = vector.broadcast %cst_94 : f32 to vector<8x1xf32>
    %1695 = arith.cmpf ogt, %1693, %1694 : vector<8x1xf32>
    %1696 = math.rsqrt %1693 : vector<8x1xf32>
    %cst_95 = arith.constant 1.000000e+00 : f32
    %1697 = vector.broadcast %cst_95 : f32 to vector<8x1xf32>
    %1698 = arith.select %1695, %1696, %1697 : vector<8x1xi1>, vector<8x1xf32>
    %1699 = vector.broadcast %1698 : vector<8x1xf32> to vector<8x4xf32>
    %1700 = arith.mulf %1665, %1699 : vector<8x4xf32>
    %1701 = vector.broadcast %1698 : vector<8x1xf32> to vector<8x4xf32>
    %1702 = arith.mulf %1686, %1701 : vector<8x4xf32>
    %c8 = arith.constant 8 : index
    %1703 = memref.load %arg2[%c8] : memref<10xf32, #tpu.memory_space<smem>>
    %c8_96 = arith.constant 8 : index
    %1704 = memref.load %arg3[%c8_96] : memref<10xf32, #tpu.memory_space<smem>>
    %c8_97 = arith.constant 8 : index
    %c0_98 = arith.constant 0 : index
    %c0_99 = arith.constant 0 : index
    %1705 = vector.load %arg1[%c8_97, %c0_98, %c0_99] : memref<10x4x8xf32, #tpu.memory_space<vmem>>, vector<1x4x8xf32>
    %1706 = vector.shape_cast %1705 : vector<1x4x8xf32> to vector<4x8xf32>
    %1707 = vector.extract_strided_slice %1706 {offsets = [0, 0], sizes = [4, 1], strides = [1, 1]} : vector<4x8xf32> to vector<4x1xf32>
    %1708 = vector.shape_cast %1707 : vector<4x1xf32> to vector<4x1xf32>
    %1709 = vector.broadcast %1708 : vector<4x1xf32> to vector<4x128xf32>
    %1710 = vector.extract_strided_slice %1706 {offsets = [0, 1], sizes = [4, 1], strides = [1, 1]} : vector<4x8xf32> to vector<4x1xf32>
    %1711 = vector.shape_cast %1710 : vector<4x1xf32> to vector<4x1xf32>
    %1712 = vector.broadcast %1711 : vector<4x1xf32> to vector<4x128xf32>
    %1713 = vector.extract_strided_slice %1706 {offsets = [0, 2], sizes = [4, 1], strides = [1, 1]} : vector<4x8xf32> to vector<4x1xf32>
    %1714 = vector.shape_cast %1713 : vector<4x1xf32> to vector<4x1xf32>
    %1715 = vector.broadcast %1714 : vector<4x1xf32> to vector<4x128xf32>
    %1716 = vector.extract_strided_slice %1706 {offsets = [0, 3], sizes = [4, 1], strides = [1, 1]} : vector<4x8xf32> to vector<4x1xf32>
    %1717 = vector.shape_cast %1716 : vector<4x1xf32> to vector<4x1xf32>
    %1718 = vector.broadcast %1717 : vector<4x1xf32> to vector<4x128xf32>
    %1719 = vector.extract_strided_slice %1706 {offsets = [0, 4], sizes = [4, 1], strides = [1, 1]} : vector<4x8xf32> to vector<4x1xf32>
    %1720 = vector.shape_cast %1719 : vector<4x1xf32> to vector<4x1xf32>
    %1721 = vector.broadcast %1720 : vector<4x1xf32> to vector<4x128xf32>
    %1722 = vector.extract_strided_slice %1706 {offsets = [0, 5], sizes = [4, 1], strides = [1, 1]} : vector<4x8xf32> to vector<4x1xf32>
    %1723 = vector.shape_cast %1722 : vector<4x1xf32> to vector<4x1xf32>
    %1724 = vector.broadcast %1723 : vector<4x1xf32> to vector<4x128xf32>
    %1725 = vector.extract_strided_slice %1706 {offsets = [0, 6], sizes = [4, 1], strides = [1, 1]} : vector<4x8xf32> to vector<4x1xf32>
    %1726 = vector.shape_cast %1725 : vector<4x1xf32> to vector<4x1xf32>
    %1727 = vector.broadcast %1726 : vector<4x1xf32> to vector<4x128xf32>
    %1728 = vector.extract_strided_slice %1706 {offsets = [0, 7], sizes = [4, 1], strides = [1, 1]} : vector<4x8xf32> to vector<4x1xf32>
    %1729 = vector.shape_cast %1728 : vector<4x1xf32> to vector<4x1xf32>
    %1730 = vector.broadcast %1729 : vector<4x1xf32> to vector<4x128xf32>
    %1731 = vector.extract_strided_slice %1700 {offsets = [0, 0], sizes = [8, 1], strides = [1, 1]} : vector<8x4xf32> to vector<8x1xf32>
    %1732 = vector.shape_cast %1731 : vector<8x1xf32> to vector<8x1xf32>
    %1733 = vector.broadcast %1732 : vector<8x1xf32> to vector<8x128xf32>
    %1734 = vector.extract_strided_slice %1700 {offsets = [0, 1], sizes = [8, 1], strides = [1, 1]} : vector<8x4xf32> to vector<8x1xf32>
    %1735 = vector.shape_cast %1734 : vector<8x1xf32> to vector<8x1xf32>
    %1736 = vector.broadcast %1735 : vector<8x1xf32> to vector<8x128xf32>
    %1737 = vector.extract_strided_slice %1700 {offsets = [0, 2], sizes = [8, 1], strides = [1, 1]} : vector<8x4xf32> to vector<8x1xf32>
    %1738 = vector.shape_cast %1737 : vector<8x1xf32> to vector<8x1xf32>
    %1739 = vector.broadcast %1738 : vector<8x1xf32> to vector<8x128xf32>
    %1740 = vector.extract_strided_slice %1700 {offsets = [0, 3], sizes = [8, 1], strides = [1, 1]} : vector<8x4xf32> to vector<8x1xf32>
    %1741 = vector.shape_cast %1740 : vector<8x1xf32> to vector<8x1xf32>
    %1742 = vector.broadcast %1741 : vector<8x1xf32> to vector<8x128xf32>
    %1743 = vector.extract_strided_slice %1702 {offsets = [0, 0], sizes = [8, 1], strides = [1, 1]} : vector<8x4xf32> to vector<8x1xf32>
    %1744 = vector.shape_cast %1743 : vector<8x1xf32> to vector<8x1xf32>
    %1745 = vector.broadcast %1744 : vector<8x1xf32> to vector<8x128xf32>
    %1746 = vector.extract_strided_slice %1702 {offsets = [0, 1], sizes = [8, 1], strides = [1, 1]} : vector<8x4xf32> to vector<8x1xf32>
    %1747 = vector.shape_cast %1746 : vector<8x1xf32> to vector<8x1xf32>
    %1748 = vector.broadcast %1747 : vector<8x1xf32> to vector<8x128xf32>
    %1749 = vector.extract_strided_slice %1702 {offsets = [0, 2], sizes = [8, 1], strides = [1, 1]} : vector<8x4xf32> to vector<8x1xf32>
    %1750 = vector.shape_cast %1749 : vector<8x1xf32> to vector<8x1xf32>
    %1751 = vector.broadcast %1750 : vector<8x1xf32> to vector<8x128xf32>
    %1752 = vector.extract_strided_slice %1702 {offsets = [0, 3], sizes = [8, 1], strides = [1, 1]} : vector<8x4xf32> to vector<8x1xf32>
    %1753 = vector.shape_cast %1752 : vector<8x1xf32> to vector<8x1xf32>
    %1754 = vector.broadcast %1753 : vector<8x1xf32> to vector<8x128xf32>
    %1755 = vector.extract_strided_slice %1644 {offsets = [0, 0], sizes = [1, 128], strides = [1, 1]} : vector<8x128xf32> to vector<1x128xf32>
    %1756 = vector.broadcast %1755 : vector<1x128xf32> to vector<8x128xf32>
    %1757 = arith.mulf %1733, %1756 : vector<8x128xf32>
    %1758 = vector.extract_strided_slice %1644 {offsets = [1, 0], sizes = [1, 128], strides = [1, 1]} : vector<8x128xf32> to vector<1x128xf32>
    %1759 = vector.broadcast %1758 : vector<1x128xf32> to vector<8x128xf32>
    %1760 = arith.mulf %1736, %1759 : vector<8x128xf32>
    %1761 = arith.addf %1757, %1760 : vector<8x128xf32>
    %1762 = vector.extract_strided_slice %1644 {offsets = [2, 0], sizes = [1, 128], strides = [1, 1]} : vector<8x128xf32> to vector<1x128xf32>
    %1763 = vector.broadcast %1762 : vector<1x128xf32> to vector<8x128xf32>
    %1764 = arith.mulf %1739, %1763 : vector<8x128xf32>
    %1765 = arith.addf %1761, %1764 : vector<8x128xf32>
    %1766 = vector.extract_strided_slice %1644 {offsets = [3, 0], sizes = [1, 128], strides = [1, 1]} : vector<8x128xf32> to vector<1x128xf32>
    %1767 = vector.broadcast %1766 : vector<1x128xf32> to vector<8x128xf32>
    %1768 = arith.mulf %1742, %1767 : vector<8x128xf32>
    %1769 = arith.addf %1765, %1768 : vector<8x128xf32>
    %1770 = arith.subf %1769, %1 : vector<8x128xf32>
    %1771 = vector.extract_strided_slice %1644 {offsets = [4, 0], sizes = [1, 128], strides = [1, 1]} : vector<8x128xf32> to vector<1x128xf32>
    %1772 = vector.broadcast %1771 : vector<1x128xf32> to vector<8x128xf32>
    %1773 = arith.mulf %1745, %1772 : vector<8x128xf32>
    %1774 = vector.extract_strided_slice %1644 {offsets = [5, 0], sizes = [1, 128], strides = [1, 1]} : vector<8x128xf32> to vector<1x128xf32>
    %1775 = vector.broadcast %1774 : vector<1x128xf32> to vector<8x128xf32>
    %1776 = arith.mulf %1748, %1775 : vector<8x128xf32>
    %1777 = arith.addf %1773, %1776 : vector<8x128xf32>
    %1778 = vector.extract_strided_slice %1644 {offsets = [6, 0], sizes = [1, 128], strides = [1, 1]} : vector<8x128xf32> to vector<1x128xf32>
    %1779 = vector.broadcast %1778 : vector<1x128xf32> to vector<8x128xf32>
    %1780 = arith.mulf %1751, %1779 : vector<8x128xf32>
    %1781 = arith.addf %1777, %1780 : vector<8x128xf32>
    %1782 = vector.extract_strided_slice %1644 {offsets = [7, 0], sizes = [1, 128], strides = [1, 1]} : vector<8x128xf32> to vector<1x128xf32>
    %1783 = vector.broadcast %1782 : vector<1x128xf32> to vector<8x128xf32>
    %1784 = arith.mulf %1754, %1783 : vector<8x128xf32>
    %1785 = arith.addf %1781, %1784 : vector<8x128xf32>
    %1786 = arith.subf %1785, %3 : vector<8x128xf32>
    %1787 = vector.extract_strided_slice %1770 {offsets = [0, 0], sizes = [1, 128], strides = [1, 1]} : vector<8x128xf32> to vector<1x128xf32>
    %1788 = vector.broadcast %1787 : vector<1x128xf32> to vector<4x128xf32>
    %1789 = arith.mulf %1709, %1788 : vector<4x128xf32>
    %1790 = vector.extract_strided_slice %1770 {offsets = [1, 0], sizes = [1, 128], strides = [1, 1]} : vector<8x128xf32> to vector<1x128xf32>
    %1791 = vector.broadcast %1790 : vector<1x128xf32> to vector<4x128xf32>
    %1792 = arith.mulf %1712, %1791 : vector<4x128xf32>
    %1793 = arith.addf %1789, %1792 : vector<4x128xf32>
    %1794 = vector.extract_strided_slice %1770 {offsets = [2, 0], sizes = [1, 128], strides = [1, 1]} : vector<8x128xf32> to vector<1x128xf32>
    %1795 = vector.broadcast %1794 : vector<1x128xf32> to vector<4x128xf32>
    %1796 = arith.mulf %1715, %1795 : vector<4x128xf32>
    %1797 = arith.addf %1793, %1796 : vector<4x128xf32>
    %1798 = vector.extract_strided_slice %1770 {offsets = [3, 0], sizes = [1, 128], strides = [1, 1]} : vector<8x128xf32> to vector<1x128xf32>
    %1799 = vector.broadcast %1798 : vector<1x128xf32> to vector<4x128xf32>
    %1800 = arith.mulf %1718, %1799 : vector<4x128xf32>
    %1801 = arith.addf %1797, %1800 : vector<4x128xf32>
    %1802 = vector.extract_strided_slice %1770 {offsets = [4, 0], sizes = [1, 128], strides = [1, 1]} : vector<8x128xf32> to vector<1x128xf32>
    %1803 = vector.broadcast %1802 : vector<1x128xf32> to vector<4x128xf32>
    %1804 = arith.mulf %1721, %1803 : vector<4x128xf32>
    %1805 = arith.addf %1801, %1804 : vector<4x128xf32>
    %1806 = vector.extract_strided_slice %1770 {offsets = [5, 0], sizes = [1, 128], strides = [1, 1]} : vector<8x128xf32> to vector<1x128xf32>
    %1807 = vector.broadcast %1806 : vector<1x128xf32> to vector<4x128xf32>
    %1808 = arith.mulf %1724, %1807 : vector<4x128xf32>
    %1809 = arith.addf %1805, %1808 : vector<4x128xf32>
    %1810 = vector.extract_strided_slice %1770 {offsets = [6, 0], sizes = [1, 128], strides = [1, 1]} : vector<8x128xf32> to vector<1x128xf32>
    %1811 = vector.broadcast %1810 : vector<1x128xf32> to vector<4x128xf32>
    %1812 = arith.mulf %1727, %1811 : vector<4x128xf32>
    %1813 = arith.addf %1809, %1812 : vector<4x128xf32>
    %1814 = vector.extract_strided_slice %1770 {offsets = [7, 0], sizes = [1, 128], strides = [1, 1]} : vector<8x128xf32> to vector<1x128xf32>
    %1815 = vector.broadcast %1814 : vector<1x128xf32> to vector<4x128xf32>
    %1816 = arith.mulf %1730, %1815 : vector<4x128xf32>
    %1817 = arith.addf %1813, %1816 : vector<4x128xf32>
    %1818 = vector.extract_strided_slice %1786 {offsets = [0, 0], sizes = [1, 128], strides = [1, 1]} : vector<8x128xf32> to vector<1x128xf32>
    %1819 = vector.broadcast %1818 : vector<1x128xf32> to vector<4x128xf32>
    %1820 = arith.mulf %1709, %1819 : vector<4x128xf32>
    %1821 = vector.extract_strided_slice %1786 {offsets = [1, 0], sizes = [1, 128], strides = [1, 1]} : vector<8x128xf32> to vector<1x128xf32>
    %1822 = vector.broadcast %1821 : vector<1x128xf32> to vector<4x128xf32>
    %1823 = arith.mulf %1712, %1822 : vector<4x128xf32>
    %1824 = arith.addf %1820, %1823 : vector<4x128xf32>
    %1825 = vector.extract_strided_slice %1786 {offsets = [2, 0], sizes = [1, 128], strides = [1, 1]} : vector<8x128xf32> to vector<1x128xf32>
    %1826 = vector.broadcast %1825 : vector<1x128xf32> to vector<4x128xf32>
    %1827 = arith.mulf %1715, %1826 : vector<4x128xf32>
    %1828 = arith.addf %1824, %1827 : vector<4x128xf32>
    %1829 = vector.extract_strided_slice %1786 {offsets = [3, 0], sizes = [1, 128], strides = [1, 1]} : vector<8x128xf32> to vector<1x128xf32>
    %1830 = vector.broadcast %1829 : vector<1x128xf32> to vector<4x128xf32>
    %1831 = arith.mulf %1718, %1830 : vector<4x128xf32>
    %1832 = arith.addf %1828, %1831 : vector<4x128xf32>
    %1833 = vector.extract_strided_slice %1786 {offsets = [4, 0], sizes = [1, 128], strides = [1, 1]} : vector<8x128xf32> to vector<1x128xf32>
    %1834 = vector.broadcast %1833 : vector<1x128xf32> to vector<4x128xf32>
    %1835 = arith.mulf %1721, %1834 : vector<4x128xf32>
    %1836 = arith.addf %1832, %1835 : vector<4x128xf32>
    %1837 = vector.extract_strided_slice %1786 {offsets = [5, 0], sizes = [1, 128], strides = [1, 1]} : vector<8x128xf32> to vector<1x128xf32>
    %1838 = vector.broadcast %1837 : vector<1x128xf32> to vector<4x128xf32>
    %1839 = arith.mulf %1724, %1838 : vector<4x128xf32>
    %1840 = arith.addf %1836, %1839 : vector<4x128xf32>
    %1841 = vector.extract_strided_slice %1786 {offsets = [6, 0], sizes = [1, 128], strides = [1, 1]} : vector<8x128xf32> to vector<1x128xf32>
    %1842 = vector.broadcast %1841 : vector<1x128xf32> to vector<4x128xf32>
    %1843 = arith.mulf %1727, %1842 : vector<4x128xf32>
    %1844 = arith.addf %1840, %1843 : vector<4x128xf32>
    %1845 = vector.extract_strided_slice %1786 {offsets = [7, 0], sizes = [1, 128], strides = [1, 1]} : vector<8x128xf32> to vector<1x128xf32>
    %1846 = vector.broadcast %1845 : vector<1x128xf32> to vector<4x128xf32>
    %1847 = arith.mulf %1730, %1846 : vector<4x128xf32>
    %1848 = arith.addf %1844, %1847 : vector<4x128xf32>
    %1849 = tpu.concatenate %1817, %1848 in 0 : vector<4x128xf32>, vector<4x128xf32> -> vector<8x128xf32>
    %1850 = arith.subf %1644, %1849 : vector<8x128xf32>
    %cst_100 = arith.constant 0.000000e+00 : f32
    %1851 = arith.subf %cst_100, %1703 : f32
    %1852 = vector.broadcast %1851 : f32 to vector<8x128xf32>
    %1853 = arith.maximumf %1852, %1850 : vector<8x128xf32>
    %1854 = vector.broadcast %1703 : f32 to vector<8x128xf32>
    %1855 = arith.minimumf %1854, %1853 : vector<8x128xf32>
    %1856 = arith.subf %1850, %1855 : vector<8x128xf32>
    %1857 = vector.extract_strided_slice %1856 {offsets = [0, 0], sizes = [1, 128], strides = [1, 1]} : vector<8x128xf32> to vector<1x128xf32>
    %1858 = vector.broadcast %1857 : vector<1x128xf32> to vector<8x128xf32>
    %1859 = arith.mulf %1733, %1858 : vector<8x128xf32>
    %1860 = vector.extract_strided_slice %1856 {offsets = [1, 0], sizes = [1, 128], strides = [1, 1]} : vector<8x128xf32> to vector<1x128xf32>
    %1861 = vector.broadcast %1860 : vector<1x128xf32> to vector<8x128xf32>
    %1862 = arith.mulf %1736, %1861 : vector<8x128xf32>
    %1863 = arith.addf %1859, %1862 : vector<8x128xf32>
    %1864 = vector.extract_strided_slice %1856 {offsets = [2, 0], sizes = [1, 128], strides = [1, 1]} : vector<8x128xf32> to vector<1x128xf32>
    %1865 = vector.broadcast %1864 : vector<1x128xf32> to vector<8x128xf32>
    %1866 = arith.mulf %1739, %1865 : vector<8x128xf32>
    %1867 = arith.addf %1863, %1866 : vector<8x128xf32>
    %1868 = vector.extract_strided_slice %1856 {offsets = [3, 0], sizes = [1, 128], strides = [1, 1]} : vector<8x128xf32> to vector<1x128xf32>
    %1869 = vector.broadcast %1868 : vector<1x128xf32> to vector<8x128xf32>
    %1870 = arith.mulf %1742, %1869 : vector<8x128xf32>
    %1871 = arith.addf %1867, %1870 : vector<8x128xf32>
    %1872 = arith.subf %1, %1871 : vector<8x128xf32>
    %1873 = vector.extract_strided_slice %1856 {offsets = [0, 0], sizes = [4, 128], strides = [1, 1]} : vector<8x128xf32> to vector<4x128xf32>
    %cst_101 = arith.constant dense<0.000000e+00> : vector<8x4xf32>
    %1874 = tpu.matmul %1872, %1873, %cst_101 {dimension_numbers = #tpu.dot_dimension_numbers<[1], [1], [0], [0], [0, 0, 1, 0], [], []>} : vector<8x128xf32>, vector<4x128xf32>, vector<8x4xf32> -> vector<8x4xf32>
    %1875 = vector.broadcast %1704 : f32 to vector<8x4xf32>
    %1876 = arith.mulf %1875, %1874 : vector<8x4xf32>
    %1877 = arith.addf %1700, %1876 : vector<8x4xf32>
    %1878 = vector.extract_strided_slice %1856 {offsets = [4, 0], sizes = [1, 128], strides = [1, 1]} : vector<8x128xf32> to vector<1x128xf32>
    %1879 = vector.broadcast %1878 : vector<1x128xf32> to vector<8x128xf32>
    %1880 = arith.mulf %1745, %1879 : vector<8x128xf32>
    %1881 = vector.extract_strided_slice %1856 {offsets = [5, 0], sizes = [1, 128], strides = [1, 1]} : vector<8x128xf32> to vector<1x128xf32>
    %1882 = vector.broadcast %1881 : vector<1x128xf32> to vector<8x128xf32>
    %1883 = arith.mulf %1748, %1882 : vector<8x128xf32>
    %1884 = arith.addf %1880, %1883 : vector<8x128xf32>
    %1885 = vector.extract_strided_slice %1856 {offsets = [6, 0], sizes = [1, 128], strides = [1, 1]} : vector<8x128xf32> to vector<1x128xf32>
    %1886 = vector.broadcast %1885 : vector<1x128xf32> to vector<8x128xf32>
    %1887 = arith.mulf %1751, %1886 : vector<8x128xf32>
    %1888 = arith.addf %1884, %1887 : vector<8x128xf32>
    %1889 = vector.extract_strided_slice %1856 {offsets = [7, 0], sizes = [1, 128], strides = [1, 1]} : vector<8x128xf32> to vector<1x128xf32>
    %1890 = vector.broadcast %1889 : vector<1x128xf32> to vector<8x128xf32>
    %1891 = arith.mulf %1754, %1890 : vector<8x128xf32>
    %1892 = arith.addf %1888, %1891 : vector<8x128xf32>
    %1893 = arith.subf %3, %1892 : vector<8x128xf32>
    %1894 = vector.extract_strided_slice %1856 {offsets = [4, 0], sizes = [4, 128], strides = [1, 1]} : vector<8x128xf32> to vector<4x128xf32>
    %cst_102 = arith.constant dense<0.000000e+00> : vector<8x4xf32>
    %1895 = tpu.matmul %1893, %1894, %cst_102 {dimension_numbers = #tpu.dot_dimension_numbers<[1], [1], [0], [0], [0, 0, 1, 0], [], []>} : vector<8x128xf32>, vector<4x128xf32>, vector<8x4xf32> -> vector<8x4xf32>
    %1896 = vector.broadcast %1704 : f32 to vector<8x4xf32>
    %1897 = arith.mulf %1896, %1895 : vector<8x4xf32>
    %1898 = arith.addf %1702, %1897 : vector<8x4xf32>
    %1899 = arith.mulf %1877, %1877 : vector<8x4xf32>
    %cst_103 = arith.constant dense<0.000000e+00> : vector<8xf32>
    %1900 = vector.multi_reduction <add>, %1899, %cst_103 [1] : vector<8x4xf32> to vector<8xf32>
    %1901 = vector.shape_cast %1900 : vector<8xf32> to vector<8x1xf32>
    %1902 = arith.mulf %1898, %1898 : vector<8x4xf32>
    %cst_104 = arith.constant dense<0.000000e+00> : vector<8xf32>
    %1903 = vector.multi_reduction <add>, %1902, %cst_104 [1] : vector<8x4xf32> to vector<8xf32>
    %1904 = vector.shape_cast %1903 : vector<8xf32> to vector<8x1xf32>
    %1905 = arith.addf %1901, %1904 : vector<8x1xf32>
    %cst_105 = arith.constant 1.000000e+00 : f32
    %1906 = vector.broadcast %cst_105 : f32 to vector<8x1xf32>
    %1907 = arith.cmpf ogt, %1905, %1906 : vector<8x1xf32>
    %1908 = math.rsqrt %1905 : vector<8x1xf32>
    %cst_106 = arith.constant 1.000000e+00 : f32
    %1909 = vector.broadcast %cst_106 : f32 to vector<8x1xf32>
    %1910 = arith.select %1907, %1908, %1909 : vector<8x1xi1>, vector<8x1xf32>
    %1911 = vector.broadcast %1910 : vector<8x1xf32> to vector<8x4xf32>
    %1912 = arith.mulf %1877, %1911 : vector<8x4xf32>
    %1913 = vector.broadcast %1910 : vector<8x1xf32> to vector<8x4xf32>
    %1914 = arith.mulf %1898, %1913 : vector<8x4xf32>
    %c9 = arith.constant 9 : index
    %1915 = memref.load %arg2[%c9] : memref<10xf32, #tpu.memory_space<smem>>
    %c9_107 = arith.constant 9 : index
    %1916 = memref.load %arg3[%c9_107] : memref<10xf32, #tpu.memory_space<smem>>
    %c9_108 = arith.constant 9 : index
    %c0_109 = arith.constant 0 : index
    %c0_110 = arith.constant 0 : index
    %1917 = vector.load %arg1[%c9_108, %c0_109, %c0_110] : memref<10x4x8xf32, #tpu.memory_space<vmem>>, vector<1x4x8xf32>
    %1918 = vector.shape_cast %1917 : vector<1x4x8xf32> to vector<4x8xf32>
    %1919 = vector.extract_strided_slice %1918 {offsets = [0, 0], sizes = [4, 1], strides = [1, 1]} : vector<4x8xf32> to vector<4x1xf32>
    %1920 = vector.shape_cast %1919 : vector<4x1xf32> to vector<4x1xf32>
    %1921 = vector.broadcast %1920 : vector<4x1xf32> to vector<4x128xf32>
    %1922 = vector.extract_strided_slice %1918 {offsets = [0, 1], sizes = [4, 1], strides = [1, 1]} : vector<4x8xf32> to vector<4x1xf32>
    %1923 = vector.shape_cast %1922 : vector<4x1xf32> to vector<4x1xf32>
    %1924 = vector.broadcast %1923 : vector<4x1xf32> to vector<4x128xf32>
    %1925 = vector.extract_strided_slice %1918 {offsets = [0, 2], sizes = [4, 1], strides = [1, 1]} : vector<4x8xf32> to vector<4x1xf32>
    %1926 = vector.shape_cast %1925 : vector<4x1xf32> to vector<4x1xf32>
    %1927 = vector.broadcast %1926 : vector<4x1xf32> to vector<4x128xf32>
    %1928 = vector.extract_strided_slice %1918 {offsets = [0, 3], sizes = [4, 1], strides = [1, 1]} : vector<4x8xf32> to vector<4x1xf32>
    %1929 = vector.shape_cast %1928 : vector<4x1xf32> to vector<4x1xf32>
    %1930 = vector.broadcast %1929 : vector<4x1xf32> to vector<4x128xf32>
    %1931 = vector.extract_strided_slice %1918 {offsets = [0, 4], sizes = [4, 1], strides = [1, 1]} : vector<4x8xf32> to vector<4x1xf32>
    %1932 = vector.shape_cast %1931 : vector<4x1xf32> to vector<4x1xf32>
    %1933 = vector.broadcast %1932 : vector<4x1xf32> to vector<4x128xf32>
    %1934 = vector.extract_strided_slice %1918 {offsets = [0, 5], sizes = [4, 1], strides = [1, 1]} : vector<4x8xf32> to vector<4x1xf32>
    %1935 = vector.shape_cast %1934 : vector<4x1xf32> to vector<4x1xf32>
    %1936 = vector.broadcast %1935 : vector<4x1xf32> to vector<4x128xf32>
    %1937 = vector.extract_strided_slice %1918 {offsets = [0, 6], sizes = [4, 1], strides = [1, 1]} : vector<4x8xf32> to vector<4x1xf32>
    %1938 = vector.shape_cast %1937 : vector<4x1xf32> to vector<4x1xf32>
    %1939 = vector.broadcast %1938 : vector<4x1xf32> to vector<4x128xf32>
    %1940 = vector.extract_strided_slice %1918 {offsets = [0, 7], sizes = [4, 1], strides = [1, 1]} : vector<4x8xf32> to vector<4x1xf32>
    %1941 = vector.shape_cast %1940 : vector<4x1xf32> to vector<4x1xf32>
    %1942 = vector.broadcast %1941 : vector<4x1xf32> to vector<4x128xf32>
    %1943 = vector.extract_strided_slice %1912 {offsets = [0, 0], sizes = [8, 1], strides = [1, 1]} : vector<8x4xf32> to vector<8x1xf32>
    %1944 = vector.shape_cast %1943 : vector<8x1xf32> to vector<8x1xf32>
    %1945 = vector.broadcast %1944 : vector<8x1xf32> to vector<8x128xf32>
    %1946 = vector.extract_strided_slice %1912 {offsets = [0, 1], sizes = [8, 1], strides = [1, 1]} : vector<8x4xf32> to vector<8x1xf32>
    %1947 = vector.shape_cast %1946 : vector<8x1xf32> to vector<8x1xf32>
    %1948 = vector.broadcast %1947 : vector<8x1xf32> to vector<8x128xf32>
    %1949 = vector.extract_strided_slice %1912 {offsets = [0, 2], sizes = [8, 1], strides = [1, 1]} : vector<8x4xf32> to vector<8x1xf32>
    %1950 = vector.shape_cast %1949 : vector<8x1xf32> to vector<8x1xf32>
    %1951 = vector.broadcast %1950 : vector<8x1xf32> to vector<8x128xf32>
    %1952 = vector.extract_strided_slice %1912 {offsets = [0, 3], sizes = [8, 1], strides = [1, 1]} : vector<8x4xf32> to vector<8x1xf32>
    %1953 = vector.shape_cast %1952 : vector<8x1xf32> to vector<8x1xf32>
    %1954 = vector.broadcast %1953 : vector<8x1xf32> to vector<8x128xf32>
    %1955 = vector.extract_strided_slice %1914 {offsets = [0, 0], sizes = [8, 1], strides = [1, 1]} : vector<8x4xf32> to vector<8x1xf32>
    %1956 = vector.shape_cast %1955 : vector<8x1xf32> to vector<8x1xf32>
    %1957 = vector.broadcast %1956 : vector<8x1xf32> to vector<8x128xf32>
    %1958 = vector.extract_strided_slice %1914 {offsets = [0, 1], sizes = [8, 1], strides = [1, 1]} : vector<8x4xf32> to vector<8x1xf32>
    %1959 = vector.shape_cast %1958 : vector<8x1xf32> to vector<8x1xf32>
    %1960 = vector.broadcast %1959 : vector<8x1xf32> to vector<8x128xf32>
    %1961 = vector.extract_strided_slice %1914 {offsets = [0, 2], sizes = [8, 1], strides = [1, 1]} : vector<8x4xf32> to vector<8x1xf32>
    %1962 = vector.shape_cast %1961 : vector<8x1xf32> to vector<8x1xf32>
    %1963 = vector.broadcast %1962 : vector<8x1xf32> to vector<8x128xf32>
    %1964 = vector.extract_strided_slice %1914 {offsets = [0, 3], sizes = [8, 1], strides = [1, 1]} : vector<8x4xf32> to vector<8x1xf32>
    %1965 = vector.shape_cast %1964 : vector<8x1xf32> to vector<8x1xf32>
    %1966 = vector.broadcast %1965 : vector<8x1xf32> to vector<8x128xf32>
    %1967 = vector.extract_strided_slice %1856 {offsets = [0, 0], sizes = [1, 128], strides = [1, 1]} : vector<8x128xf32> to vector<1x128xf32>
    %1968 = vector.broadcast %1967 : vector<1x128xf32> to vector<8x128xf32>
    %1969 = arith.mulf %1945, %1968 : vector<8x128xf32>
    %1970 = vector.extract_strided_slice %1856 {offsets = [1, 0], sizes = [1, 128], strides = [1, 1]} : vector<8x128xf32> to vector<1x128xf32>
    %1971 = vector.broadcast %1970 : vector<1x128xf32> to vector<8x128xf32>
    %1972 = arith.mulf %1948, %1971 : vector<8x128xf32>
    %1973 = arith.addf %1969, %1972 : vector<8x128xf32>
    %1974 = vector.extract_strided_slice %1856 {offsets = [2, 0], sizes = [1, 128], strides = [1, 1]} : vector<8x128xf32> to vector<1x128xf32>
    %1975 = vector.broadcast %1974 : vector<1x128xf32> to vector<8x128xf32>
    %1976 = arith.mulf %1951, %1975 : vector<8x128xf32>
    %1977 = arith.addf %1973, %1976 : vector<8x128xf32>
    %1978 = vector.extract_strided_slice %1856 {offsets = [3, 0], sizes = [1, 128], strides = [1, 1]} : vector<8x128xf32> to vector<1x128xf32>
    %1979 = vector.broadcast %1978 : vector<1x128xf32> to vector<8x128xf32>
    %1980 = arith.mulf %1954, %1979 : vector<8x128xf32>
    %1981 = arith.addf %1977, %1980 : vector<8x128xf32>
    %1982 = arith.subf %1981, %1 : vector<8x128xf32>
    %1983 = vector.extract_strided_slice %1856 {offsets = [4, 0], sizes = [1, 128], strides = [1, 1]} : vector<8x128xf32> to vector<1x128xf32>
    %1984 = vector.broadcast %1983 : vector<1x128xf32> to vector<8x128xf32>
    %1985 = arith.mulf %1957, %1984 : vector<8x128xf32>
    %1986 = vector.extract_strided_slice %1856 {offsets = [5, 0], sizes = [1, 128], strides = [1, 1]} : vector<8x128xf32> to vector<1x128xf32>
    %1987 = vector.broadcast %1986 : vector<1x128xf32> to vector<8x128xf32>
    %1988 = arith.mulf %1960, %1987 : vector<8x128xf32>
    %1989 = arith.addf %1985, %1988 : vector<8x128xf32>
    %1990 = vector.extract_strided_slice %1856 {offsets = [6, 0], sizes = [1, 128], strides = [1, 1]} : vector<8x128xf32> to vector<1x128xf32>
    %1991 = vector.broadcast %1990 : vector<1x128xf32> to vector<8x128xf32>
    %1992 = arith.mulf %1963, %1991 : vector<8x128xf32>
    %1993 = arith.addf %1989, %1992 : vector<8x128xf32>
    %1994 = vector.extract_strided_slice %1856 {offsets = [7, 0], sizes = [1, 128], strides = [1, 1]} : vector<8x128xf32> to vector<1x128xf32>
    %1995 = vector.broadcast %1994 : vector<1x128xf32> to vector<8x128xf32>
    %1996 = arith.mulf %1966, %1995 : vector<8x128xf32>
    %1997 = arith.addf %1993, %1996 : vector<8x128xf32>
    %1998 = arith.subf %1997, %3 : vector<8x128xf32>
    %1999 = vector.extract_strided_slice %1982 {offsets = [0, 0], sizes = [1, 128], strides = [1, 1]} : vector<8x128xf32> to vector<1x128xf32>
    %2000 = vector.broadcast %1999 : vector<1x128xf32> to vector<4x128xf32>
    %2001 = arith.mulf %1921, %2000 : vector<4x128xf32>
    %2002 = vector.extract_strided_slice %1982 {offsets = [1, 0], sizes = [1, 128], strides = [1, 1]} : vector<8x128xf32> to vector<1x128xf32>
    %2003 = vector.broadcast %2002 : vector<1x128xf32> to vector<4x128xf32>
    %2004 = arith.mulf %1924, %2003 : vector<4x128xf32>
    %2005 = arith.addf %2001, %2004 : vector<4x128xf32>
    %2006 = vector.extract_strided_slice %1982 {offsets = [2, 0], sizes = [1, 128], strides = [1, 1]} : vector<8x128xf32> to vector<1x128xf32>
    %2007 = vector.broadcast %2006 : vector<1x128xf32> to vector<4x128xf32>
    %2008 = arith.mulf %1927, %2007 : vector<4x128xf32>
    %2009 = arith.addf %2005, %2008 : vector<4x128xf32>
    %2010 = vector.extract_strided_slice %1982 {offsets = [3, 0], sizes = [1, 128], strides = [1, 1]} : vector<8x128xf32> to vector<1x128xf32>
    %2011 = vector.broadcast %2010 : vector<1x128xf32> to vector<4x128xf32>
    %2012 = arith.mulf %1930, %2011 : vector<4x128xf32>
    %2013 = arith.addf %2009, %2012 : vector<4x128xf32>
    %2014 = vector.extract_strided_slice %1982 {offsets = [4, 0], sizes = [1, 128], strides = [1, 1]} : vector<8x128xf32> to vector<1x128xf32>
    %2015 = vector.broadcast %2014 : vector<1x128xf32> to vector<4x128xf32>
    %2016 = arith.mulf %1933, %2015 : vector<4x128xf32>
    %2017 = arith.addf %2013, %2016 : vector<4x128xf32>
    %2018 = vector.extract_strided_slice %1982 {offsets = [5, 0], sizes = [1, 128], strides = [1, 1]} : vector<8x128xf32> to vector<1x128xf32>
    %2019 = vector.broadcast %2018 : vector<1x128xf32> to vector<4x128xf32>
    %2020 = arith.mulf %1936, %2019 : vector<4x128xf32>
    %2021 = arith.addf %2017, %2020 : vector<4x128xf32>
    %2022 = vector.extract_strided_slice %1982 {offsets = [6, 0], sizes = [1, 128], strides = [1, 1]} : vector<8x128xf32> to vector<1x128xf32>
    %2023 = vector.broadcast %2022 : vector<1x128xf32> to vector<4x128xf32>
    %2024 = arith.mulf %1939, %2023 : vector<4x128xf32>
    %2025 = arith.addf %2021, %2024 : vector<4x128xf32>
    %2026 = vector.extract_strided_slice %1982 {offsets = [7, 0], sizes = [1, 128], strides = [1, 1]} : vector<8x128xf32> to vector<1x128xf32>
    %2027 = vector.broadcast %2026 : vector<1x128xf32> to vector<4x128xf32>
    %2028 = arith.mulf %1942, %2027 : vector<4x128xf32>
    %2029 = arith.addf %2025, %2028 : vector<4x128xf32>
    %2030 = vector.extract_strided_slice %1998 {offsets = [0, 0], sizes = [1, 128], strides = [1, 1]} : vector<8x128xf32> to vector<1x128xf32>
    %2031 = vector.broadcast %2030 : vector<1x128xf32> to vector<4x128xf32>
    %2032 = arith.mulf %1921, %2031 : vector<4x128xf32>
    %2033 = vector.extract_strided_slice %1998 {offsets = [1, 0], sizes = [1, 128], strides = [1, 1]} : vector<8x128xf32> to vector<1x128xf32>
    %2034 = vector.broadcast %2033 : vector<1x128xf32> to vector<4x128xf32>
    %2035 = arith.mulf %1924, %2034 : vector<4x128xf32>
    %2036 = arith.addf %2032, %2035 : vector<4x128xf32>
    %2037 = vector.extract_strided_slice %1998 {offsets = [2, 0], sizes = [1, 128], strides = [1, 1]} : vector<8x128xf32> to vector<1x128xf32>
    %2038 = vector.broadcast %2037 : vector<1x128xf32> to vector<4x128xf32>
    %2039 = arith.mulf %1927, %2038 : vector<4x128xf32>
    %2040 = arith.addf %2036, %2039 : vector<4x128xf32>
    %2041 = vector.extract_strided_slice %1998 {offsets = [3, 0], sizes = [1, 128], strides = [1, 1]} : vector<8x128xf32> to vector<1x128xf32>
    %2042 = vector.broadcast %2041 : vector<1x128xf32> to vector<4x128xf32>
    %2043 = arith.mulf %1930, %2042 : vector<4x128xf32>
    %2044 = arith.addf %2040, %2043 : vector<4x128xf32>
    %2045 = vector.extract_strided_slice %1998 {offsets = [4, 0], sizes = [1, 128], strides = [1, 1]} : vector<8x128xf32> to vector<1x128xf32>
    %2046 = vector.broadcast %2045 : vector<1x128xf32> to vector<4x128xf32>
    %2047 = arith.mulf %1933, %2046 : vector<4x128xf32>
    %2048 = arith.addf %2044, %2047 : vector<4x128xf32>
    %2049 = vector.extract_strided_slice %1998 {offsets = [5, 0], sizes = [1, 128], strides = [1, 1]} : vector<8x128xf32> to vector<1x128xf32>
    %2050 = vector.broadcast %2049 : vector<1x128xf32> to vector<4x128xf32>
    %2051 = arith.mulf %1936, %2050 : vector<4x128xf32>
    %2052 = arith.addf %2048, %2051 : vector<4x128xf32>
    %2053 = vector.extract_strided_slice %1998 {offsets = [6, 0], sizes = [1, 128], strides = [1, 1]} : vector<8x128xf32> to vector<1x128xf32>
    %2054 = vector.broadcast %2053 : vector<1x128xf32> to vector<4x128xf32>
    %2055 = arith.mulf %1939, %2054 : vector<4x128xf32>
    %2056 = arith.addf %2052, %2055 : vector<4x128xf32>
    %2057 = vector.extract_strided_slice %1998 {offsets = [7, 0], sizes = [1, 128], strides = [1, 1]} : vector<8x128xf32> to vector<1x128xf32>
    %2058 = vector.broadcast %2057 : vector<1x128xf32> to vector<4x128xf32>
    %2059 = arith.mulf %1942, %2058 : vector<4x128xf32>
    %2060 = arith.addf %2056, %2059 : vector<4x128xf32>
    %2061 = tpu.concatenate %2029, %2060 in 0 : vector<4x128xf32>, vector<4x128xf32> -> vector<8x128xf32>
    %2062 = arith.subf %1856, %2061 : vector<8x128xf32>
    %cst_111 = arith.constant 0.000000e+00 : f32
    %2063 = arith.subf %cst_111, %1915 : f32
    %2064 = vector.broadcast %2063 : f32 to vector<8x128xf32>
    %2065 = arith.maximumf %2064, %2062 : vector<8x128xf32>
    %2066 = vector.broadcast %1915 : f32 to vector<8x128xf32>
    %2067 = arith.minimumf %2066, %2065 : vector<8x128xf32>
    %2068 = arith.subf %2062, %2067 : vector<8x128xf32>
    %2069 = vector.extract_strided_slice %2068 {offsets = [0, 0], sizes = [1, 128], strides = [1, 1]} : vector<8x128xf32> to vector<1x128xf32>
    %2070 = vector.broadcast %2069 : vector<1x128xf32> to vector<8x128xf32>
    %2071 = arith.mulf %1945, %2070 : vector<8x128xf32>
    %2072 = vector.extract_strided_slice %2068 {offsets = [1, 0], sizes = [1, 128], strides = [1, 1]} : vector<8x128xf32> to vector<1x128xf32>
    %2073 = vector.broadcast %2072 : vector<1x128xf32> to vector<8x128xf32>
    %2074 = arith.mulf %1948, %2073 : vector<8x128xf32>
    %2075 = arith.addf %2071, %2074 : vector<8x128xf32>
    %2076 = vector.extract_strided_slice %2068 {offsets = [2, 0], sizes = [1, 128], strides = [1, 1]} : vector<8x128xf32> to vector<1x128xf32>
    %2077 = vector.broadcast %2076 : vector<1x128xf32> to vector<8x128xf32>
    %2078 = arith.mulf %1951, %2077 : vector<8x128xf32>
    %2079 = arith.addf %2075, %2078 : vector<8x128xf32>
    %2080 = vector.extract_strided_slice %2068 {offsets = [3, 0], sizes = [1, 128], strides = [1, 1]} : vector<8x128xf32> to vector<1x128xf32>
    %2081 = vector.broadcast %2080 : vector<1x128xf32> to vector<8x128xf32>
    %2082 = arith.mulf %1954, %2081 : vector<8x128xf32>
    %2083 = arith.addf %2079, %2082 : vector<8x128xf32>
    %2084 = arith.subf %1, %2083 : vector<8x128xf32>
    %2085 = vector.extract_strided_slice %2068 {offsets = [0, 0], sizes = [4, 128], strides = [1, 1]} : vector<8x128xf32> to vector<4x128xf32>
    %cst_112 = arith.constant dense<0.000000e+00> : vector<8x4xf32>
    %2086 = tpu.matmul %2084, %2085, %cst_112 {dimension_numbers = #tpu.dot_dimension_numbers<[1], [1], [0], [0], [0, 0, 1, 0], [], []>} : vector<8x128xf32>, vector<4x128xf32>, vector<8x4xf32> -> vector<8x4xf32>
    %2087 = vector.broadcast %1916 : f32 to vector<8x4xf32>
    %2088 = arith.mulf %2087, %2086 : vector<8x4xf32>
    %2089 = arith.addf %1912, %2088 : vector<8x4xf32>
    %2090 = vector.extract_strided_slice %2068 {offsets = [4, 0], sizes = [1, 128], strides = [1, 1]} : vector<8x128xf32> to vector<1x128xf32>
    %2091 = vector.broadcast %2090 : vector<1x128xf32> to vector<8x128xf32>
    %2092 = arith.mulf %1957, %2091 : vector<8x128xf32>
    %2093 = vector.extract_strided_slice %2068 {offsets = [5, 0], sizes = [1, 128], strides = [1, 1]} : vector<8x128xf32> to vector<1x128xf32>
    %2094 = vector.broadcast %2093 : vector<1x128xf32> to vector<8x128xf32>
    %2095 = arith.mulf %1960, %2094 : vector<8x128xf32>
    %2096 = arith.addf %2092, %2095 : vector<8x128xf32>
    %2097 = vector.extract_strided_slice %2068 {offsets = [6, 0], sizes = [1, 128], strides = [1, 1]} : vector<8x128xf32> to vector<1x128xf32>
    %2098 = vector.broadcast %2097 : vector<1x128xf32> to vector<8x128xf32>
    %2099 = arith.mulf %1963, %2098 : vector<8x128xf32>
    %2100 = arith.addf %2096, %2099 : vector<8x128xf32>
    %2101 = vector.extract_strided_slice %2068 {offsets = [7, 0], sizes = [1, 128], strides = [1, 1]} : vector<8x128xf32> to vector<1x128xf32>
    %2102 = vector.broadcast %2101 : vector<1x128xf32> to vector<8x128xf32>
    %2103 = arith.mulf %1966, %2102 : vector<8x128xf32>
    %2104 = arith.addf %2100, %2103 : vector<8x128xf32>
    %2105 = arith.subf %3, %2104 : vector<8x128xf32>
    %2106 = vector.extract_strided_slice %2068 {offsets = [4, 0], sizes = [4, 128], strides = [1, 1]} : vector<8x128xf32> to vector<4x128xf32>
    %cst_113 = arith.constant dense<0.000000e+00> : vector<8x4xf32>
    %2107 = tpu.matmul %2105, %2106, %cst_113 {dimension_numbers = #tpu.dot_dimension_numbers<[1], [1], [0], [0], [0, 0, 1, 0], [], []>} : vector<8x128xf32>, vector<4x128xf32>, vector<8x4xf32> -> vector<8x4xf32>
    %2108 = vector.broadcast %1916 : f32 to vector<8x4xf32>
    %2109 = arith.mulf %2108, %2107 : vector<8x4xf32>
    %2110 = arith.addf %1914, %2109 : vector<8x4xf32>
    %2111 = arith.mulf %2089, %2089 : vector<8x4xf32>
    %cst_114 = arith.constant dense<0.000000e+00> : vector<8xf32>
    %2112 = vector.multi_reduction <add>, %2111, %cst_114 [1] : vector<8x4xf32> to vector<8xf32>
    %2113 = vector.shape_cast %2112 : vector<8xf32> to vector<8x1xf32>
    %2114 = arith.mulf %2110, %2110 : vector<8x4xf32>
    %cst_115 = arith.constant dense<0.000000e+00> : vector<8xf32>
    %2115 = vector.multi_reduction <add>, %2114, %cst_115 [1] : vector<8x4xf32> to vector<8xf32>
    %2116 = vector.shape_cast %2115 : vector<8xf32> to vector<8x1xf32>
    %2117 = arith.addf %2113, %2116 : vector<8x1xf32>
    %cst_116 = arith.constant 1.000000e+00 : f32
    %2118 = vector.broadcast %cst_116 : f32 to vector<8x1xf32>
    %2119 = arith.cmpf ogt, %2117, %2118 : vector<8x1xf32>
    %2120 = math.rsqrt %2117 : vector<8x1xf32>
    %cst_117 = arith.constant 1.000000e+00 : f32
    %2121 = vector.broadcast %cst_117 : f32 to vector<8x1xf32>
    %2122 = arith.select %2119, %2120, %2121 : vector<8x1xi1>, vector<8x1xf32>
    %2123 = vector.broadcast %2122 : vector<8x1xf32> to vector<8x4xf32>
    %2124 = arith.mulf %2089, %2123 : vector<8x4xf32>
    %2125 = vector.broadcast %2122 : vector<8x1xf32> to vector<8x4xf32>
    %2126 = arith.mulf %2110, %2125 : vector<8x4xf32>
    %2127 = vector.extract_strided_slice %2068 {offsets = [0, 0], sizes = [4, 128], strides = [1, 1]} : vector<8x128xf32> to vector<4x128xf32>
    %c0_118 = arith.constant 0 : index
    %c0_119 = arith.constant 0 : index
    %c0_120 = arith.constant 0 : index
    %2128 = vector.load %arg4[%c0_118, %c0_119, %c0_120] : memref<2x4x128xf32, #tpu.memory_space<vmem>>, vector<1x4x128xf32>
    %2129 = vector.shape_cast %2128 : vector<1x4x128xf32> to vector<4x128xf32>
    %2130 = vector.shape_cast %2127 : vector<4x128xf32> to vector<1x4x128xf32>
    tpu.vector_store %arg4[%c0_118, %c0_119, %c0_120], %2130 {strides = array<i32>} : memref<2x4x128xf32, #tpu.memory_space<vmem>>, vector<1x4x128xf32>,
    %c0_121 = arith.constant 0 : index
    %c0_122 = arith.constant 0 : index
    %c0_123 = arith.constant 0 : index
    %2131 = vector.load %arg5[%c0_121, %c0_122, %c0_123] : memref<2x8x4xf32, #tpu.memory_space<vmem>>, vector<1x8x4xf32>
    %2132 = vector.shape_cast %2131 : vector<1x8x4xf32> to vector<8x4xf32>
    %2133 = vector.shape_cast %2124 : vector<8x4xf32> to vector<1x8x4xf32>
    tpu.vector_store %arg5[%c0_121, %c0_122, %c0_123], %2133 {strides = array<i32>} : memref<2x8x4xf32, #tpu.memory_space<vmem>>, vector<1x8x4xf32>,
    %2134 = vector.extract_strided_slice %2068 {offsets = [4, 0], sizes = [4, 128], strides = [1, 1]} : vector<8x128xf32> to vector<4x128xf32>
    %c1_124 = arith.constant 1 : index
    %c0_125 = arith.constant 0 : index
    %c0_126 = arith.constant 0 : index
    %2135 = vector.load %arg4[%c1_124, %c0_125, %c0_126] : memref<2x4x128xf32, #tpu.memory_space<vmem>>, vector<1x4x128xf32>
    %2136 = vector.shape_cast %2135 : vector<1x4x128xf32> to vector<4x128xf32>
    %2137 = vector.shape_cast %2134 : vector<4x128xf32> to vector<1x4x128xf32>
    tpu.vector_store %arg4[%c1_124, %c0_125, %c0_126], %2137 {strides = array<i32>} : memref<2x4x128xf32, #tpu.memory_space<vmem>>, vector<1x4x128xf32>,
    %c1_127 = arith.constant 1 : index
    %c0_128 = arith.constant 0 : index
    %c0_129 = arith.constant 0 : index
    %2138 = vector.load %arg5[%c1_127, %c0_128, %c0_129] : memref<2x8x4xf32, #tpu.memory_space<vmem>>, vector<1x8x4xf32>
    %2139 = vector.shape_cast %2138 : vector<1x8x4xf32> to vector<8x4xf32>
    %2140 = vector.shape_cast %2126 : vector<8x4xf32> to vector<1x8x4xf32>
    tpu.vector_store %arg5[%c1_127, %c0_128, %c0_129], %2140 {strides = array<i32>} : memref<2x8x4xf32, #tpu.memory_space<vmem>>, vector<1x8x4xf32>,
    return
  }
}

</mosaic_0001>

<llo_original>
// kernel: tpu_custom_call.1
$region0: #{tpu_custom_call.1}
  #allocation0 [shape = 'u32[]', space=smem, size = 0x4, offset = 0x4, fixed_abs, tag = 'smem constant byte address 0x4 - core index']
  #allocation1 [shape = 'u32[72,128]{1,0:T(1,128)}', space=vmem, size = 0x9000, scoped, tag = 'internal scratch']
  %s0 = inlined_call_operand.vmem [shape: f32[2,8,128], index: 0, kind: input, shape index: {}]
  %s1 = inlined_call_operand.vmem [shape: f32[10,4,8], index: 1, kind: input, shape index: {}]
  %s2 = inlined_call_operand.vmem [shape: f32[10], index: 2, kind: input, shape index: {}]
  %s3 = inlined_call_operand.vmem [shape: f32[10], index: 3, kind: input, shape index: {}]
  %s4 = inlined_call_operand.hbm [shape: f32[2,4,128], index: 4, kind: output, shape index: {0}]
  %s5 = inlined_call_operand.vmem [shape: f32[2,8,4], index: 5, kind: output, shape index: {1}]
  %6 = xla_tuple %s4, %s5
  %s7 = sld [smem:[#allocation0]]
  $region42: #{tpu_custom_call.1} parent=0
    _
  %s9 = ssub.s32 1, %s7
  %s10 = scalar_select 0, %s9, %s7
  $region1: #{tpu_custom_call.1} parent=0
    #allocation2 [shape = 'u8[512]{0}', space=smem, size = 0x200, scoped, tag = 'input window, operand 2, single buffered']
    #allocation3 [shape = 's32[1]{0}', space=sflag, size = 0x4, scoped, tag = 'scoped memory for tpu_custom_call.1']
    #allocation4 [shape = 's32[1]{0}', space=sflag, size = 0x4, scoped, tag = 'scoped memory for tpu_custom_call.1']
    #allocation5 [shape = 'u8[512]{0}', space=smem, size = 0x200, scoped, tag = 'input window, operand 3, single buffered']
    #allocation6 [shape = 's32[1]{0}', space=sflag, size = 0x4, scoped, tag = 'scoped memory for tpu_custom_call.1']
    #allocation7 [shape = 'u8[4096]{0}', space=vmem, size = 0x1000, scoped, tag = 'output window, operand 0, single buffered']
    %11 = vsyncpa [#allocation4], 0
    %12 = vsyncpa [#allocation6], 0
    %13 = vsyncpa [#allocation3], 0
    // Predicated region
    $region2: #{tpu_custom_call.1} parent=1 // pred_check
      _
    $region3: #{tpu_custom_call.1} parent=1 // pred_check_branch
      %15 = sbr.rel (0) target = $region5
    $region4: #{tpu_custom_call.1} parent=1 // pred_region
      _
    $region5: #{tpu_custom_call.1} parent=1 // pred_fallthru
      _
    // Predicated region
    $region6: #{tpu_custom_call.1} parent=1 // pred_check
      _
    $region7: #{tpu_custom_call.1} parent=1 // pred_check_branch
      %17 = sbr.rel (0) target = $region9
    $region8: #{tpu_custom_call.1} parent=1 // pred_region
      _
    $region9: #{tpu_custom_call.1} parent=1 // pred_fallthru
      _
    // Predicated region
    $region10: #{tpu_custom_call.1} parent=1 // pred_check
      _
    $region11: #{tpu_custom_call.1} parent=1 // pred_check_branch
      %19 = sbr.rel (0) target = $region13
    $region12: #{tpu_custom_call.1} parent=1 // pred_region
      %21 = vsyncadd [#allocation4], 0
      %s23 = sshll.u32 %s2, 4
      %s24 = int_to_ptr.vmem [resolvable:$true] %s23
      %26 = dma.vmem_to_smem %s24, 16, [#allocation2], [#allocation4]
    $region13: #{tpu_custom_call.1} parent=1 // pred_fallthru
      _
    // Predicated region
    $region14: #{tpu_custom_call.1} parent=1 // pred_check
      _
    $region15: #{tpu_custom_call.1} parent=1 // pred_check_branch
      %28 = sbr.rel (0) target = $region17
    $region16: #{tpu_custom_call.1} parent=1 // pred_region
      %30 = vsyncadd [#allocation6], 0
      %s32 = sshll.u32 %s3, 4
      %s33 = int_to_ptr.vmem [resolvable:$true] %s32
      %35 = dma.vmem_to_smem %s33, 16, [#allocation5], [#allocation6]
    $region17: #{tpu_custom_call.1} parent=1 // pred_fallthru
      _
    // Predicated region
    $region18: #{tpu_custom_call.1} parent=1 // pred_check
      _
    $region19: #{tpu_custom_call.1} parent=1 // pred_check_branch
      %37 = sbr.rel (0) target = $region21
    $region20: #{tpu_custom_call.1} parent=1 // pred_region
      %39 = dma.done [#allocation4], 16
    $region21: #{tpu_custom_call.1} parent=1 // pred_fallthru
      _
    // Predicated region
    $region22: #{tpu_custom_call.1} parent=1 // pred_check
      _
    $region23: #{tpu_custom_call.1} parent=1 // pred_check_branch
      %41 = sbr.rel (0) target = $region25
    $region24: #{tpu_custom_call.1} parent=1 // pred_region
      %43 = dma.done [#allocation6], 16
    $region25: #{tpu_custom_call.1} parent=1 // pred_fallthru
      _
    %44 = sfence
    %v45 = vld [vmem:[%s0] sm:$0xff]
    %s46 = scalar_lea.vmem %s0, 8
    %v47 = vld [vmem:[%s46] sm:$0xff]
    %s48 = sld [smem:[#allocation2]]
    %s49 = sld [smem:[#allocation5]]
    %v50 = vld [vmem:[%s1] sm:$0xf]
    %52 = vset.pattern.permute.xlu0 0
    %53 = vperm.xlu0 %52, %v50
    %v54 = vpop.permute.xlu0 %53
    %56 = vset.pattern.permute.xlu0 1
    %57 = vperm.xlu0 %56, %v50
    %v58 = vpop.permute.xlu0 %57
    %60 = vset.pattern.permute.xlu0 2
    %61 = vperm.xlu0 %60, %v50
    %v62 = vpop.permute.xlu0 %61
    %64 = vset.pattern.permute.xlu0 3
    %65 = vperm.xlu0 %64, %v50
    %v66 = vpop.permute.xlu0 %65
    %68 = vset.pattern.permute.xlu0 4
    %69 = vperm.xlu0 %68, %v50
    %v70 = vpop.permute.xlu0 %69
    %72 = vset.pattern.permute.xlu0 5
    %73 = vperm.xlu0 %72, %v50
    %v74 = vpop.permute.xlu0 %73
    %76 = vset.pattern.permute.xlu0 6
    %77 = vperm.xlu0 %76, %v50
    %v78 = vpop.permute.xlu0 %77
    %80 = vset.pattern.permute.xlu0 7
    %81 = vperm.xlu0 %80, %v50
    %v82 = vpop.permute.xlu0 %81
    %v84 = vsub.f32 0.0, %v45
    %v85 = vsub.f32 0.0, %v47
    %v86 = vperm.slane %v84, 0
    %v87 = vmul.f32 %v54, %v86
    %v88 = vperm.slane %v84, 1
    %v89 = vmul.f32 %v58, %v88
    %v90 = vadd.f32 %v87, %v89
    %v91 = vperm.slane %v84, 2
    %v92 = vmul.f32 %v62, %v91
    %v93 = vadd.f32 %v90, %v92
    %v94 = vperm.slane %v84, 3
    %v95 = vmul.f32 %v66, %v94
    %v96 = vadd.f32 %v93, %v95
    %v97 = vperm.slane %v84, 4
    %v98 = vmul.f32 %v70, %v97
    %v99 = vadd.f32 %v96, %v98
    %v100 = vperm.slane %v84, 5
    %v101 = vmul.f32 %v74, %v100
    %v102 = vadd.f32 %v99, %v101
    %v103 = vperm.slane %v84, 6
    %v104 = vmul.f32 %v78, %v103
    %v105 = vadd.f32 %v102, %v104
    %v106 = vperm.slane %v84, 7
    %v107 = vmul.f32 %v82, %v106
    %v108 = vadd.f32 %v105, %v107
    %v109 = vperm.slane %v85, 0
    %v110 = vmul.f32 %v54, %v109
    %v111 = vperm.slane %v85, 1
    %v112 = vmul.f32 %v58, %v111
    %v113 = vadd.f32 %v110, %v112
    %v114 = vperm.slane %v85, 2
    %v115 = vmul.f32 %v62, %v114
    %v116 = vadd.f32 %v113, %v115
    %v117 = vperm.slane %v85, 3
    %v118 = vmul.f32 %v66, %v117
    %v119 = vadd.f32 %v116, %v118
    %v120 = vperm.slane %v85, 4
    %v121 = vmul.f32 %v70, %v120
    %v122 = vadd.f32 %v119, %v121
    %v123 = vperm.slane %v85, 5
    %v124 = vmul.f32 %v74, %v123
    %v125 = vadd.f32 %v122, %v124
    %v126 = vperm.slane %v85, 6
    %v127 = vmul.f32 %v78, %v126
    %v128 = vadd.f32 %v125, %v127
    %v129 = vperm.slane %v85, 7
    %v130 = vmul.f32 %v82, %v129
    %v131 = vadd.f32 %v128, %v130
    %v133 = vrot.slane %v131, 4
    %vm135 = vcmask 1043456
    %v136 = vsel %vm135, %v108, %v133
    %v137 = vsub.f32 0.0, %v136
    %s138 = ssub.f32 0.0, %s48
    %v139 = vstv %s138
    %v140 = vmax.f32 %v139, %v137
    %v141 = vstv %s48
    %v142 = vmin.f32 %v141, %v140
    %v143 = vsub.f32 %v137, %v142
    %v144 = vperm.slane %v143, 0
    %v145 = vmul.f32 %v144, 0.35355338
    %v146 = vperm.slane %v143, 1
    %v147 = vmul.f32 %v146, 0.35355338
    %v148 = vadd.f32 %v145, %v147
    %v149 = vperm.slane %v143, 2
    %v150 = vmul.f32 %v149, 0.35355338
    %v151 = vadd.f32 %v148, %v150
    %v152 = vperm.slane %v143, 3
    %v153 = vmul.f32 %v152, 0.35355338
    %v154 = vadd.f32 %v151, %v153
    %v155 = vsub.f32 %v45, %v154
    %156 = vmatpush.xpose.msra.mxu0 0.0
    %157 = vmatpush.xpose.msra.mxu0 0.0
    %158 = vmatpush.xpose.msra.mxu0 0.0
    %159 = vmatpush.xpose.msra.mxu0 0.0
    %160 = vmatpush.xpose.msra.mxu0 0.0
    %161 = vmatpush.xpose.msra.mxu0 0.0
    %162 = vmatpush.xpose.msra.mxu0 0.0
    %163 = vmatpush.xpose.msra.mxu0 0.0
    %164 = vmatpush.xpose.msra.mxu0 0.0
    %165 = vmatpush.xpose.msra.mxu0 0.0
    %166 = vmatpush.xpose.msra.mxu0 0.0
    %167 = vmatpush.xpose.msra.mxu0 0.0
    %168 = vmatpush.xpose.msra.mxu0 0.0
    %169 = vmatpush.xpose.msra.mxu0 0.0
    %170 = vmatpush.xpose.msra.mxu0 0.0
    %171 = vmatpush.xpose.msra.mxu0 %v143
    %172 = vmatmul.f32.gmra.mxu0 %v155
    %v173 = vpop.f32.mrf.mxu0
    %v174 = vadd.f32 0.0, %v173
    %175 = vdwg.mxu0
    %v176 = vstv %s49
    %v177 = vmul.f32 %v176, %v174
    %v178 = vadd.f32 %v177, 0.35355338
    %v179 = vperm.slane %v143, 4
    %v180 = vmul.f32 %v179, 0.35355338
    %v181 = vperm.slane %v143, 5
    %v182 = vmul.f32 %v181, 0.35355338
    %v183 = vadd.f32 %v180, %v182
    %v184 = vperm.slane %v143, 6
    %v185 = vmul.f32 %v184, 0.35355338
    %v186 = vadd.f32 %v183, %v185
    %v187 = vperm.slane %v143, 7
    %v188 = vmul.f32 %v187, 0.35355338
    %v189 = vadd.f32 %v186, %v188
    %v190 = vsub.f32 %v47, %v189
    %v192 = vrot.slane %v143, 4
    %194 = vmatpush.xpose.msra.mxu0 0.0
    %195 = vmatpush.xpose.msra.mxu0 0.0
    %196 = vmatpush.xpose.msra.mxu0 0.0
    %197 = vmatpush.xpose.msra.mxu0 0.0
    %198 = vmatpush.xpose.msra.mxu0 0.0
    %199 = vmatpush.xpose.msra.mxu0 0.0
    %200 = vmatpush.xpose.msra.mxu0 0.0
    %201 = vmatpush.xpose.msra.mxu0 0.0
    %202 = vmatpush.xpose.msra.mxu0 0.0
    %203 = vmatpush.xpose.msra.mxu0 0.0
    %204 = vmatpush.xpose.msra.mxu0 0.0
    %205 = vmatpush.xpose.msra.mxu0 0.0
    %206 = vmatpush.xpose.msra.mxu0 0.0
    %207 = vmatpush.xpose.msra.mxu0 0.0
    %208 = vmatpush.xpose.msra.mxu0 0.0
    %209 = vmatpush.xpose.msra.mxu0 %v192
    %210 = vmatmul.f32.gmra.mxu0 %v190
    %v211 = vpop.f32.mrf.mxu0
    %v212 = vadd.f32 0.0, %v211
    %213 = vdwg.mxu0
    %v214 = vmul.f32 %v176, %v212
    %v215 = vadd.f32 %v214, 0.35355338
    %v216 = vmul.f32 %v178, %v178
    %vm217 = vcmask 31744
    %v218 = vsel %vm217, %v216, 0.0
    %219 = vadd.xlane.f32.xlu0 %v218
    %v220 = vpop.xlane.xlu0 %219
    %v221 = vmul.f32 %v215, %v215
    %v222 = vsel %vm217, %v221, 0.0
    %223 = vadd.xlane.f32.xlu0 %v222
    %v224 = vpop.xlane.xlu0 %223
    %v225 = vadd.f32 %v220, %v224
    %vm226 = vcmp.gt.f32.partialorder %v225, 1.0
    %v227 = vrsqrt.pop %v225
    %v228 = vmul.f32 %v227, %v225
    %v229 = vmul.f32 %v228, %v227
    %v230 = vmul.f32 0.5, %v229
    %v231 = vsub.f32 1.5, %v230
    %v232 = vmul.f32 %v227, %v231
    %vm233 = vweird.f32 %v225
    %vm234 = vweird.f32 %v227
    %vm235 = vmor %vm233, %vm234
    %v236 = vsel %vm235, %v227, %v232
    %v237 = vsel %vm226, %v236, 1.0
    %v238 = vmul.f32 %v178, %v237
    %v239 = vmul.f32 %v215, %v237
    %s240 = sld [smem:[#allocation2 + $0x1]]
    %s241 = sld [smem:[#allocation5 + $0x1]]
    %s242 = scalar_lea.vmem %s1, 4
    %v243 = vld [vmem:[%s242] sm:$0xf]
    %245 = vset.pattern.permute.xlu0 0
    %246 = vperm.xlu0 %245, %v243
    %v247 = vpop.permute.xlu0 %246
    %249 = vset.pattern.permute.xlu0 1
    %250 = vperm.xlu0 %249, %v243
    %v251 = vpop.permute.xlu0 %250
    %253 = vset.pattern.permute.xlu0 2
    %254 = vperm.xlu0 %253, %v243
    %v255 = vpop.permute.xlu0 %254
    %257 = vset.pattern.permute.xlu0 3
    %258 = vperm.xlu0 %257, %v243
    %v259 = vpop.permute.xlu0 %258
    %261 = vset.pattern.permute.xlu0 4
    %262 = vperm.xlu0 %261, %v243
    %v263 = vpop.permute.xlu0 %262
    %265 = vset.pattern.permute.xlu0 5
    %266 = vperm.xlu0 %265, %v243
    %v267 = vpop.permute.xlu0 %266
    %269 = vset.pattern.permute.xlu0 6
    %270 = vperm.xlu0 %269, %v243
    %v271 = vpop.permute.xlu0 %270
    %273 = vset.pattern.permute.xlu0 7
    %274 = vperm.xlu0 %273, %v243
    %v275 = vpop.permute.xlu0 %274
    %278 = vset.pattern.permute.xlu0 0
    %279 = vperm.xlu0 %278, %v238
    %v280 = vpop.permute.xlu0 %279
    %282 = vset.pattern.permute.xlu0 1
    %283 = vperm.xlu0 %282, %v238
    %v284 = vpop.permute.xlu0 %283
    %286 = vset.pattern.permute.xlu0 2
    %287 = vperm.xlu0 %286, %v238
    %v288 = vpop.permute.xlu0 %287
    %290 = vset.pattern.permute.xlu0 3
    %291 = vperm.xlu0 %290, %v238
    %v292 = vpop.permute.xlu0 %291
    %295 = vset.pattern.permute.xlu0 0
    %296 = vperm.xlu0 %295, %v239
    %v297 = vpop.permute.xlu0 %296
    %299 = vset.pattern.permute.xlu0 1
    %300 = vperm.xlu0 %299, %v239
    %v301 = vpop.permute.xlu0 %300
    %303 = vset.pattern.permute.xlu0 2
    %304 = vperm.xlu0 %303, %v239
    %v305 = vpop.permute.xlu0 %304
    %307 = vset.pattern.permute.xlu0 3
    %308 = vperm.xlu0 %307, %v239
    %v309 = vpop.permute.xlu0 %308
    %v311 = vmul.f32 %v280, %v144
    %v312 = vmul.f32 %v284, %v146
    %v313 = vadd.f32 %v311, %v312
    %v314 = vmul.f32 %v288, %v149
    %v315 = vadd.f32 %v313, %v314
    %v316 = vmul.f32 %v292, %v152
    %v317 = vadd.f32 %v315, %v316
    %v318 = vsub.f32 %v317, %v45
    %v319 = vmul.f32 %v297, %v179
    %v320 = vmul.f32 %v301, %v181
    %v321 = vadd.f32 %v319, %v320
    %v322 = vmul.f32 %v305, %v184
    %v323 = vadd.f32 %v321, %v322
    %v324 = vmul.f32 %v309, %v187
    %v325 = vadd.f32 %v323, %v324
    %v326 = vsub.f32 %v325, %v47
    %v327 = vperm.slane %v318, 0
    %v328 = vmul.f32 %v247, %v327
    %v329 = vperm.slane %v318, 1
    %v330 = vmul.f32 %v251, %v329
    %v331 = vadd.f32 %v328, %v330
    %v332 = vperm.slane %v318, 2
    %v333 = vmul.f32 %v255, %v332
    %v334 = vadd.f32 %v331, %v333
    %v335 = vperm.slane %v318, 3
    %v336 = vmul.f32 %v259, %v335
    %v337 = vadd.f32 %v334, %v336
    %v338 = vperm.slane %v318, 4
    %v339 = vmul.f32 %v263, %v338
    %v340 = vadd.f32 %v337, %v339
    %v341 = vperm.slane %v318, 5
    %v342 = vmul.f32 %v267, %v341
    %v343 = vadd.f32 %v340, %v342
    %v344 = vperm.slane %v318, 6
    %v345 = vmul.f32 %v271, %v344
    %v346 = vadd.f32 %v343, %v345
    %v347 = vperm.slane %v318, 7
    %v348 = vmul.f32 %v275, %v347
    %v349 = vadd.f32 %v346, %v348
    %v350 = vperm.slane %v326, 0
    %v351 = vmul.f32 %v247, %v350
    %v352 = vperm.slane %v326, 1
    %v353 = vmul.f32 %v251, %v352
    %v354 = vadd.f32 %v351, %v353
    %v355 = vperm.slane %v326, 2
    %v356 = vmul.f32 %v255, %v355
    %v357 = vadd.f32 %v354, %v356
    %v358 = vperm.slane %v326, 3
    %v359 = vmul.f32 %v259, %v358
    %v360 = vadd.f32 %v357, %v359
    %v361 = vperm.slane %v326, 4
    %v362 = vmul.f32 %v263, %v361
    %v363 = vadd.f32 %v360, %v362
    %v364 = vperm.slane %v326, 5
    %v365 = vmul.f32 %v267, %v364
    %v366 = vadd.f32 %v363, %v365
    %v367 = vperm.slane %v326, 6
    %v368 = vmul.f32 %v271, %v367
    %v369 = vadd.f32 %v366, %v368
    %v370 = vperm.slane %v326, 7
    %v371 = vmul.f32 %v275, %v370
    %v372 = vadd.f32 %v369, %v371
    %v374 = vrot.slane %v372, 4
    %v376 = vsel %vm135, %v349, %v374
    %v377 = vsub.f32 %v143, %v376
    %s378 = ssub.f32 0.0, %s240
    %v379 = vstv %s378
    %v380 = vmax.f32 %v379, %v377
    %v381 = vstv %s240
    %v382 = vmin.f32 %v381, %v380
    %v383 = vsub.f32 %v377, %v382
    %v384 = vperm.slane %v383, 0
    %v385 = vmul.f32 %v280, %v384
    %v386 = vperm.slane %v383, 1
    %v387 = vmul.f32 %v284, %v386
    %v388 = vadd.f32 %v385, %v387
    %v389 = vperm.slane %v383, 2
    %v390 = vmul.f32 %v288, %v389
    %v391 = vadd.f32 %v388, %v390
    %v392 = vperm.slane %v383, 3
    %v393 = vmul.f32 %v292, %v392
    %v394 = vadd.f32 %v391, %v393
    %v395 = vsub.f32 %v45, %v394
    %396 = vmatpush.xpose.msra.mxu0 0.0
    %397 = vmatpush.xpose.msra.mxu0 0.0
    %398 = vmatpush.xpose.msra.mxu0 0.0
    %399 = vmatpush.xpose.msra.mxu0 0.0
    %400 = vmatpush.xpose.msra.mxu0 0.0
    %401 = vmatpush.xpose.msra.mxu0 0.0
    %402 = vmatpush.xpose.msra.mxu0 0.0
    %403 = vmatpush.xpose.msra.mxu0 0.0
    %404 = vmatpush.xpose.msra.mxu0 0.0
    %405 = vmatpush.xpose.msra.mxu0 0.0
    %406 = vmatpush.xpose.msra.mxu0 0.0
    %407 = vmatpush.xpose.msra.mxu0 0.0
    %408 = vmatpush.xpose.msra.mxu0 0.0
    %409 = vmatpush.xpose.msra.mxu0 0.0
    %410 = vmatpush.xpose.msra.mxu0 0.0
    %411 = vmatpush.xpose.msra.mxu0 %v383
    %412 = vmatmul.f32.gmra.mxu0 %v395
    %v413 = vpop.f32.mrf.mxu0
    %v414 = vadd.f32 0.0, %v413
    %415 = vdwg.mxu0
    %v416 = vstv %s241
    %v417 = vmul.f32 %v416, %v414
    %v418 = vadd.f32 %v238, %v417
    %v419 = vperm.slane %v383, 4
    %v420 = vmul.f32 %v297, %v419
    %v421 = vperm.slane %v383, 5
    %v422 = vmul.f32 %v301, %v421
    %v423 = vadd.f32 %v420, %v422
    %v424 = vperm.slane %v383, 6
    %v425 = vmul.f32 %v305, %v424
    %v426 = vadd.f32 %v423, %v425
    %v427 = vperm.slane %v383, 7
    %v428 = vmul.f32 %v309, %v427
    %v429 = vadd.f32 %v426, %v428
    %v430 = vsub.f32 %v47, %v429
    %v432 = vrot.slane %v383, 4
    %434 = vmatpush.xpose.msra.mxu0 0.0
    %435 = vmatpush.xpose.msra.mxu0 0.0
    %436 = vmatpush.xpose.msra.mxu0 0.0
    %437 = vmatpush.xpose.msra.mxu0 0.0
    %438 = vmatpush.xpose.msra.mxu0 0.0
    %439 = vmatpush.xpose.msra.mxu0 0.0
    %440 = vmatpush.xpose.msra.mxu0 0.0
    %441 = vmatpush.xpose.msra.mxu0 0.0
    %442 = vmatpush.xpose.msra.mxu0 0.0
    %443 = vmatpush.xpose.msra.mxu0 0.0
    %444 = vmatpush.xpose.msra.mxu0 0.0
    %445 = vmatpush.xpose.msra.mxu0 0.0
    %446 = vmatpush.xpose.msra.mxu0 0.0
    %447 = vmatpush.xpose.msra.mxu0 0.0
    %448 = vmatpush.xpose.msra.mxu0 0.0
    %449 = vmatpush.xpose.msra.mxu0 %v432
    %450 = vmatmul.f32.gmra.mxu0 %v430
    %v451 = vpop.f32.mrf.mxu0
    %v452 = vadd.f32 0.0, %v451
    %453 = vdwg.mxu0
    %v454 = vmul.f32 %v416, %v452
    %v455 = vadd.f32 %v239, %v454
    %v456 = vmul.f32 %v418, %v418
    %v457 = vsel %vm217, %v456, 0.0
    %458 = vadd.xlane.f32.xlu0 %v457
    %v459 = vpop.xlane.xlu0 %458
    %v460 = vmul.f32 %v455, %v455
    %v461 = vsel %vm217, %v460, 0.0
    %462 = vadd.xlane.f32.xlu0 %v461
    %v463 = vpop.xlane.xlu0 %462
    %v464 = vadd.f32 %v459, %v463
    %vm465 = vcmp.gt.f32.partialorder %v464, 1.0
    %v466 = vrsqrt.pop %v464
    %v467 = vmul.f32 %v466, %v464
    %v468 = vmul.f32 %v467, %v466
    %v469 = vmul.f32 0.5, %v468
    %v470 = vsub.f32 1.5, %v469
    %v471 = vmul.f32 %v466, %v470
    %vm472 = vweird.f32 %v464
    %vm473 = vweird.f32 %v466
    %vm474 = vmor %vm472, %vm473
    %v475 = vsel %vm474, %v466, %v471
    %v476 = vsel %vm465, %v475, 1.0
    %v477 = vmul.f32 %v418, %v476
    %v478 = vmul.f32 %v455, %v476
    %s479 = sld [smem:[#allocation2 + $0x2]]
    %s480 = sld [smem:[#allocation5 + $0x2]]
    %s481 = scalar_lea.vmem %s1, 8
    %v482 = vld [vmem:[%s481] sm:$0xf]
    %484 = vset.pattern.permute.xlu0 0
    %485 = vperm.xlu0 %484, %v482
    %v486 = vpop.permute.xlu0 %485
    %488 = vset.pattern.permute.xlu0 1
    %489 = vperm.xlu0 %488, %v482
    %v490 = vpop.permute.xlu0 %489
    %492 = vset.pattern.permute.xlu0 2
    %493 = vperm.xlu0 %492, %v482
    %v494 = vpop.permute.xlu0 %493
    %496 = vset.pattern.permute.xlu0 3
    %497 = vperm.xlu0 %496, %v482
    %v498 = vpop.permute.xlu0 %497
    %500 = vset.pattern.permute.xlu0 4
    %501 = vperm.xlu0 %500, %v482
    %v502 = vpop.permute.xlu0 %501
    %504 = vset.pattern.permute.xlu0 5
    %505 = vperm.xlu0 %504, %v482
    %v506 = vpop.permute.xlu0 %505
    %508 = vset.pattern.permute.xlu0 6
    %509 = vperm.xlu0 %508, %v482
    %v510 = vpop.permute.xlu0 %509
    %512 = vset.pattern.permute.xlu0 7
    %513 = vperm.xlu0 %512, %v482
    %v514 = vpop.permute.xlu0 %513
    %517 = vset.pattern.permute.xlu0 0
    %518 = vperm.xlu0 %517, %v477
    %v519 = vpop.permute.xlu0 %518
    %521 = vset.pattern.permute.xlu0 1
    %522 = vperm.xlu0 %521, %v477
    %v523 = vpop.permute.xlu0 %522
    %525 = vset.pattern.permute.xlu0 2
    %526 = vperm.xlu0 %525, %v477
    %v527 = vpop.permute.xlu0 %526
    %529 = vset.pattern.permute.xlu0 3
    %530 = vperm.xlu0 %529, %v477
    %v531 = vpop.permute.xlu0 %530
    %534 = vset.pattern.permute.xlu0 0
    %535 = vperm.xlu0 %534, %v478
    %v536 = vpop.permute.xlu0 %535
    %538 = vset.pattern.permute.xlu0 1
    %539 = vperm.xlu0 %538, %v478
    %v540 = vpop.permute.xlu0 %539
    %542 = vset.pattern.permute.xlu0 2
    %543 = vperm.xlu0 %542, %v478
    %v544 = vpop.permute.xlu0 %543
    %546 = vset.pattern.permute.xlu0 3
    %547 = vperm.xlu0 %546, %v478
    %v548 = vpop.permute.xlu0 %547
    %v550 = vmul.f32 %v519, %v384
    %v551 = vmul.f32 %v523, %v386
    %v552 = vadd.f32 %v550, %v551
    %v553 = vmul.f32 %v527, %v389
    %v554 = vadd.f32 %v552, %v553
    %v555 = vmul.f32 %v531, %v392
    %v556 = vadd.f32 %v554, %v555
    %v557 = vsub.f32 %v556, %v45
    %v558 = vmul.f32 %v536, %v419
    %v559 = vmul.f32 %v540, %v421
    %v560 = vadd.f32 %v558, %v559
    %v561 = vmul.f32 %v544, %v424
    %v562 = vadd.f32 %v560, %v561
    %v563 = vmul.f32 %v548, %v427
    %v564 = vadd.f32 %v562, %v563
    %v565 = vsub.f32 %v564, %v47
    %v566 = vperm.slane %v557, 0
    %v567 = vmul.f32 %v486, %v566
    %v568 = vperm.slane %v557, 1
    %v569 = vmul.f32 %v490, %v568
    %v570 = vadd.f32 %v567, %v569
    %v571 = vperm.slane %v557, 2
    %v572 = vmul.f32 %v494, %v571
    %v573 = vadd.f32 %v570, %v572
    %v574 = vperm.slane %v557, 3
    %v575 = vmul.f32 %v498, %v574
    %v576 = vadd.f32 %v573, %v575
    %v577 = vperm.slane %v557, 4
    %v578 = vmul.f32 %v502, %v577
    %v579 = vadd.f32 %v576, %v578
    %v580 = vperm.slane %v557, 5
    %v581 = vmul.f32 %v506, %v580
    %v582 = vadd.f32 %v579, %v581
    %v583 = vperm.slane %v557, 6
    %v584 = vmul.f32 %v510, %v583
    %v585 = vadd.f32 %v582, %v584
    %v586 = vperm.slane %v557, 7
    %v587 = vmul.f32 %v514, %v586
    %v588 = vadd.f32 %v585, %v587
    %v589 = vperm.slane %v565, 0
    %v590 = vmul.f32 %v486, %v589
    %v591 = vperm.slane %v565, 1
    %v592 = vmul.f32 %v490, %v591
    %v593 = vadd.f32 %v590, %v592
    %v594 = vperm.slane %v565, 2
    %v595 = vmul.f32 %v494, %v594
    %v596 = vadd.f32 %v593, %v595
    %v597 = vperm.slane %v565, 3
    %v598 = vmul.f32 %v498, %v597
    %v599 = vadd.f32 %v596, %v598
    %v600 = vperm.slane %v565, 4
    %v601 = vmul.f32 %v502, %v600
    %v602 = vadd.f32 %v599, %v601
    %v603 = vperm.slane %v565, 5
    %v604 = vmul.f32 %v506, %v603
    %v605 = vadd.f32 %v602, %v604
    %v606 = vperm.slane %v565, 6
    %v607 = vmul.f32 %v510, %v606
    %v608 = vadd.f32 %v605, %v607
    %v609 = vperm.slane %v565, 7
    %v610 = vmul.f32 %v514, %v609
    %v611 = vadd.f32 %v608, %v610
    %v613 = vrot.slane %v611, 4
    %v615 = vsel %vm135, %v588, %v613
    %v616 = vsub.f32 %v383, %v615
    %s617 = ssub.f32 0.0, %s479
    %v618 = vstv %s617
    %v619 = vmax.f32 %v618, %v616
    %v620 = vstv %s479
    %v621 = vmin.f32 %v620, %v619
    %v622 = vsub.f32 %v616, %v621
    %v623 = vperm.slane %v622, 0
    %v624 = vmul.f32 %v519, %v623
    %v625 = vperm.slane %v622, 1
    %v626 = vmul.f32 %v523, %v625
    %v627 = vadd.f32 %v624, %v626
    %v628 = vperm.slane %v622, 2
    %v629 = vmul.f32 %v527, %v628
    %v630 = vadd.f32 %v627, %v629
    %v631 = vperm.slane %v622, 3
    %v632 = vmul.f32 %v531, %v631
    %v633 = vadd.f32 %v630, %v632
    %v634 = vsub.f32 %v45, %v633
    %635 = vmatpush.xpose.msra.mxu0 0.0
    %636 = vmatpush.xpose.msra.mxu0 0.0
    %637 = vmatpush.xpose.msra.mxu0 0.0
    %638 = vmatpush.xpose.msra.mxu0 0.0
    %639 = vmatpush.xpose.msra.mxu0 0.0
    %640 = vmatpush.xpose.msra.mxu0 0.0
    %641 = vmatpush.xpose.msra.mxu0 0.0
    %642 = vmatpush.xpose.msra.mxu0 0.0
    %643 = vmatpush.xpose.msra.mxu0 0.0
    %644 = vmatpush.xpose.msra.mxu0 0.0
    %645 = vmatpush.xpose.msra.mxu0 0.0
    %646 = vmatpush.xpose.msra.mxu0 0.0
    %647 = vmatpush.xpose.msra.mxu0 0.0
    %648 = vmatpush.xpose.msra.mxu0 0.0
    %649 = vmatpush.xpose.msra.mxu0 0.0
    %650 = vmatpush.xpose.msra.mxu0 %v622
    %651 = vmatmul.f32.gmra.mxu0 %v634
    %v652 = vpop.f32.mrf.mxu0
    %v653 = vadd.f32 0.0, %v652
    %654 = vdwg.mxu0
    %v655 = vstv %s480
    %v656 = vmul.f32 %v655, %v653
    %v657 = vadd.f32 %v477, %v656
    %v658 = vperm.slane %v622, 4
    %v659 = vmul.f32 %v536, %v658
    %v660 = vperm.slane %v622, 5
    %v661 = vmul.f32 %v540, %v660
    %v662 = vadd.f32 %v659, %v661
    %v663 = vperm.slane %v622, 6
    %v664 = vmul.f32 %v544, %v663
    %v665 = vadd.f32 %v662, %v664
    %v666 = vperm.slane %v622, 7
    %v667 = vmul.f32 %v548, %v666
    %v668 = vadd.f32 %v665, %v667
    %v669 = vsub.f32 %v47, %v668
    %v671 = vrot.slane %v622, 4
    %673 = vmatpush.xpose.msra.mxu0 0.0
    %674 = vmatpush.xpose.msra.mxu0 0.0
    %675 = vmatpush.xpose.msra.mxu0 0.0
    %676 = vmatpush.xpose.msra.mxu0 0.0
    %677 = vmatpush.xpose.msra.mxu0 0.0
    %678 = vmatpush.xpose.msra.mxu0 0.0
    %679 = vmatpush.xpose.msra.mxu0 0.0
    %680 = vmatpush.xpose.msra.mxu0 0.0
    %681 = vmatpush.xpose.msra.mxu0 0.0
    %682 = vmatpush.xpose.msra.mxu0 0.0
    %683 = vmatpush.xpose.msra.mxu0 0.0
    %684 = vmatpush.xpose.msra.mxu0 0.0
    %685 = vmatpush.xpose.msra.mxu0 0.0
    %686 = vmatpush.xpose.msra.mxu0 0.0
    %687 = vmatpush.xpose.msra.mxu0 0.0
    %688 = vmatpush.xpose.msra.mxu0 %v671
    %689 = vmatmul.f32.gmra.mxu0 %v669
    %v690 = vpop.f32.mrf.mxu0
    %v691 = vadd.f32 0.0, %v690
    %692 = vdwg.mxu0
    %v693 = vmul.f32 %v655, %v691
    %v694 = vadd.f32 %v478, %v693
    %v695 = vmul.f32 %v657, %v657
    %v696 = vsel %vm217, %v695, 0.0
    %697 = vadd.xlane.f32.xlu0 %v696
    %v698 = vpop.xlane.xlu0 %697
    %v699 = vmul.f32 %v694, %v694
    %v700 = vsel %vm217, %v699, 0.0
    %701 = vadd.xlane.f32.xlu0 %v700
    %v702 = vpop.xlane.xlu0 %701
    %v703 = vadd.f32 %v698, %v702
    %vm704 = vcmp.gt.f32.partialorder %v703, 1.0
    %v705 = vrsqrt.pop %v703
    %v706 = vmul.f32 %v705, %v703
    %v707 = vmul.f32 %v706, %v705
    %v708 = vmul.f32 0.5, %v707
    %v709 = vsub.f32 1.5, %v708
    %v710 = vmul.f32 %v705, %v709
    %vm711 = vweird.f32 %v703
    %vm712 = vweird.f32 %v705
    %vm713 = vmor %vm711, %vm712
    %v714 = vsel %vm713, %v705, %v710
    %v715 = vsel %vm704, %v714, 1.0
    %v716 = vmul.f32 %v657, %v715
    %v717 = vmul.f32 %v694, %v715
    %s718 = sld [smem:[#allocation2 + $0x3]]
    %s719 = sld [smem:[#allocation5 + $0x3]]
    %s720 = scalar_lea.vmem %s1, 12
    %v721 = vld [vmem:[%s720] sm:$0xf]
    %723 = vset.pattern.permute.xlu0 0
    %724 = vperm.xlu0 %723, %v721
    %v725 = vpop.permute.xlu0 %724
    %727 = vset.pattern.permute.xlu0 1
    %728 = vperm.xlu0 %727, %v721
    %v729 = vpop.permute.xlu0 %728
    %731 = vset.pattern.permute.xlu0 2
    %732 = vperm.xlu0 %731, %v721
    %v733 = vpop.permute.xlu0 %732
    %735 = vset.pattern.permute.xlu0 3
    %736 = vperm.xlu0 %735, %v721
    %v737 = vpop.permute.xlu0 %736
    %739 = vset.pattern.permute.xlu0 4
    %740 = vperm.xlu0 %739, %v721
    %v741 = vpop.permute.xlu0 %740
    %743 = vset.pattern.permute.xlu0 5
    %744 = vperm.xlu0 %743, %v721
    %v745 = vpop.permute.xlu0 %744
    %747 = vset.pattern.permute.xlu0 6
    %748 = vperm.xlu0 %747, %v721
    %v749 = vpop.permute.xlu0 %748
    %751 = vset.pattern.permute.xlu0 7
    %752 = vperm.xlu0 %751, %v721
    %v753 = vpop.permute.xlu0 %752
    %756 = vset.pattern.permute.xlu0 0
    %757 = vperm.xlu0 %756, %v716
    %v758 = vpop.permute.xlu0 %757
    %760 = vset.pattern.permute.xlu0 1
    %761 = vperm.xlu0 %760, %v716
    %v762 = vpop.permute.xlu0 %761
    %764 = vset.pattern.permute.xlu0 2
    %765 = vperm.xlu0 %764, %v716
    %v766 = vpop.permute.xlu0 %765
    %768 = vset.pattern.permute.xlu0 3
    %769 = vperm.xlu0 %768, %v716
    %v770 = vpop.permute.xlu0 %769
    %773 = vset.pattern.permute.xlu0 0
    %774 = vperm.xlu0 %773, %v717
    %v775 = vpop.permute.xlu0 %774
    %777 = vset.pattern.permute.xlu0 1
    %778 = vperm.xlu0 %777, %v717
    %v779 = vpop.permute.xlu0 %778
    %781 = vset.pattern.permute.xlu0 2
    %782 = vperm.xlu0 %781, %v717
    %v783 = vpop.permute.xlu0 %782
    %785 = vset.pattern.permute.xlu0 3
    %786 = vperm.xlu0 %785, %v717
    %v787 = vpop.permute.xlu0 %786
    %v789 = vmul.f32 %v758, %v623
    %v790 = vmul.f32 %v762, %v625
    %v791 = vadd.f32 %v789, %v790
    %v792 = vmul.f32 %v766, %v628
    %v793 = vadd.f32 %v791, %v792
    %v794 = vmul.f32 %v770, %v631
    %v795 = vadd.f32 %v793, %v794
    %v796 = vsub.f32 %v795, %v45
    %v797 = vmul.f32 %v775, %v658
    %v798 = vmul.f32 %v779, %v660
    %v799 = vadd.f32 %v797, %v798
    %v800 = vmul.f32 %v783, %v663
    %v801 = vadd.f32 %v799, %v800
    %v802 = vmul.f32 %v787, %v666
    %v803 = vadd.f32 %v801, %v802
    %v804 = vsub.f32 %v803, %v47
    %v805 = vperm.slane %v796, 0
    %v806 = vmul.f32 %v725, %v805
    %v807 = vperm.slane %v796, 1
    %v808 = vmul.f32 %v729, %v807
    %v809 = vadd.f32 %v806, %v808
    %v810 = vperm.slane %v796, 2
    %v811 = vmul.f32 %v733, %v810
    %v812 = vadd.f32 %v809, %v811
    %v813 = vperm.slane %v796, 3
    %v814 = vmul.f32 %v737, %v813
    %v815 = vadd.f32 %v812, %v814
    %v816 = vperm.slane %v796, 4
    %v817 = vmul.f32 %v741, %v816
    %v818 = vadd.f32 %v815, %v817
    %v819 = vperm.slane %v796, 5
    %v820 = vmul.f32 %v745, %v819
    %v821 = vadd.f32 %v818, %v820
    %v822 = vperm.slane %v796, 6
    %v823 = vmul.f32 %v749, %v822
    %v824 = vadd.f32 %v821, %v823
    %v825 = vperm.slane %v796, 7
    %v826 = vmul.f32 %v753, %v825
    %v827 = vadd.f32 %v824, %v826
    %v828 = vperm.slane %v804, 0
    %v829 = vmul.f32 %v725, %v828
    %v830 = vperm.slane %v804, 1
    %v831 = vmul.f32 %v729, %v830
    %v832 = vadd.f32 %v829, %v831
    %v833 = vperm.slane %v804, 2
    %v834 = vmul.f32 %v733, %v833
    %v835 = vadd.f32 %v832, %v834
    %v836 = vperm.slane %v804, 3
    %v837 = vmul.f32 %v737, %v836
    %v838 = vadd.f32 %v835, %v837
    %v839 = vperm.slane %v804, 4
    %v840 = vmul.f32 %v741, %v839
    %v841 = vadd.f32 %v838, %v840
    %v842 = vperm.slane %v804, 5
    %v843 = vmul.f32 %v745, %v842
    %v844 = vadd.f32 %v841, %v843
    %v845 = vperm.slane %v804, 6
    %v846 = vmul.f32 %v749, %v845
    %v847 = vadd.f32 %v844, %v846
    %v848 = vperm.slane %v804, 7
    %v849 = vmul.f32 %v753, %v848
    %v850 = vadd.f32 %v847, %v849
    %v852 = vrot.slane %v850, 4
    %v854 = vsel %vm135, %v827, %v852
    %v855 = vsub.f32 %v622, %v854
    %s856 = ssub.f32 0.0, %s718
    %v857 = vstv %s856
    %v858 = vmax.f32 %v857, %v855
    %v859 = vstv %s718
    %v860 = vmin.f32 %v859, %v858
    %v861 = vsub.f32 %v855, %v860
    %v862 = vperm.slane %v861, 0
    %v863 = vmul.f32 %v758, %v862
    %v864 = vperm.slane %v861, 1
    %v865 = vmul.f32 %v762, %v864
    %v866 = vadd.f32 %v863, %v865
    %v867 = vperm.slane %v861, 2
    %v868 = vmul.f32 %v766, %v867
    %v869 = vadd.f32 %v866, %v868
    %v870 = vperm.slane %v861, 3
    %v871 = vmul.f32 %v770, %v870
    %v872 = vadd.f32 %v869, %v871
    %v873 = vsub.f32 %v45, %v872
    %874 = vmatpush.xpose.msra.mxu0 0.0
    %875 = vmatpush.xpose.msra.mxu0 0.0
    %876 = vmatpush.xpose.msra.mxu0 0.0
    %877 = vmatpush.xpose.msra.mxu0 0.0
    %878 = vmatpush.xpose.msra.mxu0 0.0
    %879 = vmatpush.xpose.msra.mxu0 0.0
    %880 = vmatpush.xpose.msra.mxu0 0.0
    %881 = vmatpush.xpose.msra.mxu0 0.0
    %882 = vmatpush.xpose.msra.mxu0 0.0
    %883 = vmatpush.xpose.msra.mxu0 0.0
    %884 = vmatpush.xpose.msra.mxu0 0.0
    %885 = vmatpush.xpose.msra.mxu0 0.0
    %886 = vmatpush.xpose.msra.mxu0 0.0
    %887 = vmatpush.xpose.msra.mxu0 0.0
    %888 = vmatpush.xpose.msra.mxu0 0.0
    %889 = vmatpush.xpose.msra.mxu0 %v861
    %890 = vmatmul.f32.gmra.mxu0 %v873
    %v891 = vpop.f32.mrf.mxu0
    %v892 = vadd.f32 0.0, %v891
    %893 = vdwg.mxu0
    %v894 = vstv %s719
    %v895 = vmul.f32 %v894, %v892
    %v896 = vadd.f32 %v716, %v895
    %v897 = vperm.slane %v861, 4
    %v898 = vmul.f32 %v775, %v897
    %v899 = vperm.slane %v861, 5
    %v900 = vmul.f32 %v779, %v899
    %v901 = vadd.f32 %v898, %v900
    %v902 = vperm.slane %v861, 6
    %v903 = vmul.f32 %v783, %v902
    %v904 = vadd.f32 %v901, %v903
    %v905 = vperm.slane %v861, 7
    %v906 = vmul.f32 %v787, %v905
    %v907 = vadd.f32 %v904, %v906
    %v908 = vsub.f32 %v47, %v907
    %v910 = vrot.slane %v861, 4
    %912 = vmatpush.xpose.msra.mxu0 0.0
    %913 = vmatpush.xpose.msra.mxu0 0.0
    %914 = vmatpush.xpose.msra.mxu0 0.0
    %915 = vmatpush.xpose.msra.mxu0 0.0
    %916 = vmatpush.xpose.msra.mxu0 0.0
    %917 = vmatpush.xpose.msra.mxu0 0.0
    %918 = vmatpush.xpose.msra.mxu0 0.0
    %919 = vmatpush.xpose.msra.mxu0 0.0
    %920 = vmatpush.xpose.msra.mxu0 0.0
    %921 = vmatpush.xpose.msra.mxu0 0.0
    %922 = vmatpush.xpose.msra.mxu0 0.0
    %923 = vmatpush.xpose.msra.mxu0 0.0
    %924 = vmatpush.xpose.msra.mxu0 0.0
    %925 = vmatpush.xpose.msra.mxu0 0.0
    %926 = vmatpush.xpose.msra.mxu0 0.0
    %927 = vmatpush.xpose.msra.mxu0 %v910
    %928 = vmatmul.f32.gmra.mxu0 %v908
    %v929 = vpop.f32.mrf.mxu0
    %v930 = vadd.f32 0.0, %v929
    %931 = vdwg.mxu0
    %v932 = vmul.f32 %v894, %v930
    %v933 = vadd.f32 %v717, %v932
    %v934 = vmul.f32 %v896, %v896
    %v935 = vsel %vm217, %v934, 0.0
    %936 = vadd.xlane.f32.xlu0 %v935
    %v937 = vpop.xlane.xlu0 %936
    %v938 = vmul.f32 %v933, %v933
    %v939 = vsel %vm217, %v938, 0.0
    %940 = vadd.xlane.f32.xlu0 %v939
    %v941 = vpop.xlane.xlu0 %940
    %v942 = vadd.f32 %v937, %v941
    %vm943 = vcmp.gt.f32.partialorder %v942, 1.0
    %v944 = vrsqrt.pop %v942
    %v945 = vmul.f32 %v944, %v942
    %v946 = vmul.f32 %v945, %v944
    %v947 = vmul.f32 0.5, %v946
    %v948 = vsub.f32 1.5, %v947
    %v949 = vmul.f32 %v944, %v948
    %vm950 = vweird.f32 %v942
    %vm951 = vweird.f32 %v944
    %vm952 = vmor %vm950, %vm951
    %v953 = vsel %vm952, %v944, %v949
    %v954 = vsel %vm943, %v953, 1.0
    %v955 = vmul.f32 %v896, %v954
    %v956 = vmul.f32 %v933, %v954
    %s957 = sld [smem:[#allocation2 + $0x4]]
    %s958 = sld [smem:[#allocation5 + $0x4]]
    %s959 = scalar_lea.vmem %s1, 16
    %v960 = vld [vmem:[%s959] sm:$0xf]
    %962 = vset.pattern.permute.xlu0 0
    %963 = vperm.xlu0 %962, %v960
    %v964 = vpop.permute.xlu0 %963
    %966 = vset.pattern.permute.xlu0 1
    %967 = vperm.xlu0 %966, %v960
    %v968 = vpop.permute.xlu0 %967
    %970 = vset.pattern.permute.xlu0 2
    %971 = vperm.xlu0 %970, %v960
    %v972 = vpop.permute.xlu0 %971
    %974 = vset.pattern.permute.xlu0 3
    %975 = vperm.xlu0 %974, %v960
    %v976 = vpop.permute.xlu0 %975
    %978 = vset.pattern.permute.xlu0 4
    %979 = vperm.xlu0 %978, %v960
    %v980 = vpop.permute.xlu0 %979
    %982 = vset.pattern.permute.xlu0 5
    %983 = vperm.xlu0 %982, %v960
    %v984 = vpop.permute.xlu0 %983
    %986 = vset.pattern.permute.xlu0 6
    %987 = vperm.xlu0 %986, %v960
    %v988 = vpop.permute.xlu0 %987
    %990 = vset.pattern.permute.xlu0 7
    %991 = vperm.xlu0 %990, %v960
    %v992 = vpop.permute.xlu0 %991
    %995 = vset.pattern.permute.xlu0 0
    %996 = vperm.xlu0 %995, %v955
    %v997 = vpop.permute.xlu0 %996
    %999 = vset.pattern.permute.xlu0 1
    %1000 = vperm.xlu0 %999, %v955
    %v1001 = vpop.permute.xlu0 %1000
    %1003 = vset.pattern.permute.xlu0 2
    %1004 = vperm.xlu0 %1003, %v955
    %v1005 = vpop.permute.xlu0 %1004
    %1007 = vset.pattern.permute.xlu0 3
    %1008 = vperm.xlu0 %1007, %v955
    %v1009 = vpop.permute.xlu0 %1008
    %1012 = vset.pattern.permute.xlu0 0
    %1013 = vperm.xlu0 %1012, %v956
    %v1014 = vpop.permute.xlu0 %1013
    %1016 = vset.pattern.permute.xlu0 1
    %1017 = vperm.xlu0 %1016, %v956
    %v1018 = vpop.permute.xlu0 %1017
    %1020 = vset.pattern.permute.xlu0 2
    %1021 = vperm.xlu0 %1020, %v956
    %v1022 = vpop.permute.xlu0 %1021
    %1024 = vset.pattern.permute.xlu0 3
    %1025 = vperm.xlu0 %1024, %v956
    %v1026 = vpop.permute.xlu0 %1025
    %v1028 = vmul.f32 %v997, %v862
    %v1029 = vmul.f32 %v1001, %v864
    %v1030 = vadd.f32 %v1028, %v1029
    %v1031 = vmul.f32 %v1005, %v867
    %v1032 = vadd.f32 %v1030, %v1031
    %v1033 = vmul.f32 %v1009, %v870
    %v1034 = vadd.f32 %v1032, %v1033
    %v1035 = vsub.f32 %v1034, %v45
    %v1036 = vmul.f32 %v1014, %v897
    %v1037 = vmul.f32 %v1018, %v899
    %v1038 = vadd.f32 %v1036, %v1037
    %v1039 = vmul.f32 %v1022, %v902
    %v1040 = vadd.f32 %v1038, %v1039
    %v1041 = vmul.f32 %v1026, %v905
    %v1042 = vadd.f32 %v1040, %v1041
    %v1043 = vsub.f32 %v1042, %v47
    %v1044 = vperm.slane %v1035, 0
    %v1045 = vmul.f32 %v964, %v1044
    %v1046 = vperm.slane %v1035, 1
    %v1047 = vmul.f32 %v968, %v1046
    %v1048 = vadd.f32 %v1045, %v1047
    %v1049 = vperm.slane %v1035, 2
    %v1050 = vmul.f32 %v972, %v1049
    %v1051 = vadd.f32 %v1048, %v1050
    %v1052 = vperm.slane %v1035, 3
    %v1053 = vmul.f32 %v976, %v1052
    %v1054 = vadd.f32 %v1051, %v1053
    %v1055 = vperm.slane %v1035, 4
    %v1056 = vmul.f32 %v980, %v1055
    %v1057 = vadd.f32 %v1054, %v1056
    %v1058 = vperm.slane %v1035, 5
    %v1059 = vmul.f32 %v984, %v1058
    %v1060 = vadd.f32 %v1057, %v1059
    %v1061 = vperm.slane %v1035, 6
    %v1062 = vmul.f32 %v988, %v1061
    %v1063 = vadd.f32 %v1060, %v1062
    %v1064 = vperm.slane %v1035, 7
    %v1065 = vmul.f32 %v992, %v1064
    %v1066 = vadd.f32 %v1063, %v1065
    %v1067 = vperm.slane %v1043, 0
    %v1068 = vmul.f32 %v964, %v1067
    %v1069 = vperm.slane %v1043, 1
    %v1070 = vmul.f32 %v968, %v1069
    %v1071 = vadd.f32 %v1068, %v1070
    %v1072 = vperm.slane %v1043, 2
    %v1073 = vmul.f32 %v972, %v1072
    %v1074 = vadd.f32 %v1071, %v1073
    %v1075 = vperm.slane %v1043, 3
    %v1076 = vmul.f32 %v976, %v1075
    %v1077 = vadd.f32 %v1074, %v1076
    %v1078 = vperm.slane %v1043, 4
    %v1079 = vmul.f32 %v980, %v1078
    %v1080 = vadd.f32 %v1077, %v1079
    %v1081 = vperm.slane %v1043, 5
    %v1082 = vmul.f32 %v984, %v1081
    %v1083 = vadd.f32 %v1080, %v1082
    %v1084 = vperm.slane %v1043, 6
    %v1085 = vmul.f32 %v988, %v1084
    %v1086 = vadd.f32 %v1083, %v1085
    %v1087 = vperm.slane %v1043, 7
    %v1088 = vmul.f32 %v992, %v1087
    %v1089 = vadd.f32 %v1086, %v1088
    %v1091 = vrot.slane %v1089, 4
    %v1093 = vsel %vm135, %v1066, %v1091
    %v1094 = vsub.f32 %v861, %v1093
    %s1095 = ssub.f32 0.0, %s957
    %v1096 = vstv %s1095
    %v1097 = vmax.f32 %v1096, %v1094
    %v1098 = vstv %s957
    %v1099 = vmin.f32 %v1098, %v1097
    %v1100 = vsub.f32 %v1094, %v1099
    %v1101 = vperm.slane %v1100, 0
    %v1102 = vmul.f32 %v997, %v1101
    %v1103 = vperm.slane %v1100, 1
    %v1104 = vmul.f32 %v1001, %v1103
    %v1105 = vadd.f32 %v1102, %v1104
    %v1106 = vperm.slane %v1100, 2
    %v1107 = vmul.f32 %v1005, %v1106
    %v1108 = vadd.f32 %v1105, %v1107
    %v1109 = vperm.slane %v1100, 3
    %v1110 = vmul.f32 %v1009, %v1109
    %v1111 = vadd.f32 %v1108, %v1110
    %v1112 = vsub.f32 %v45, %v1111
    %1113 = vmatpush.xpose.msra.mxu0 0.0
    %1114 = vmatpush.xpose.msra.mxu0 0.0
    %1115 = vmatpush.xpose.msra.mxu0 0.0
    %1116 = vmatpush.xpose.msra.mxu0 0.0
    %1117 = vmatpush.xpose.msra.mxu0 0.0
    %1118 = vmatpush.xpose.msra.mxu0 0.0
    %1119 = vmatpush.xpose.msra.mxu0 0.0
    %1120 = vmatpush.xpose.msra.mxu0 0.0
    %1121 = vmatpush.xpose.msra.mxu0 0.0
    %1122 = vmatpush.xpose.msra.mxu0 0.0
    %1123 = vmatpush.xpose.msra.mxu0 0.0
    %1124 = vmatpush.xpose.msra.mxu0 0.0
    %1125 = vmatpush.xpose.msra.mxu0 0.0
    %1126 = vmatpush.xpose.msra.mxu0 0.0
    %1127 = vmatpush.xpose.msra.mxu0 0.0
    %1128 = vmatpush.xpose.msra.mxu0 %v1100
    %1129 = vmatmul.f32.gmra.mxu0 %v1112
    %v1130 = vpop.f32.mrf.mxu0
    %v1131 = vadd.f32 0.0, %v1130
    %1132 = vdwg.mxu0
    %v1133 = vstv %s958
    %v1134 = vmul.f32 %v1133, %v1131
    %v1135 = vadd.f32 %v955, %v1134
    %v1136 = vperm.slane %v1100, 4
    %v1137 = vmul.f32 %v1014, %v1136
    %v1138 = vperm.slane %v1100, 5
    %v1139 = vmul.f32 %v1018, %v1138
    %v1140 = vadd.f32 %v1137, %v1139
    %v1141 = vperm.slane %v1100, 6
    %v1142 = vmul.f32 %v1022, %v1141
    %v1143 = vadd.f32 %v1140, %v1142
    %v1144 = vperm.slane %v1100, 7
    %v1145 = vmul.f32 %v1026, %v1144
    %v1146 = vadd.f32 %v1143, %v1145
    %v1147 = vsub.f32 %v47, %v1146
    %v1149 = vrot.slane %v1100, 4
    %1151 = vmatpush.xpose.msra.mxu0 0.0
    %1152 = vmatpush.xpose.msra.mxu0 0.0
    %1153 = vmatpush.xpose.msra.mxu0 0.0
    %1154 = vmatpush.xpose.msra.mxu0 0.0
    %1155 = vmatpush.xpose.msra.mxu0 0.0
    %1156 = vmatpush.xpose.msra.mxu0 0.0
    %1157 = vmatpush.xpose.msra.mxu0 0.0
    %1158 = vmatpush.xpose.msra.mxu0 0.0
    %1159 = vmatpush.xpose.msra.mxu0 0.0
    %1160 = vmatpush.xpose.msra.mxu0 0.0
    %1161 = vmatpush.xpose.msra.mxu0 0.0
    %1162 = vmatpush.xpose.msra.mxu0 0.0
    %1163 = vmatpush.xpose.msra.mxu0 0.0
    %1164 = vmatpush.xpose.msra.mxu0 0.0
    %1165 = vmatpush.xpose.msra.mxu0 0.0
    %1166 = vmatpush.xpose.msra.mxu0 %v1149
    %1167 = vmatmul.f32.gmra.mxu0 %v1147
    %v1168 = vpop.f32.mrf.mxu0
    %v1169 = vadd.f32 0.0, %v1168
    %1170 = vdwg.mxu0
    %v1171 = vmul.f32 %v1133, %v1169
    %v1172 = vadd.f32 %v956, %v1171
    %v1173 = vmul.f32 %v1135, %v1135
    %v1174 = vsel %vm217, %v1173, 0.0
    %1175 = vadd.xlane.f32.xlu0 %v1174
    %v1176 = vpop.xlane.xlu0 %1175
    %v1177 = vmul.f32 %v1172, %v1172
    %v1178 = vsel %vm217, %v1177, 0.0
    %1179 = vadd.xlane.f32.xlu0 %v1178
    %v1180 = vpop.xlane.xlu0 %1179
    %v1181 = vadd.f32 %v1176, %v1180
    %vm1182 = vcmp.gt.f32.partialorder %v1181, 1.0
    %v1183 = vrsqrt.pop %v1181
    %v1184 = vmul.f32 %v1183, %v1181
    %v1185 = vmul.f32 %v1184, %v1183
    %v1186 = vmul.f32 0.5, %v1185
    %v1187 = vsub.f32 1.5, %v1186
    %v1188 = vmul.f32 %v1183, %v1187
    %vm1189 = vweird.f32 %v1181
    %vm1190 = vweird.f32 %v1183
    %vm1191 = vmor %vm1189, %vm1190
    %v1192 = vsel %vm1191, %v1183, %v1188
    %v1193 = vsel %vm1182, %v1192, 1.0
    %v1194 = vmul.f32 %v1135, %v1193
    %v1195 = vmul.f32 %v1172, %v1193
    %s1196 = sld [smem:[#allocation2 + $0x5]]
    %s1197 = sld [smem:[#allocation5 + $0x5]]
    %s1198 = scalar_lea.vmem %s1, 20
    %v1199 = vld [vmem:[%s1198] sm:$0xf]
    %1201 = vset.pattern.permute.xlu0 0
    %1202 = vperm.xlu0 %1201, %v1199
    %v1203 = vpop.permute.xlu0 %1202
    %1205 = vset.pattern.permute.xlu0 1
    %1206 = vperm.xlu0 %1205, %v1199
    %v1207 = vpop.permute.xlu0 %1206
    %1209 = vset.pattern.permute.xlu0 2
    %1210 = vperm.xlu0 %1209, %v1199
    %v1211 = vpop.permute.xlu0 %1210
    %1213 = vset.pattern.permute.xlu0 3
    %1214 = vperm.xlu0 %1213, %v1199
    %v1215 = vpop.permute.xlu0 %1214
    %1217 = vset.pattern.permute.xlu0 4
    %1218 = vperm.xlu0 %1217, %v1199
    %v1219 = vpop.permute.xlu0 %1218
    %1221 = vset.pattern.permute.xlu0 5
    %1222 = vperm.xlu0 %1221, %v1199
    %v1223 = vpop.permute.xlu0 %1222
    %1225 = vset.pattern.permute.xlu0 6
    %1226 = vperm.xlu0 %1225, %v1199
    %v1227 = vpop.permute.xlu0 %1226
    %1229 = vset.pattern.permute.xlu0 7
    %1230 = vperm.xlu0 %1229, %v1199
    %v1231 = vpop.permute.xlu0 %1230
    %1234 = vset.pattern.permute.xlu0 0
    %1235 = vperm.xlu0 %1234, %v1194
    %v1236 = vpop.permute.xlu0 %1235
    %1238 = vset.pattern.permute.xlu0 1
    %1239 = vperm.xlu0 %1238, %v1194
    %v1240 = vpop.permute.xlu0 %1239
    %1242 = vset.pattern.permute.xlu0 2
    %1243 = vperm.xlu0 %1242, %v1194
    %v1244 = vpop.permute.xlu0 %1243
    %1246 = vset.pattern.permute.xlu0 3
    %1247 = vperm.xlu0 %1246, %v1194
    %v1248 = vpop.permute.xlu0 %1247
    %1251 = vset.pattern.permute.xlu0 0
    %1252 = vperm.xlu0 %1251, %v1195
    %v1253 = vpop.permute.xlu0 %1252
    %1255 = vset.pattern.permute.xlu0 1
    %1256 = vperm.xlu0 %1255, %v1195
    %v1257 = vpop.permute.xlu0 %1256
    %1259 = vset.pattern.permute.xlu0 2
    %1260 = vperm.xlu0 %1259, %v1195
    %v1261 = vpop.permute.xlu0 %1260
    %1263 = vset.pattern.permute.xlu0 3
    %1264 = vperm.xlu0 %1263, %v1195
    %v1265 = vpop.permute.xlu0 %1264
    %v1267 = vmul.f32 %v1236, %v1101
    %v1268 = vmul.f32 %v1240, %v1103
    %v1269 = vadd.f32 %v1267, %v1268
    %v1270 = vmul.f32 %v1244, %v1106
    %v1271 = vadd.f32 %v1269, %v1270
    %v1272 = vmul.f32 %v1248, %v1109
    %v1273 = vadd.f32 %v1271, %v1272
    %v1274 = vsub.f32 %v1273, %v45
    %v1275 = vmul.f32 %v1253, %v1136
    %v1276 = vmul.f32 %v1257, %v1138
    %v1277 = vadd.f32 %v1275, %v1276
    %v1278 = vmul.f32 %v1261, %v1141
    %v1279 = vadd.f32 %v1277, %v1278
    %v1280 = vmul.f32 %v1265, %v1144
    %v1281 = vadd.f32 %v1279, %v1280
    %v1282 = vsub.f32 %v1281, %v47
    %v1283 = vperm.slane %v1274, 0
    %v1284 = vmul.f32 %v1203, %v1283
    %v1285 = vperm.slane %v1274, 1
    %v1286 = vmul.f32 %v1207, %v1285
    %v1287 = vadd.f32 %v1284, %v1286
    %v1288 = vperm.slane %v1274, 2
    %v1289 = vmul.f32 %v1211, %v1288
    %v1290 = vadd.f32 %v1287, %v1289
    %v1291 = vperm.slane %v1274, 3
    %v1292 = vmul.f32 %v1215, %v1291
    %v1293 = vadd.f32 %v1290, %v1292
    %v1294 = vperm.slane %v1274, 4
    %v1295 = vmul.f32 %v1219, %v1294
    %v1296 = vadd.f32 %v1293, %v1295
    %v1297 = vperm.slane %v1274, 5
    %v1298 = vmul.f32 %v1223, %v1297
    %v1299 = vadd.f32 %v1296, %v1298
    %v1300 = vperm.slane %v1274, 6
    %v1301 = vmul.f32 %v1227, %v1300
    %v1302 = vadd.f32 %v1299, %v1301
    %v1303 = vperm.slane %v1274, 7
    %v1304 = vmul.f32 %v1231, %v1303
    %v1305 = vadd.f32 %v1302, %v1304
    %v1306 = vperm.slane %v1282, 0
    %v1307 = vmul.f32 %v1203, %v1306
    %v1308 = vperm.slane %v1282, 1
    %v1309 = vmul.f32 %v1207, %v1308
    %v1310 = vadd.f32 %v1307, %v1309
    %v1311 = vperm.slane %v1282, 2
    %v1312 = vmul.f32 %v1211, %v1311
    %v1313 = vadd.f32 %v1310, %v1312
    %v1314 = vperm.slane %v1282, 3
    %v1315 = vmul.f32 %v1215, %v1314
    %v1316 = vadd.f32 %v1313, %v1315
    %v1317 = vperm.slane %v1282, 4
    %v1318 = vmul.f32 %v1219, %v1317
    %v1319 = vadd.f32 %v1316, %v1318
    %v1320 = vperm.slane %v1282, 5
    %v1321 = vmul.f32 %v1223, %v1320
    %v1322 = vadd.f32 %v1319, %v1321
    %v1323 = vperm.slane %v1282, 6
    %v1324 = vmul.f32 %v1227, %v1323
    %v1325 = vadd.f32 %v1322, %v1324
    %v1326 = vperm.slane %v1282, 7
    %v1327 = vmul.f32 %v1231, %v1326
    %v1328 = vadd.f32 %v1325, %v1327
    %v1330 = vrot.slane %v1328, 4
    %v1332 = vsel %vm135, %v1305, %v1330
    %v1333 = vsub.f32 %v1100, %v1332
    %s1334 = ssub.f32 0.0, %s1196
    %v1335 = vstv %s1334
    %v1336 = vmax.f32 %v1335, %v1333
    %v1337 = vstv %s1196
    %v1338 = vmin.f32 %v1337, %v1336
    %v1339 = vsub.f32 %v1333, %v1338
    %v1340 = vperm.slane %v1339, 0
    %v1341 = vmul.f32 %v1236, %v1340
    %v1342 = vperm.slane %v1339, 1
    %v1343 = vmul.f32 %v1240, %v1342
    %v1344 = vadd.f32 %v1341, %v1343
    %v1345 = vperm.slane %v1339, 2
    %v1346 = vmul.f32 %v1244, %v1345
    %v1347 = vadd.f32 %v1344, %v1346
    %v1348 = vperm.slane %v1339, 3
    %v1349 = vmul.f32 %v1248, %v1348
    %v1350 = vadd.f32 %v1347, %v1349
    %v1351 = vsub.f32 %v45, %v1350
    %1352 = vmatpush.xpose.msra.mxu0 0.0
    %1353 = vmatpush.xpose.msra.mxu0 0.0
    %1354 = vmatpush.xpose.msra.mxu0 0.0
    %1355 = vmatpush.xpose.msra.mxu0 0.0
    %1356 = vmatpush.xpose.msra.mxu0 0.0
    %1357 = vmatpush.xpose.msra.mxu0 0.0
    %1358 = vmatpush.xpose.msra.mxu0 0.0
    %1359 = vmatpush.xpose.msra.mxu0 0.0
    %1360 = vmatpush.xpose.msra.mxu0 0.0
    %1361 = vmatpush.xpose.msra.mxu0 0.0
    %1362 = vmatpush.xpose.msra.mxu0 0.0
    %1363 = vmatpush.xpose.msra.mxu0 0.0
    %1364 = vmatpush.xpose.msra.mxu0 0.0
    %1365 = vmatpush.xpose.msra.mxu0 0.0
    %1366 = vmatpush.xpose.msra.mxu0 0.0
    %1367 = vmatpush.xpose.msra.mxu0 %v1339
    %1368 = vmatmul.f32.gmra.mxu0 %v1351
    %v1369 = vpop.f32.mrf.mxu0
    %v1370 = vadd.f32 0.0, %v1369
    %1371 = vdwg.mxu0
    %v1372 = vstv %s1197
    %v1373 = vmul.f32 %v1372, %v1370
    %v1374 = vadd.f32 %v1194, %v1373
    %v1375 = vperm.slane %v1339, 4
    %v1376 = vmul.f32 %v1253, %v1375
    %v1377 = vperm.slane %v1339, 5
    %v1378 = vmul.f32 %v1257, %v1377
    %v1379 = vadd.f32 %v1376, %v1378
    %v1380 = vperm.slane %v1339, 6
    %v1381 = vmul.f32 %v1261, %v1380
    %v1382 = vadd.f32 %v1379, %v1381
    %v1383 = vperm.slane %v1339, 7
    %v1384 = vmul.f32 %v1265, %v1383
    %v1385 = vadd.f32 %v1382, %v1384
    %v1386 = vsub.f32 %v47, %v1385
    %v1388 = vrot.slane %v1339, 4
    %1390 = vmatpush.xpose.msra.mxu0 0.0
    %1391 = vmatpush.xpose.msra.mxu0 0.0
    %1392 = vmatpush.xpose.msra.mxu0 0.0
    %1393 = vmatpush.xpose.msra.mxu0 0.0
    %1394 = vmatpush.xpose.msra.mxu0 0.0
    %1395 = vmatpush.xpose.msra.mxu0 0.0
    %1396 = vmatpush.xpose.msra.mxu0 0.0
    %1397 = vmatpush.xpose.msra.mxu0 0.0
    %1398 = vmatpush.xpose.msra.mxu0 0.0
    %1399 = vmatpush.xpose.msra.mxu0 0.0
    %1400 = vmatpush.xpose.msra.mxu0 0.0
    %1401 = vmatpush.xpose.msra.mxu0 0.0
    %1402 = vmatpush.xpose.msra.mxu0 0.0
    %1403 = vmatpush.xpose.msra.mxu0 0.0
    %1404 = vmatpush.xpose.msra.mxu0 0.0
    %1405 = vmatpush.xpose.msra.mxu0 %v1388
    %1406 = vmatmul.f32.gmra.mxu0 %v1386
    %v1407 = vpop.f32.mrf.mxu0
    %v1408 = vadd.f32 0.0, %v1407
    %1409 = vdwg.mxu0
    %v1410 = vmul.f32 %v1372, %v1408
    %v1411 = vadd.f32 %v1195, %v1410
    %v1412 = vmul.f32 %v1374, %v1374
    %v1413 = vsel %vm217, %v1412, 0.0
    %1414 = vadd.xlane.f32.xlu0 %v1413
    %v1415 = vpop.xlane.xlu0 %1414
    %v1416 = vmul.f32 %v1411, %v1411
    %v1417 = vsel %vm217, %v1416, 0.0
    %1418 = vadd.xlane.f32.xlu0 %v1417
    %v1419 = vpop.xlane.xlu0 %1418
    %v1420 = vadd.f32 %v1415, %v1419
    %vm1421 = vcmp.gt.f32.partialorder %v1420, 1.0
    %v1422 = vrsqrt.pop %v1420
    %v1423 = vmul.f32 %v1422, %v1420
    %v1424 = vmul.f32 %v1423, %v1422
    %v1425 = vmul.f32 0.5, %v1424
    %v1426 = vsub.f32 1.5, %v1425
    %v1427 = vmul.f32 %v1422, %v1426
    %vm1428 = vweird.f32 %v1420
    %vm1429 = vweird.f32 %v1422
    %vm1430 = vmor %vm1428, %vm1429
    %v1431 = vsel %vm1430, %v1422, %v1427
    %v1432 = vsel %vm1421, %v1431, 1.0
    %v1433 = vmul.f32 %v1374, %v1432
    %v1434 = vmul.f32 %v1411, %v1432
    %s1435 = sld [smem:[#allocation2 + $0x6]]
    %s1436 = sld [smem:[#allocation5 + $0x6]]
    %s1437 = scalar_lea.vmem %s1, 24
    %v1438 = vld [vmem:[%s1437] sm:$0xf]
    %1440 = vset.pattern.permute.xlu0 0
    %1441 = vperm.xlu0 %1440, %v1438
    %v1442 = vpop.permute.xlu0 %1441
    %1444 = vset.pattern.permute.xlu0 1
    %1445 = vperm.xlu0 %1444, %v1438
    %v1446 = vpop.permute.xlu0 %1445
    %1448 = vset.pattern.permute.xlu0 2
    %1449 = vperm.xlu0 %1448, %v1438
    %v1450 = vpop.permute.xlu0 %1449
    %1452 = vset.pattern.permute.xlu0 3
    %1453 = vperm.xlu0 %1452, %v1438
    %v1454 = vpop.permute.xlu0 %1453
    %1456 = vset.pattern.permute.xlu0 4
    %1457 = vperm.xlu0 %1456, %v1438
    %v1458 = vpop.permute.xlu0 %1457
    %1460 = vset.pattern.permute.xlu0 5
    %1461 = vperm.xlu0 %1460, %v1438
    %v1462 = vpop.permute.xlu0 %1461
    %1464 = vset.pattern.permute.xlu0 6
    %1465 = vperm.xlu0 %1464, %v1438
    %v1466 = vpop.permute.xlu0 %1465
    %1468 = vset.pattern.permute.xlu0 7
    %1469 = vperm.xlu0 %1468, %v1438
    %v1470 = vpop.permute.xlu0 %1469
    %1473 = vset.pattern.permute.xlu0 0
    %1474 = vperm.xlu0 %1473, %v1433
    %v1475 = vpop.permute.xlu0 %1474
    %1477 = vset.pattern.permute.xlu0 1
    %1478 = vperm.xlu0 %1477, %v1433
    %v1479 = vpop.permute.xlu0 %1478
    %1481 = vset.pattern.permute.xlu0 2
    %1482 = vperm.xlu0 %1481, %v1433
    %v1483 = vpop.permute.xlu0 %1482
    %1485 = vset.pattern.permute.xlu0 3
    %1486 = vperm.xlu0 %1485, %v1433
    %v1487 = vpop.permute.xlu0 %1486
    %1490 = vset.pattern.permute.xlu0 0
    %1491 = vperm.xlu0 %1490, %v1434
    %v1492 = vpop.permute.xlu0 %1491
    %1494 = vset.pattern.permute.xlu0 1
    %1495 = vperm.xlu0 %1494, %v1434
    %v1496 = vpop.permute.xlu0 %1495
    %1498 = vset.pattern.permute.xlu0 2
    %1499 = vperm.xlu0 %1498, %v1434
    %v1500 = vpop.permute.xlu0 %1499
    %1502 = vset.pattern.permute.xlu0 3
    %1503 = vperm.xlu0 %1502, %v1434
    %v1504 = vpop.permute.xlu0 %1503
    %v1506 = vmul.f32 %v1475, %v1340
    %v1507 = vmul.f32 %v1479, %v1342
    %v1508 = vadd.f32 %v1506, %v1507
    %v1509 = vmul.f32 %v1483, %v1345
    %v1510 = vadd.f32 %v1508, %v1509
    %v1511 = vmul.f32 %v1487, %v1348
    %v1512 = vadd.f32 %v1510, %v1511
    %v1513 = vsub.f32 %v1512, %v45
    %v1514 = vmul.f32 %v1492, %v1375
    %v1515 = vmul.f32 %v1496, %v1377
    %v1516 = vadd.f32 %v1514, %v1515
    %v1517 = vmul.f32 %v1500, %v1380
    %v1518 = vadd.f32 %v1516, %v1517
    %v1519 = vmul.f32 %v1504, %v1383
    %v1520 = vadd.f32 %v1518, %v1519
    %v1521 = vsub.f32 %v1520, %v47
    %v1522 = vperm.slane %v1513, 0
    %v1523 = vmul.f32 %v1442, %v1522
    %v1524 = vperm.slane %v1513, 1
    %v1525 = vmul.f32 %v1446, %v1524
    %v1526 = vadd.f32 %v1523, %v1525
    %v1527 = vperm.slane %v1513, 2
    %v1528 = vmul.f32 %v1450, %v1527
    %v1529 = vadd.f32 %v1526, %v1528
    %v1530 = vperm.slane %v1513, 3
    %v1531 = vmul.f32 %v1454, %v1530
    %v1532 = vadd.f32 %v1529, %v1531
    %v1533 = vperm.slane %v1513, 4
    %v1534 = vmul.f32 %v1458, %v1533
    %v1535 = vadd.f32 %v1532, %v1534
    %v1536 = vperm.slane %v1513, 5
    %v1537 = vmul.f32 %v1462, %v1536
    %v1538 = vadd.f32 %v1535, %v1537
    %v1539 = vperm.slane %v1513, 6
    %v1540 = vmul.f32 %v1466, %v1539
    %v1541 = vadd.f32 %v1538, %v1540
    %v1542 = vperm.slane %v1513, 7
    %v1543 = vmul.f32 %v1470, %v1542
    %v1544 = vadd.f32 %v1541, %v1543
    %v1545 = vperm.slane %v1521, 0
    %v1546 = vmul.f32 %v1442, %v1545
    %v1547 = vperm.slane %v1521, 1
    %v1548 = vmul.f32 %v1446, %v1547
    %v1549 = vadd.f32 %v1546, %v1548
    %v1550 = vperm.slane %v1521, 2
    %v1551 = vmul.f32 %v1450, %v1550
    %v1552 = vadd.f32 %v1549, %v1551
    %v1553 = vperm.slane %v1521, 3
    %v1554 = vmul.f32 %v1454, %v1553
    %v1555 = vadd.f32 %v1552, %v1554
    %v1556 = vperm.slane %v1521, 4
    %v1557 = vmul.f32 %v1458, %v1556
    %v1558 = vadd.f32 %v1555, %v1557
    %v1559 = vperm.slane %v1521, 5
    %v1560 = vmul.f32 %v1462, %v1559
    %v1561 = vadd.f32 %v1558, %v1560
    %v1562 = vperm.slane %v1521, 6
    %v1563 = vmul.f32 %v1466, %v1562
    %v1564 = vadd.f32 %v1561, %v1563
    %v1565 = vperm.slane %v1521, 7
    %v1566 = vmul.f32 %v1470, %v1565
    %v1567 = vadd.f32 %v1564, %v1566
    %v1569 = vrot.slane %v1567, 4
    %v1571 = vsel %vm135, %v1544, %v1569
    %v1572 = vsub.f32 %v1339, %v1571
    %s1573 = ssub.f32 0.0, %s1435
    %v1574 = vstv %s1573
    %v1575 = vmax.f32 %v1574, %v1572
    %v1576 = vstv %s1435
    %v1577 = vmin.f32 %v1576, %v1575
    %v1578 = vsub.f32 %v1572, %v1577
    %v1579 = vperm.slane %v1578, 0
    %v1580 = vmul.f32 %v1475, %v1579
    %v1581 = vperm.slane %v1578, 1
    %v1582 = vmul.f32 %v1479, %v1581
    %v1583 = vadd.f32 %v1580, %v1582
    %v1584 = vperm.slane %v1578, 2
    %v1585 = vmul.f32 %v1483, %v1584
    %v1586 = vadd.f32 %v1583, %v1585
    %v1587 = vperm.slane %v1578, 3
    %v1588 = vmul.f32 %v1487, %v1587
    %v1589 = vadd.f32 %v1586, %v1588
    %v1590 = vsub.f32 %v45, %v1589
    %1591 = vmatpush.xpose.msra.mxu0 0.0
    %1592 = vmatpush.xpose.msra.mxu0 0.0
    %1593 = vmatpush.xpose.msra.mxu0 0.0
    %1594 = vmatpush.xpose.msra.mxu0 0.0
    %1595 = vmatpush.xpose.msra.mxu0 0.0
    %1596 = vmatpush.xpose.msra.mxu0 0.0
    %1597 = vmatpush.xpose.msra.mxu0 0.0
    %1598 = vmatpush.xpose.msra.mxu0 0.0
    %1599 = vmatpush.xpose.msra.mxu0 0.0
    %1600 = vmatpush.xpose.msra.mxu0 0.0
    %1601 = vmatpush.xpose.msra.mxu0 0.0
    %1602 = vmatpush.xpose.msra.mxu0 0.0
    %1603 = vmatpush.xpose.msra.mxu0 0.0
    %1604 = vmatpush.xpose.msra.mxu0 0.0
    %1605 = vmatpush.xpose.msra.mxu0 0.0
    %1606 = vmatpush.xpose.msra.mxu0 %v1578
    %1607 = vmatmul.f32.gmra.mxu0 %v1590
    %v1608 = vpop.f32.mrf.mxu0
    %v1609 = vadd.f32 0.0, %v1608
    %1610 = vdwg.mxu0
    %v1611 = vstv %s1436
    %v1612 = vmul.f32 %v1611, %v1609
    %v1613 = vadd.f32 %v1433, %v1612
    %v1614 = vperm.slane %v1578, 4
    %v1615 = vmul.f32 %v1492, %v1614
    %v1616 = vperm.slane %v1578, 5
    %v1617 = vmul.f32 %v1496, %v1616
    %v1618 = vadd.f32 %v1615, %v1617
    %v1619 = vperm.slane %v1578, 6
    %v1620 = vmul.f32 %v1500, %v1619
    %v1621 = vadd.f32 %v1618, %v1620
    %v1622 = vperm.slane %v1578, 7
    %v1623 = vmul.f32 %v1504, %v1622
    %v1624 = vadd.f32 %v1621, %v1623
    %v1625 = vsub.f32 %v47, %v1624
    %v1627 = vrot.slane %v1578, 4
    %1629 = vmatpush.xpose.msra.mxu0 0.0
    %1630 = vmatpush.xpose.msra.mxu0 0.0
    %1631 = vmatpush.xpose.msra.mxu0 0.0
    %1632 = vmatpush.xpose.msra.mxu0 0.0
    %1633 = vmatpush.xpose.msra.mxu0 0.0
    %1634 = vmatpush.xpose.msra.mxu0 0.0
    %1635 = vmatpush.xpose.msra.mxu0 0.0
    %1636 = vmatpush.xpose.msra.mxu0 0.0
    %1637 = vmatpush.xpose.msra.mxu0 0.0
    %1638 = vmatpush.xpose.msra.mxu0 0.0
    %1639 = vmatpush.xpose.msra.mxu0 0.0
    %1640 = vmatpush.xpose.msra.mxu0 0.0
    %1641 = vmatpush.xpose.msra.mxu0 0.0
    %1642 = vmatpush.xpose.msra.mxu0 0.0
    %1643 = vmatpush.xpose.msra.mxu0 0.0
    %1644 = vmatpush.xpose.msra.mxu0 %v1627
    %1645 = vmatmul.f32.gmra.mxu0 %v1625
    %v1646 = vpop.f32.mrf.mxu0
    %v1647 = vadd.f32 0.0, %v1646
    %1648 = vdwg.mxu0
    %v1649 = vmul.f32 %v1611, %v1647
    %v1650 = vadd.f32 %v1434, %v1649
    %v1651 = vmul.f32 %v1613, %v1613
    %v1652 = vsel %vm217, %v1651, 0.0
    %1653 = vadd.xlane.f32.xlu0 %v1652
    %v1654 = vpop.xlane.xlu0 %1653
    %v1655 = vmul.f32 %v1650, %v1650
    %v1656 = vsel %vm217, %v1655, 0.0
    %1657 = vadd.xlane.f32.xlu0 %v1656
    %v1658 = vpop.xlane.xlu0 %1657
    %v1659 = vadd.f32 %v1654, %v1658
    %vm1660 = vcmp.gt.f32.partialorder %v1659, 1.0
    %v1661 = vrsqrt.pop %v1659
    %v1662 = vmul.f32 %v1661, %v1659
    %v1663 = vmul.f32 %v1662, %v1661
    %v1664 = vmul.f32 0.5, %v1663
    %v1665 = vsub.f32 1.5, %v1664
    %v1666 = vmul.f32 %v1661, %v1665
    %vm1667 = vweird.f32 %v1659
    %vm1668 = vweird.f32 %v1661
    %vm1669 = vmor %vm1667, %vm1668
    %v1670 = vsel %vm1669, %v1661, %v1666
    %v1671 = vsel %vm1660, %v1670, 1.0
    %v1672 = vmul.f32 %v1613, %v1671
    %v1673 = vmul.f32 %v1650, %v1671
    %s1674 = sld [smem:[#allocation2 + $0x7]]
    %s1675 = sld [smem:[#allocation5 + $0x7]]
    %s1676 = scalar_lea.vmem %s1, 28
    %v1677 = vld [vmem:[%s1676] sm:$0xf]
    %1679 = vset.pattern.permute.xlu0 0
    %1680 = vperm.xlu0 %1679, %v1677
    %v1681 = vpop.permute.xlu0 %1680
    %1683 = vset.pattern.permute.xlu0 1
    %1684 = vperm.xlu0 %1683, %v1677
    %v1685 = vpop.permute.xlu0 %1684
    %1687 = vset.pattern.permute.xlu0 2
    %1688 = vperm.xlu0 %1687, %v1677
    %v1689 = vpop.permute.xlu0 %1688
    %1691 = vset.pattern.permute.xlu0 3
    %1692 = vperm.xlu0 %1691, %v1677
    %v1693 = vpop.permute.xlu0 %1692
    %1695 = vset.pattern.permute.xlu0 4
    %1696 = vperm.xlu0 %1695, %v1677
    %v1697 = vpop.permute.xlu0 %1696
    %1699 = vset.pattern.permute.xlu0 5
    %1700 = vperm.xlu0 %1699, %v1677
    %v1701 = vpop.permute.xlu0 %1700
    %1703 = vset.pattern.permute.xlu0 6
    %1704 = vperm.xlu0 %1703, %v1677
    %v1705 = vpop.permute.xlu0 %1704
    %1707 = vset.pattern.permute.xlu0 7
    %1708 = vperm.xlu0 %1707, %v1677
    %v1709 = vpop.permute.xlu0 %1708
    %1712 = vset.pattern.permute.xlu0 0
    %1713 = vperm.xlu0 %1712, %v1672
    %v1714 = vpop.permute.xlu0 %1713
    %1716 = vset.pattern.permute.xlu0 1
    %1717 = vperm.xlu0 %1716, %v1672
    %v1718 = vpop.permute.xlu0 %1717
    %1720 = vset.pattern.permute.xlu0 2
    %1721 = vperm.xlu0 %1720, %v1672
    %v1722 = vpop.permute.xlu0 %1721
    %1724 = vset.pattern.permute.xlu0 3
    %1725 = vperm.xlu0 %1724, %v1672
    %v1726 = vpop.permute.xlu0 %1725
    %1729 = vset.pattern.permute.xlu0 0
    %1730 = vperm.xlu0 %1729, %v1673
    %v1731 = vpop.permute.xlu0 %1730
    %1733 = vset.pattern.permute.xlu0 1
    %1734 = vperm.xlu0 %1733, %v1673
    %v1735 = vpop.permute.xlu0 %1734
    %1737 = vset.pattern.permute.xlu0 2
    %1738 = vperm.xlu0 %1737, %v1673
    %v1739 = vpop.permute.xlu0 %1738
    %1741 = vset.pattern.permute.xlu0 3
    %1742 = vperm.xlu0 %1741, %v1673
    %v1743 = vpop.permute.xlu0 %1742
    %v1745 = vmul.f32 %v1714, %v1579
    %v1746 = vmul.f32 %v1718, %v1581
    %v1747 = vadd.f32 %v1745, %v1746
    %v1748 = vmul.f32 %v1722, %v1584
    %v1749 = vadd.f32 %v1747, %v1748
    %v1750 = vmul.f32 %v1726, %v1587
    %v1751 = vadd.f32 %v1749, %v1750
    %v1752 = vsub.f32 %v1751, %v45
    %v1753 = vmul.f32 %v1731, %v1614
    %v1754 = vmul.f32 %v1735, %v1616
    %v1755 = vadd.f32 %v1753, %v1754
    %v1756 = vmul.f32 %v1739, %v1619
    %v1757 = vadd.f32 %v1755, %v1756
    %v1758 = vmul.f32 %v1743, %v1622
    %v1759 = vadd.f32 %v1757, %v1758
    %v1760 = vsub.f32 %v1759, %v47
    %v1761 = vperm.slane %v1752, 0
    %v1762 = vmul.f32 %v1681, %v1761
    %v1763 = vperm.slane %v1752, 1
    %v1764 = vmul.f32 %v1685, %v1763
    %v1765 = vadd.f32 %v1762, %v1764
    %v1766 = vperm.slane %v1752, 2
    %v1767 = vmul.f32 %v1689, %v1766
    %v1768 = vadd.f32 %v1765, %v1767
    %v1769 = vperm.slane %v1752, 3
    %v1770 = vmul.f32 %v1693, %v1769
    %v1771 = vadd.f32 %v1768, %v1770
    %v1772 = vperm.slane %v1752, 4
    %v1773 = vmul.f32 %v1697, %v1772
    %v1774 = vadd.f32 %v1771, %v1773
    %v1775 = vperm.slane %v1752, 5
    %v1776 = vmul.f32 %v1701, %v1775
    %v1777 = vadd.f32 %v1774, %v1776
    %v1778 = vperm.slane %v1752, 6
    %v1779 = vmul.f32 %v1705, %v1778
    %v1780 = vadd.f32 %v1777, %v1779
    %v1781 = vperm.slane %v1752, 7
    %v1782 = vmul.f32 %v1709, %v1781
    %v1783 = vadd.f32 %v1780, %v1782
    %v1784 = vperm.slane %v1760, 0
    %v1785 = vmul.f32 %v1681, %v1784
    %v1786 = vperm.slane %v1760, 1
    %v1787 = vmul.f32 %v1685, %v1786
    %v1788 = vadd.f32 %v1785, %v1787
    %v1789 = vperm.slane %v1760, 2
    %v1790 = vmul.f32 %v1689, %v1789
    %v1791 = vadd.f32 %v1788, %v1790
    %v1792 = vperm.slane %v1760, 3
    %v1793 = vmul.f32 %v1693, %v1792
    %v1794 = vadd.f32 %v1791, %v1793
    %v1795 = vperm.slane %v1760, 4
    %v1796 = vmul.f32 %v1697, %v1795
    %v1797 = vadd.f32 %v1794, %v1796
    %v1798 = vperm.slane %v1760, 5
    %v1799 = vmul.f32 %v1701, %v1798
    %v1800 = vadd.f32 %v1797, %v1799
    %v1801 = vperm.slane %v1760, 6
    %v1802 = vmul.f32 %v1705, %v1801
    %v1803 = vadd.f32 %v1800, %v1802
    %v1804 = vperm.slane %v1760, 7
    %v1805 = vmul.f32 %v1709, %v1804
    %v1806 = vadd.f32 %v1803, %v1805
    %v1808 = vrot.slane %v1806, 4
    %v1810 = vsel %vm135, %v1783, %v1808
    %v1811 = vsub.f32 %v1578, %v1810
    %s1812 = ssub.f32 0.0, %s1674
    %v1813 = vstv %s1812
    %v1814 = vmax.f32 %v1813, %v1811
    %v1815 = vstv %s1674
    %v1816 = vmin.f32 %v1815, %v1814
    %v1817 = vsub.f32 %v1811, %v1816
    %v1818 = vperm.slane %v1817, 0
    %v1819 = vmul.f32 %v1714, %v1818
    %v1820 = vperm.slane %v1817, 1
    %v1821 = vmul.f32 %v1718, %v1820
    %v1822 = vadd.f32 %v1819, %v1821
    %v1823 = vperm.slane %v1817, 2
    %v1824 = vmul.f32 %v1722, %v1823
    %v1825 = vadd.f32 %v1822, %v1824
    %v1826 = vperm.slane %v1817, 3
    %v1827 = vmul.f32 %v1726, %v1826
    %v1828 = vadd.f32 %v1825, %v1827
    %v1829 = vsub.f32 %v45, %v1828
    %1830 = vmatpush.xpose.msra.mxu0 0.0
    %1831 = vmatpush.xpose.msra.mxu0 0.0
    %1832 = vmatpush.xpose.msra.mxu0 0.0
    %1833 = vmatpush.xpose.msra.mxu0 0.0
    %1834 = vmatpush.xpose.msra.mxu0 0.0
    %1835 = vmatpush.xpose.msra.mxu0 0.0
    %1836 = vmatpush.xpose.msra.mxu0 0.0
    %1837 = vmatpush.xpose.msra.mxu0 0.0
    %1838 = vmatpush.xpose.msra.mxu0 0.0
    %1839 = vmatpush.xpose.msra.mxu0 0.0
    %1840 = vmatpush.xpose.msra.mxu0 0.0
    %1841 = vmatpush.xpose.msra.mxu0 0.0
    %1842 = vmatpush.xpose.msra.mxu0 0.0
    %1843 = vmatpush.xpose.msra.mxu0 0.0
    %1844 = vmatpush.xpose.msra.mxu0 0.0
    %1845 = vmatpush.xpose.msra.mxu0 %v1817
    %1846 = vmatmul.f32.gmra.mxu0 %v1829
    %v1847 = vpop.f32.mrf.mxu0
    %v1848 = vadd.f32 0.0, %v1847
    %1849 = vdwg.mxu0
    %v1850 = vstv %s1675
    %v1851 = vmul.f32 %v1850, %v1848
    %v1852 = vadd.f32 %v1672, %v1851
    %v1853 = vperm.slane %v1817, 4
    %v1854 = vmul.f32 %v1731, %v1853
    %v1855 = vperm.slane %v1817, 5
    %v1856 = vmul.f32 %v1735, %v1855
    %v1857 = vadd.f32 %v1854, %v1856
    %v1858 = vperm.slane %v1817, 6
    %v1859 = vmul.f32 %v1739, %v1858
    %v1860 = vadd.f32 %v1857, %v1859
    %v1861 = vperm.slane %v1817, 7
    %v1862 = vmul.f32 %v1743, %v1861
    %v1863 = vadd.f32 %v1860, %v1862
    %v1864 = vsub.f32 %v47, %v1863
    %v1866 = vrot.slane %v1817, 4
    %1868 = vmatpush.xpose.msra.mxu0 0.0
    %1869 = vmatpush.xpose.msra.mxu0 0.0
    %1870 = vmatpush.xpose.msra.mxu0 0.0
    %1871 = vmatpush.xpose.msra.mxu0 0.0
    %1872 = vmatpush.xpose.msra.mxu0 0.0
    %1873 = vmatpush.xpose.msra.mxu0 0.0
    %1874 = vmatpush.xpose.msra.mxu0 0.0
    %1875 = vmatpush.xpose.msra.mxu0 0.0
    %1876 = vmatpush.xpose.msra.mxu0 0.0
    %1877 = vmatpush.xpose.msra.mxu0 0.0
    %1878 = vmatpush.xpose.msra.mxu0 0.0
    %1879 = vmatpush.xpose.msra.mxu0 0.0
    %1880 = vmatpush.xpose.msra.mxu0 0.0
    %1881 = vmatpush.xpose.msra.mxu0 0.0
    %1882 = vmatpush.xpose.msra.mxu0 0.0
    %1883 = vmatpush.xpose.msra.mxu0 %v1866
    %1884 = vmatmul.f32.gmra.mxu0 %v1864
    %v1885 = vpop.f32.mrf.mxu0
    %v1886 = vadd.f32 0.0, %v1885
    %1887 = vdwg.mxu0
    %v1888 = vmul.f32 %v1850, %v1886
    %v1889 = vadd.f32 %v1673, %v1888
    %v1890 = vmul.f32 %v1852, %v1852
    %v1891 = vsel %vm217, %v1890, 0.0
    %1892 = vadd.xlane.f32.xlu0 %v1891
    %v1893 = vpop.xlane.xlu0 %1892
    %v1894 = vmul.f32 %v1889, %v1889
    %v1895 = vsel %vm217, %v1894, 0.0
    %1896 = vadd.xlane.f32.xlu0 %v1895
    %v1897 = vpop.xlane.xlu0 %1896
    %v1898 = vadd.f32 %v1893, %v1897
    %vm1899 = vcmp.gt.f32.partialorder %v1898, 1.0
    %v1900 = vrsqrt.pop %v1898
    %v1901 = vmul.f32 %v1900, %v1898
    %v1902 = vmul.f32 %v1901, %v1900
    %v1903 = vmul.f32 0.5, %v1902
    %v1904 = vsub.f32 1.5, %v1903
    %v1905 = vmul.f32 %v1900, %v1904
    %vm1906 = vweird.f32 %v1898
    %vm1907 = vweird.f32 %v1900
    %vm1908 = vmor %vm1906, %vm1907
    %v1909 = vsel %vm1908, %v1900, %v1905
    %v1910 = vsel %vm1899, %v1909, 1.0
    %v1911 = vmul.f32 %v1852, %v1910
    %v1912 = vmul.f32 %v1889, %v1910
    %s1913 = sld [smem:[#allocation2 + $0x8]]
    %s1914 = sld [smem:[#allocation5 + $0x8]]
    %s1915 = scalar_lea.vmem %s1, 32
    %v1916 = vld [vmem:[%s1915] sm:$0xf]
    %1918 = vset.pattern.permute.xlu0 0
    %1919 = vperm.xlu0 %1918, %v1916
    %v1920 = vpop.permute.xlu0 %1919
    %1922 = vset.pattern.permute.xlu0 1
    %1923 = vperm.xlu0 %1922, %v1916
    %v1924 = vpop.permute.xlu0 %1923
    %1926 = vset.pattern.permute.xlu0 2
    %1927 = vperm.xlu0 %1926, %v1916
    %v1928 = vpop.permute.xlu0 %1927
    %1930 = vset.pattern.permute.xlu0 3
    %1931 = vperm.xlu0 %1930, %v1916
    %v1932 = vpop.permute.xlu0 %1931
    %1934 = vset.pattern.permute.xlu0 4
    %1935 = vperm.xlu0 %1934, %v1916
    %v1936 = vpop.permute.xlu0 %1935
    %1938 = vset.pattern.permute.xlu0 5
    %1939 = vperm.xlu0 %1938, %v1916
    %v1940 = vpop.permute.xlu0 %1939
    %1942 = vset.pattern.permute.xlu0 6
    %1943 = vperm.xlu0 %1942, %v1916
    %v1944 = vpop.permute.xlu0 %1943
    %1946 = vset.pattern.permute.xlu0 7
    %1947 = vperm.xlu0 %1946, %v1916
    %v1948 = vpop.permute.xlu0 %1947
    %1951 = vset.pattern.permute.xlu0 0
    %1952 = vperm.xlu0 %1951, %v1911
    %v1953 = vpop.permute.xlu0 %1952
    %1955 = vset.pattern.permute.xlu0 1
    %1956 = vperm.xlu0 %1955, %v1911
    %v1957 = vpop.permute.xlu0 %1956
    %1959 = vset.pattern.permute.xlu0 2
    %1960 = vperm.xlu0 %1959, %v1911
    %v1961 = vpop.permute.xlu0 %1960
    %1963 = vset.pattern.permute.xlu0 3
    %1964 = vperm.xlu0 %1963, %v1911
    %v1965 = vpop.permute.xlu0 %1964
    %1968 = vset.pattern.permute.xlu0 0
    %1969 = vperm.xlu0 %1968, %v1912
    %v1970 = vpop.permute.xlu0 %1969
    %1972 = vset.pattern.permute.xlu0 1
    %1973 = vperm.xlu0 %1972, %v1912
    %v1974 = vpop.permute.xlu0 %1973
    %1976 = vset.pattern.permute.xlu0 2
    %1977 = vperm.xlu0 %1976, %v1912
    %v1978 = vpop.permute.xlu0 %1977
    %1980 = vset.pattern.permute.xlu0 3
    %1981 = vperm.xlu0 %1980, %v1912
    %v1982 = vpop.permute.xlu0 %1981
    %v1984 = vmul.f32 %v1953, %v1818
    %v1985 = vmul.f32 %v1957, %v1820
    %v1986 = vadd.f32 %v1984, %v1985
    %v1987 = vmul.f32 %v1961, %v1823
    %v1988 = vadd.f32 %v1986, %v1987
    %v1989 = vmul.f32 %v1965, %v1826
    %v1990 = vadd.f32 %v1988, %v1989
    %v1991 = vsub.f32 %v1990, %v45
    %v1992 = vmul.f32 %v1970, %v1853
    %v1993 = vmul.f32 %v1974, %v1855
    %v1994 = vadd.f32 %v1992, %v1993
    %v1995 = vmul.f32 %v1978, %v1858
    %v1996 = vadd.f32 %v1994, %v1995
    %v1997 = vmul.f32 %v1982, %v1861
    %v1998 = vadd.f32 %v1996, %v1997
    %v1999 = vsub.f32 %v1998, %v47
    %v2000 = vperm.slane %v1991, 0
    %v2001 = vmul.f32 %v1920, %v2000
    %v2002 = vperm.slane %v1991, 1
    %v2003 = vmul.f32 %v1924, %v2002
    %v2004 = vadd.f32 %v2001, %v2003
    %v2005 = vperm.slane %v1991, 2
    %v2006 = vmul.f32 %v1928, %v2005
    %v2007 = vadd.f32 %v2004, %v2006
    %v2008 = vperm.slane %v1991, 3
    %v2009 = vmul.f32 %v1932, %v2008
    %v2010 = vadd.f32 %v2007, %v2009
    %v2011 = vperm.slane %v1991, 4
    %v2012 = vmul.f32 %v1936, %v2011
    %v2013 = vadd.f32 %v2010, %v2012
    %v2014 = vperm.slane %v1991, 5
    %v2015 = vmul.f32 %v1940, %v2014
    %v2016 = vadd.f32 %v2013, %v2015
    %v2017 = vperm.slane %v1991, 6
    %v2018 = vmul.f32 %v1944, %v2017
    %v2019 = vadd.f32 %v2016, %v2018
    %v2020 = vperm.slane %v1991, 7
    %v2021 = vmul.f32 %v1948, %v2020
    %v2022 = vadd.f32 %v2019, %v2021
    %v2023 = vperm.slane %v1999, 0
    %v2024 = vmul.f32 %v1920, %v2023
    %v2025 = vperm.slane %v1999, 1
    %v2026 = vmul.f32 %v1924, %v2025
    %v2027 = vadd.f32 %v2024, %v2026
    %v2028 = vperm.slane %v1999, 2
    %v2029 = vmul.f32 %v1928, %v2028
    %v2030 = vadd.f32 %v2027, %v2029
    %v2031 = vperm.slane %v1999, 3
    %v2032 = vmul.f32 %v1932, %v2031
    %v2033 = vadd.f32 %v2030, %v2032
    %v2034 = vperm.slane %v1999, 4
    %v2035 = vmul.f32 %v1936, %v2034
    %v2036 = vadd.f32 %v2033, %v2035
    %v2037 = vperm.slane %v1999, 5
    %v2038 = vmul.f32 %v1940, %v2037
    %v2039 = vadd.f32 %v2036, %v2038
    %v2040 = vperm.slane %v1999, 6
    %v2041 = vmul.f32 %v1944, %v2040
    %v2042 = vadd.f32 %v2039, %v2041
    %v2043 = vperm.slane %v1999, 7
    %v2044 = vmul.f32 %v1948, %v2043
    %v2045 = vadd.f32 %v2042, %v2044
    %v2047 = vrot.slane %v2045, 4
    %v2049 = vsel %vm135, %v2022, %v2047
    %v2050 = vsub.f32 %v1817, %v2049
    %s2051 = ssub.f32 0.0, %s1913
    %v2052 = vstv %s2051
    %v2053 = vmax.f32 %v2052, %v2050
    %v2054 = vstv %s1913
    %v2055 = vmin.f32 %v2054, %v2053
    %v2056 = vsub.f32 %v2050, %v2055
    %v2057 = vperm.slane %v2056, 0
    %v2058 = vmul.f32 %v1953, %v2057
    %v2059 = vperm.slane %v2056, 1
    %v2060 = vmul.f32 %v1957, %v2059
    %v2061 = vadd.f32 %v2058, %v2060
    %v2062 = vperm.slane %v2056, 2
    %v2063 = vmul.f32 %v1961, %v2062
    %v2064 = vadd.f32 %v2061, %v2063
    %v2065 = vperm.slane %v2056, 3
    %v2066 = vmul.f32 %v1965, %v2065
    %v2067 = vadd.f32 %v2064, %v2066
    %v2068 = vsub.f32 %v45, %v2067
    %2069 = vmatpush.xpose.msra.mxu0 0.0
    %2070 = vmatpush.xpose.msra.mxu0 0.0
    %2071 = vmatpush.xpose.msra.mxu0 0.0
    %2072 = vmatpush.xpose.msra.mxu0 0.0
    %2073 = vmatpush.xpose.msra.mxu0 0.0
    %2074 = vmatpush.xpose.msra.mxu0 0.0
    %2075 = vmatpush.xpose.msra.mxu0 0.0
    %2076 = vmatpush.xpose.msra.mxu0 0.0
    %2077 = vmatpush.xpose.msra.mxu0 0.0
    %2078 = vmatpush.xpose.msra.mxu0 0.0
    %2079 = vmatpush.xpose.msra.mxu0 0.0
    %2080 = vmatpush.xpose.msra.mxu0 0.0
    %2081 = vmatpush.xpose.msra.mxu0 0.0
    %2082 = vmatpush.xpose.msra.mxu0 0.0
    %2083 = vmatpush.xpose.msra.mxu0 0.0
    %2084 = vmatpush.xpose.msra.mxu0 %v2056
    %2085 = vmatmul.f32.gmra.mxu0 %v2068
    %v2086 = vpop.f32.mrf.mxu0
    %v2087 = vadd.f32 0.0, %v2086
    %2088 = vdwg.mxu0
    %v2089 = vstv %s1914
    %v2090 = vmul.f32 %v2089, %v2087
    %v2091 = vadd.f32 %v1911, %v2090
    %v2092 = vperm.slane %v2056, 4
    %v2093 = vmul.f32 %v1970, %v2092
    %v2094 = vperm.slane %v2056, 5
    %v2095 = vmul.f32 %v1974, %v2094
    %v2096 = vadd.f32 %v2093, %v2095
    %v2097 = vperm.slane %v2056, 6
    %v2098 = vmul.f32 %v1978, %v2097
    %v2099 = vadd.f32 %v2096, %v2098
    %v2100 = vperm.slane %v2056, 7
    %v2101 = vmul.f32 %v1982, %v2100
    %v2102 = vadd.f32 %v2099, %v2101
    %v2103 = vsub.f32 %v47, %v2102
    %v2105 = vrot.slane %v2056, 4
    %2107 = vmatpush.xpose.msra.mxu0 0.0
    %2108 = vmatpush.xpose.msra.mxu0 0.0
    %2109 = vmatpush.xpose.msra.mxu0 0.0
    %2110 = vmatpush.xpose.msra.mxu0 0.0
    %2111 = vmatpush.xpose.msra.mxu0 0.0
    %2112 = vmatpush.xpose.msra.mxu0 0.0
    %2113 = vmatpush.xpose.msra.mxu0 0.0
    %2114 = vmatpush.xpose.msra.mxu0 0.0
    %2115 = vmatpush.xpose.msra.mxu0 0.0
    %2116 = vmatpush.xpose.msra.mxu0 0.0
    %2117 = vmatpush.xpose.msra.mxu0 0.0
    %2118 = vmatpush.xpose.msra.mxu0 0.0
    %2119 = vmatpush.xpose.msra.mxu0 0.0
    %2120 = vmatpush.xpose.msra.mxu0 0.0
    %2121 = vmatpush.xpose.msra.mxu0 0.0
    %2122 = vmatpush.xpose.msra.mxu0 %v2105
    %2123 = vmatmul.f32.gmra.mxu0 %v2103
    %v2124 = vpop.f32.mrf.mxu0
    %v2125 = vadd.f32 0.0, %v2124
    %2126 = vdwg.mxu0
    %v2127 = vmul.f32 %v2089, %v2125
    %v2128 = vadd.f32 %v1912, %v2127
    %v2129 = vmul.f32 %v2091, %v2091
    %v2130 = vsel %vm217, %v2129, 0.0
    %2131 = vadd.xlane.f32.xlu0 %v2130
    %v2132 = vpop.xlane.xlu0 %2131
    %v2133 = vmul.f32 %v2128, %v2128
    %v2134 = vsel %vm217, %v2133, 0.0
    %2135 = vadd.xlane.f32.xlu0 %v2134
    %v2136 = vpop.xlane.xlu0 %2135
    %v2137 = vadd.f32 %v2132, %v2136
    %vm2138 = vcmp.gt.f32.partialorder %v2137, 1.0
    %v2139 = vrsqrt.pop %v2137
    %v2140 = vmul.f32 %v2139, %v2137
    %v2141 = vmul.f32 %v2140, %v2139
    %v2142 = vmul.f32 0.5, %v2141
    %v2143 = vsub.f32 1.5, %v2142
    %v2144 = vmul.f32 %v2139, %v2143
    %vm2145 = vweird.f32 %v2137
    %vm2146 = vweird.f32 %v2139
    %vm2147 = vmor %vm2145, %vm2146
    %v2148 = vsel %vm2147, %v2139, %v2144
    %v2149 = vsel %vm2138, %v2148, 1.0
    %v2150 = vmul.f32 %v2091, %v2149
    %v2151 = vmul.f32 %v2128, %v2149
    %s2152 = sld [smem:[#allocation2 + $0x9]]
    %s2153 = sld [smem:[#allocation5 + $0x9]]
    %s2154 = scalar_lea.vmem %s1, 36
    %v2155 = vld [vmem:[%s2154] sm:$0xf]
    %2157 = vset.pattern.permute.xlu0 0
    %2158 = vperm.xlu0 %2157, %v2155
    %v2159 = vpop.permute.xlu0 %2158
    %2161 = vset.pattern.permute.xlu0 1
    %2162 = vperm.xlu0 %2161, %v2155
    %v2163 = vpop.permute.xlu0 %2162
    %2165 = vset.pattern.permute.xlu0 2
    %2166 = vperm.xlu0 %2165, %v2155
    %v2167 = vpop.permute.xlu0 %2166
    %2169 = vset.pattern.permute.xlu0 3
    %2170 = vperm.xlu0 %2169, %v2155
    %v2171 = vpop.permute.xlu0 %2170
    %2173 = vset.pattern.permute.xlu0 4
    %2174 = vperm.xlu0 %2173, %v2155
    %v2175 = vpop.permute.xlu0 %2174
    %2177 = vset.pattern.permute.xlu0 5
    %2178 = vperm.xlu0 %2177, %v2155
    %v2179 = vpop.permute.xlu0 %2178
    %2181 = vset.pattern.permute.xlu0 6
    %2182 = vperm.xlu0 %2181, %v2155
    %v2183 = vpop.permute.xlu0 %2182
    %2185 = vset.pattern.permute.xlu0 7
    %2186 = vperm.xlu0 %2185, %v2155
    %v2187 = vpop.permute.xlu0 %2186
    %2190 = vset.pattern.permute.xlu0 0
    %2191 = vperm.xlu0 %2190, %v2150
    %v2192 = vpop.permute.xlu0 %2191
    %2194 = vset.pattern.permute.xlu0 1
    %2195 = vperm.xlu0 %2194, %v2150
    %v2196 = vpop.permute.xlu0 %2195
    %2198 = vset.pattern.permute.xlu0 2
    %2199 = vperm.xlu0 %2198, %v2150
    %v2200 = vpop.permute.xlu0 %2199
    %2202 = vset.pattern.permute.xlu0 3
    %2203 = vperm.xlu0 %2202, %v2150
    %v2204 = vpop.permute.xlu0 %2203
    %2207 = vset.pattern.permute.xlu0 0
    %2208 = vperm.xlu0 %2207, %v2151
    %v2209 = vpop.permute.xlu0 %2208
    %2211 = vset.pattern.permute.xlu0 1
    %2212 = vperm.xlu0 %2211, %v2151
    %v2213 = vpop.permute.xlu0 %2212
    %2215 = vset.pattern.permute.xlu0 2
    %2216 = vperm.xlu0 %2215, %v2151
    %v2217 = vpop.permute.xlu0 %2216
    %2219 = vset.pattern.permute.xlu0 3
    %2220 = vperm.xlu0 %2219, %v2151
    %v2221 = vpop.permute.xlu0 %2220
    %v2223 = vmul.f32 %v2192, %v2057
    %v2224 = vmul.f32 %v2196, %v2059
    %v2225 = vadd.f32 %v2223, %v2224
    %v2226 = vmul.f32 %v2200, %v2062
    %v2227 = vadd.f32 %v2225, %v2226
    %v2228 = vmul.f32 %v2204, %v2065
    %v2229 = vadd.f32 %v2227, %v2228
    %v2230 = vsub.f32 %v2229, %v45
    %v2231 = vmul.f32 %v2209, %v2092
    %v2232 = vmul.f32 %v2213, %v2094
    %v2233 = vadd.f32 %v2231, %v2232
    %v2234 = vmul.f32 %v2217, %v2097
    %v2235 = vadd.f32 %v2233, %v2234
    %v2236 = vmul.f32 %v2221, %v2100
    %v2237 = vadd.f32 %v2235, %v2236
    %v2238 = vsub.f32 %v2237, %v47
    %v2239 = vperm.slane %v2230, 0
    %v2240 = vmul.f32 %v2159, %v2239
    %v2241 = vperm.slane %v2230, 1
    %v2242 = vmul.f32 %v2163, %v2241
    %v2243 = vadd.f32 %v2240, %v2242
    %v2244 = vperm.slane %v2230, 2
    %v2245 = vmul.f32 %v2167, %v2244
    %v2246 = vadd.f32 %v2243, %v2245
    %v2247 = vperm.slane %v2230, 3
    %v2248 = vmul.f32 %v2171, %v2247
    %v2249 = vadd.f32 %v2246, %v2248
    %v2250 = vperm.slane %v2230, 4
    %v2251 = vmul.f32 %v2175, %v2250
    %v2252 = vadd.f32 %v2249, %v2251
    %v2253 = vperm.slane %v2230, 5
    %v2254 = vmul.f32 %v2179, %v2253
    %v2255 = vadd.f32 %v2252, %v2254
    %v2256 = vperm.slane %v2230, 6
    %v2257 = vmul.f32 %v2183, %v2256
    %v2258 = vadd.f32 %v2255, %v2257
    %v2259 = vperm.slane %v2230, 7
    %v2260 = vmul.f32 %v2187, %v2259
    %v2261 = vadd.f32 %v2258, %v2260
    %v2262 = vperm.slane %v2238, 0
    %v2263 = vmul.f32 %v2159, %v2262
    %v2264 = vperm.slane %v2238, 1
    %v2265 = vmul.f32 %v2163, %v2264
    %v2266 = vadd.f32 %v2263, %v2265
    %v2267 = vperm.slane %v2238, 2
    %v2268 = vmul.f32 %v2167, %v2267
    %v2269 = vadd.f32 %v2266, %v2268
    %v2270 = vperm.slane %v2238, 3
    %v2271 = vmul.f32 %v2171, %v2270
    %v2272 = vadd.f32 %v2269, %v2271
    %v2273 = vperm.slane %v2238, 4
    %v2274 = vmul.f32 %v2175, %v2273
    %v2275 = vadd.f32 %v2272, %v2274
    %v2276 = vperm.slane %v2238, 5
    %v2277 = vmul.f32 %v2179, %v2276
    %v2278 = vadd.f32 %v2275, %v2277
    %v2279 = vperm.slane %v2238, 6
    %v2280 = vmul.f32 %v2183, %v2279
    %v2281 = vadd.f32 %v2278, %v2280
    %v2282 = vperm.slane %v2238, 7
    %v2283 = vmul.f32 %v2187, %v2282
    %v2284 = vadd.f32 %v2281, %v2283
    %v2286 = vrot.slane %v2284, 4
    %v2288 = vsel %vm135, %v2261, %v2286
    %v2289 = vsub.f32 %v2056, %v2288
    %s2290 = ssub.f32 0.0, %s2152
    %v2291 = vstv %s2290
    %v2292 = vmax.f32 %v2291, %v2289
    %v2293 = vstv %s2152
    %v2294 = vmin.f32 %v2293, %v2292
    %v2295 = vsub.f32 %v2289, %v2294
    %v2296 = vperm.slane %v2295, 0
    %v2297 = vmul.f32 %v2192, %v2296
    %v2298 = vperm.slane %v2295, 1
    %v2299 = vmul.f32 %v2196, %v2298
    %v2300 = vadd.f32 %v2297, %v2299
    %v2301 = vperm.slane %v2295, 2
    %v2302 = vmul.f32 %v2200, %v2301
    %v2303 = vadd.f32 %v2300, %v2302
    %v2304 = vperm.slane %v2295, 3
    %v2305 = vmul.f32 %v2204, %v2304
    %v2306 = vadd.f32 %v2303, %v2305
    %v2307 = vsub.f32 %v45, %v2306
    %2308 = vmatpush.xpose.msra.mxu0 0.0
    %2309 = vmatpush.xpose.msra.mxu0 0.0
    %2310 = vmatpush.xpose.msra.mxu0 0.0
    %2311 = vmatpush.xpose.msra.mxu0 0.0
    %2312 = vmatpush.xpose.msra.mxu0 0.0
    %2313 = vmatpush.xpose.msra.mxu0 0.0
    %2314 = vmatpush.xpose.msra.mxu0 0.0
    %2315 = vmatpush.xpose.msra.mxu0 0.0
    %2316 = vmatpush.xpose.msra.mxu0 0.0
    %2317 = vmatpush.xpose.msra.mxu0 0.0
    %2318 = vmatpush.xpose.msra.mxu0 0.0
    %2319 = vmatpush.xpose.msra.mxu0 0.0
    %2320 = vmatpush.xpose.msra.mxu0 0.0
    %2321 = vmatpush.xpose.msra.mxu0 0.0
    %2322 = vmatpush.xpose.msra.mxu0 0.0
    %2323 = vmatpush.xpose.msra.mxu0 %v2295
    %2324 = vmatmul.f32.gmra.mxu0 %v2307
    %v2325 = vpop.f32.mrf.mxu0
    %v2326 = vadd.f32 0.0, %v2325
    %2327 = vdwg.mxu0
    %v2328 = vstv %s2153
    %v2329 = vmul.f32 %v2328, %v2326
    %v2330 = vadd.f32 %v2150, %v2329
    %v2331 = vperm.slane %v2295, 4
    %v2332 = vmul.f32 %v2209, %v2331
    %v2333 = vperm.slane %v2295, 5
    %v2334 = vmul.f32 %v2213, %v2333
    %v2335 = vadd.f32 %v2332, %v2334
    %v2336 = vperm.slane %v2295, 6
    %v2337 = vmul.f32 %v2217, %v2336
    %v2338 = vadd.f32 %v2335, %v2337
    %v2339 = vperm.slane %v2295, 7
    %v2340 = vmul.f32 %v2221, %v2339
    %v2341 = vadd.f32 %v2338, %v2340
    %v2342 = vsub.f32 %v47, %v2341
    %v2344 = vrot.slane %v2295, 4
    %2346 = vmatpush.xpose.msra.mxu0 0.0
    %2347 = vmatpush.xpose.msra.mxu0 0.0
    %2348 = vmatpush.xpose.msra.mxu0 0.0
    %2349 = vmatpush.xpose.msra.mxu0 0.0
    %2350 = vmatpush.xpose.msra.mxu0 0.0
    %2351 = vmatpush.xpose.msra.mxu0 0.0
    %2352 = vmatpush.xpose.msra.mxu0 0.0
    %2353 = vmatpush.xpose.msra.mxu0 0.0
    %2354 = vmatpush.xpose.msra.mxu0 0.0
    %2355 = vmatpush.xpose.msra.mxu0 0.0
    %2356 = vmatpush.xpose.msra.mxu0 0.0
    %2357 = vmatpush.xpose.msra.mxu0 0.0
    %2358 = vmatpush.xpose.msra.mxu0 0.0
    %2359 = vmatpush.xpose.msra.mxu0 0.0
    %2360 = vmatpush.xpose.msra.mxu0 0.0
    %2361 = vmatpush.xpose.msra.mxu0 %v2344
    %2362 = vmatmul.f32.gmra.mxu0 %v2342
    %v2363 = vpop.f32.mrf.mxu0
    %v2364 = vadd.f32 0.0, %v2363
    %2365 = vdwg.mxu0
    %v2366 = vmul.f32 %v2328, %v2364
    %v2367 = vadd.f32 %v2151, %v2366
    %v2368 = vmul.f32 %v2330, %v2330
    %v2369 = vsel %vm217, %v2368, 0.0
    %2370 = vadd.xlane.f32.xlu0 %v2369
    %v2371 = vpop.xlane.xlu0 %2370
    %v2372 = vmul.f32 %v2367, %v2367
    %v2373 = vsel %vm217, %v2372, 0.0
    %2374 = vadd.xlane.f32.xlu0 %v2373
    %v2375 = vpop.xlane.xlu0 %2374
    %v2376 = vadd.f32 %v2371, %v2375
    %vm2377 = vcmp.gt.f32.partialorder %v2376, 1.0
    %v2378 = vrsqrt.pop %v2376
    %v2379 = vmul.f32 %v2378, %v2376
    %v2380 = vmul.f32 %v2379, %v2378
    %v2381 = vmul.f32 0.5, %v2380
    %v2382 = vsub.f32 1.5, %v2381
    %v2383 = vmul.f32 %v2378, %v2382
    %vm2384 = vweird.f32 %v2376
    %vm2385 = vweird.f32 %v2378
    %vm2386 = vmor %vm2384, %vm2385
    %v2387 = vsel %vm2386, %v2378, %v2383
    %v2388 = vsel %vm2377, %v2387, 1.0
    %v2389 = vmul.f32 %v2330, %v2388
    %v2390 = vmul.f32 %v2367, %v2388
    %2391 = vst [vmem:[#allocation7] sm:$0xf] %v2295
    %2392 = vst.msk [vmem:[%s5] sm:$0xff] %vm217, %v2389
    %s2393 = scalar_lea.vmem [#allocation7], 4
    %2394 = vst [vmem:[%s2393 - $0x4] sm:$0xf0] %v2295
    %s2395 = scalar_lea.vmem %s5, 8
    %2396 = vst.msk [vmem:[%s2395] sm:$0xff] %vm217, %v2390
    // Predicated region
    $region26: #{tpu_custom_call.1} parent=1 // pred_check
      _
    $region27: #{tpu_custom_call.1} parent=1 // pred_check_branch
      %2398 = sbr.rel (0) target = $region29
    $region28: #{tpu_custom_call.1} parent=1 // pred_region
      %2400 = vsyncadd [#allocation3], 0
      %s2401 = sshll.u32 [#allocation7], 4
      %s2402 = int_to_ptr.vmem [resolvable:$true] %s2401
      %s2403 = sshll.u32 %s4, 4
      %s2404 = int_to_ptr.hbm [resolvable:$true] %s2403
      %2409 = dma.vmem_to_hbm [thread:$0]  %s2402, 128, %s2404, [#allocation3], 64, 64, 4
    $region29: #{tpu_custom_call.1} parent=1 // pred_fallthru
      _
    // Predicated region
    $region30: #{tpu_custom_call.1} parent=1 // pred_check
      _
    $region31: #{tpu_custom_call.1} parent=1 // pred_check_branch
      %2411 = sbr.rel (0) target = $region33
    $region32: #{tpu_custom_call.1} parent=1 // pred_region
      _
    $region33: #{tpu_custom_call.1} parent=1 // pred_fallthru
      _
    // Predicated region
    $region34: #{tpu_custom_call.1} parent=1 // pred_check
      _
    $region35: #{tpu_custom_call.1} parent=1 // pred_check_branch
      %2413 = sbr.rel (0) target = $region37
    $region36: #{tpu_custom_call.1} parent=1 // pred_region
      %2415 = dma.done [#allocation3], 128
    $region37: #{tpu_custom_call.1} parent=1 // pred_fallthru
      _
    // Predicated region
    $region38: #{tpu_custom_call.1} parent=1 // pred_check
      _
    $region39: #{tpu_custom_call.1} parent=1 // pred_check_branch
      %2417 = sbr.rel (0) target = $region41
    $region40: #{tpu_custom_call.1} parent=1 // pred_region
      _
    $region41: #{tpu_custom_call.1} parent=1 // pred_fallthru
      _
    %2418 = vsyncpa [#allocation3], 1
    %2419 = vsyncpa [#allocation4], 1
    %2420 = vsyncpa [#allocation6], 1

</llo_original>
